<compile_context>
chip_gen: v7x
topology: tpu7x:2x2x1
jax: 0.10.0
libtpu: 0.0.40
codegen_flags: <defaults>
</compile_context>

<pallas_src>
import jax
import jax.numpy as jnp
from jax.experimental import pallas as pl
from jax.experimental.pallas import tpu as pltpu


# ----------------------------------------------------------------------------
# Fused forward kernel
# ----------------------------------------------------------------------------
def _make_fused_kernel(B, H, W, C, L, M, Hd, Ncls):
    HW = H * W
    BHW = B * HW

    def kernel(*refs):
        it = iter(refs)
        x_ref = next(it)                                        # (1, BHW)      VMEM
        m_ref = next(it)                                        # (9, BHW)      VMEM
        w1_ref = next(it)                                        # (C, 9)        VMEM
        b1_ref = next(it)                                        # (C, 1)        VMEM
        conv_refs = [(next(it), next(it)) for _ in range(L)]     # (C, 9C),(C,1) VMEM
        fc0w_hbm = next(it)                                      # (C*HW, Hd)    HBM/ANY
        fc0b_ref = next(it)                                      # (1, Hd)       VMEM
        mid_refs = [(next(it), next(it)) for _ in range(M)]      # (Hd,Hd),(1,Hd)
        flw_ref = next(it)                                       # (Hd, Ncls)
        flb_ref = next(it)                                       # (1, Ncls)
        o_ref = next(it)                                         # (B, Ncls)     out
        patch_ref = next(it)                                     # (9*C, BHW)    scratch
        fc0w_vmem = next(it)                                     # (C*HW, Hd)    scratch
        fc0_sem = next(it)                                       # DMA semaphore

        # Kick off the big fc0 weight copy now; it is only needed after the conv chain.
        fc0_cp = pltpu.make_async_copy(fc0w_hbm, fc0w_vmem, fc0_sem)
        fc0_cp.start()

        def conv3x3(act, w_ref, b_ref, cin, relu):
            # act: (cin, BHW) channel-major, batch folded into the lane axis.
            # Build the 9 shifted + masked taps directly in the patch scratch
            # (taps die immediately after their store), then ONE im2col matmul.
            t = 0
            for dh in (-1, 0, 1):
                for dw in (-1, 0, 1):
                    d = dh * W + dw
                    # shifted[:, i] = act[:, (i + d) mod BHW]; the mask zeros every
                    # position where (h+dh, w+dw) is outside the image, covering both
                    # the zero 'same' padding and any wrap / cross-batch leakage.
                    shifted = act if d == 0 else pltpu.roll(act, (-d) % BHW, axis=1)
                    mrow = m_ref[pl.ds(t, 1), :]                 # (1, BHW) from ref
                    patch_ref[pl.ds(t * cin, cin), :] = shifted * mrow
                    t += 1
            out = jnp.dot(w_ref[...], patch_ref[pl.ds(0, 9 * cin), :],
                          preferred_element_type=jnp.float32) + b_ref[...]
            if relu:
                out = jnp.maximum(out, 0.0)
            return out

        # conv1 has NO relu in the torch module; the following L convs do.
        act = conv3x3(x_ref[...], w1_ref, b1_ref, 1, relu=False)
        for wr, br in conv_refs:
            act = conv3x3(act, wr, br, C, relu=True)

        # One relayout into torch flatten order (c, h, w): actF[b, c*HW + q] = act[c, b*HW + q]
        rows = []
        for b in range(B):
            rows.append(jnp.concatenate(
                [act[c:c + 1, b * HW:(b + 1) * HW] for c in range(C)], axis=1))
        actF = jnp.concatenate(rows, axis=0)                     # (B, C*HW)

        # fc0: single matmul against the DMA'd weight.
        fc0_cp.wait()
        h = jnp.dot(actF, fc0w_vmem[...],
                    preferred_element_type=jnp.float32) + fc0b_ref[...]
        h = jnp.maximum(h, 0.0)

        for wr, br in mid_refs:
            h = jnp.maximum(
                jnp.dot(h, wr[...], preferred_element_type=jnp.float32) + br[...], 0.0)

        logits = (jnp.dot(h, flw_ref[...], preferred_element_type=jnp.float32)
                  + flb_ref[...])

        # log_softmax along the class axis (numerically stabilized)
        mx = jnp.max(logits, axis=-1, keepdims=True)
        s = logits - mx
        lse = jnp.log(jnp.sum(jnp.exp(s), axis=-1, keepdims=True))
        o_ref[...] = s - lse

    return kernel


def lcnn_forward(x, params):
    """x: (B, H, W) float32. Fully fused LCNN forward in a single pallas_call."""
    B, H, W = x.shape
    C = params["conv1_w"].shape[-1]
    L = len(params["convs"])
    Hd = params["fc0_w"].shape[-1]
    M = len(params["fc_mid"])
    Ncls = params["fc_last_w"].shape[-1]
    HW = H * W
    BHW = B * HW

    # channel-major input, batch folded into the lane axis: (1, B*H*W)
    x2d = x.reshape(1, BHW).astype(jnp.float32)

    # 9 tap-validity masks implementing the zero 'same' padding (trace-time constants)
    idx = jnp.arange(BHW)
    hh = (idx % HW) // W
    ww = idx % W
    mask_rows = []
    for dh in (-1, 0, 1):
        for dw in (-1, 0, 1):
            valid = ((hh + dh >= 0) & (hh + dh < H) &
                     (ww + dw >= 0) & (ww + dw < W))
            mask_rows.append(valid.astype(jnp.float32))
    masks = jnp.stack(mask_rows, axis=0)                         # (9, BHW)

    def conv_mat(w):
        # (3, 3, Cin, Cout) -> (Cout, 9*Cin); column index = (kh*3+kw)*Cin + ci
        cin, cout = w.shape[2], w.shape[3]
        return jnp.transpose(w.reshape(9 * cin, cout))

    w1m = conv_mat(params["conv1_w"])                            # (C, 9)
    b1c = params["conv1_b"].reshape(C, 1)
    conv_args = []
    for w, b in params["convs"]:
        conv_args += [conv_mat(w), b.reshape(C, 1)]

    fc0w = params["fc0_w"].astype(jnp.float32)                   # (C*HW, Hd), (c,h,w) order
    fc0b = params["fc0_b"].reshape(1, Hd)
    mid_args = []
    for w, b in params["fc_mid"]:
        mid_args += [w, b.reshape(1, Hd)]
    flw = params["fc_last_w"]
    flb = params["fc_last_b"].reshape(1, Ncls)

    args = ([x2d, masks, w1m, b1c] + conv_args
            + [fc0w, fc0b] + mid_args + [flw, flb])

    def vspec(a):
        return pl.BlockSpec(a.shape, lambda i, _n=a.ndim: (0,) * _n)

    in_specs = ([vspec(x2d), vspec(masks), vspec(w1m), vspec(b1c)]
                + [vspec(a) for a in conv_args]
                # fc0_w stays in HBM; it is DMA'd inside the kernel, overlapped with convs
                + [pl.BlockSpec(memory_space=pl.ANY), vspec(fc0b)]
                + [vspec(a) for a in mid_args]
                + [vspec(flw), vspec(flb)])

    scratch_shapes = [
        pltpu.VMEM((9 * C, BHW), jnp.float32),   # im2col patch buffer (per conv layer)
        pltpu.VMEM((C * HW, Hd), jnp.float32),   # landing buffer for fc0_w
        pltpu.SemaphoreType.DMA,                 # completion sem for the fc0_w copy
    ]

    flops = (2 * 9 * 1 * C * BHW + L * 2 * 9 * C * C * BHW
             + 2 * B * (C * HW) * Hd + M * 2 * B * Hd * Hd + 2 * B * Hd * Ncls)
    bytes_accessed = 4 * (sum(int(a.size) for a in args) + B * Ncls
                          + (L + 1) * 9 * C * BHW)

    kernel = _make_fused_kernel(B, H, W, C, L, M, Hd, Ncls)
    return pl.pallas_call(
        kernel,
        out_shape=jax.ShapeDtypeStruct((B, Ncls), jnp.float32),
        grid_spec=pltpu.PrefetchScalarGridSpec(
            num_scalar_prefetch=0,
            grid=(1,),
            in_specs=in_specs,
            out_specs=pl.BlockSpec((B, Ncls), lambda i: (0, 0)),
            scratch_shapes=scratch_shapes,
        ),
        compiler_params=pltpu.CompilerParams(
            dimension_semantics=("arbitrary",)),
        cost_estimate=pl.CostEstimate(
            flops=int(flops),
            transcendentals=int(B * Ncls + B),
            bytes_accessed=int(bytes_accessed)),
    )(*args)


# ----------------------------------------------------------------------------
# Parameters + pure-JAX reference (for correctness verification)
# ----------------------------------------------------------------------------
def init_params(key, *, num_conv_layers, num_channels, num_linear_layers,
                hidden_size, num_classes, h_in, w_in):
    n_keys = 6 + 2 * num_conv_layers + 2 * (num_linear_layers - 1)
    ki = iter(jax.random.split(key, n_keys))
    s = 0.1
    p = {}
    p["conv1_w"] = s * jax.random.normal(next(ki), (3, 3, 1, num_channels), jnp.float32)
    p["conv1_b"] = s * jax.random.normal(next(ki), (num_channels,), jnp.float32)
    p["convs"] = []
    for _ in range(num_conv_layers):
        w = s * jax.random.normal(next(ki), (3, 3, num_channels, num_channels), jnp.float32)
        b = s * jax.random.normal(next(ki), (num_channels,), jnp.float32)
        p["convs"].append((w, b))
    # stride=1, padding=(k-1)//2 -> h_out=h_in, w_out=w_in
    D = num_channels * h_in * w_in
    p["fc0_w"] = s * jax.random.normal(next(ki), (D, hidden_size), jnp.float32)
    p["fc0_b"] = s * jax.random.normal(next(ki), (hidden_size,), jnp.float32)
    p["fc_mid"] = []
    for _ in range(num_linear_layers - 1):
        w = s * jax.random.normal(next(ki), (hidden_size, hidden_size), jnp.float32)
        b = s * jax.random.normal(next(ki), (hidden_size,), jnp.float32)
        p["fc_mid"].append((w, b))
    p["fc_last_w"] = s * jax.random.normal(next(ki), (hidden_size, num_classes), jnp.float32)
    p["fc_last_b"] = s * jax.random.normal(next(ki), (num_classes,), jnp.float32)
    return p


def lcnn_reference(x, params):
    hp = jax.lax.Precision.HIGHEST
    y = x[..., None].astype(jnp.float32)          # NHWC

    def conv(y, w, b):
        out = jax.lax.conv_general_dilated(
            y, w, window_strides=(1, 1), padding=((1, 1), (1, 1)),
            dimension_numbers=("NHWC", "HWIO", "NHWC"), precision=hp)
        return out + b.reshape(1, 1, 1, -1)

    y = conv(y, params["conv1_w"], params["conv1_b"])
    for w, b in params["convs"]:
        y = jnp.maximum(conv(y, w, b), 0.0)
    B, H, W, C = y.shape
    y = jnp.transpose(y, (0, 3, 1, 2)).reshape(B, C * H * W)   # torch flatten order
    y = jnp.maximum(jnp.dot(y, params["fc0_w"], precision=hp) + params["fc0_b"], 0.0)
    for w, b in params["fc_mid"]:
        y = jnp.maximum(jnp.dot(y, w, precision=hp) + b, 0.0)
    logits = jnp.dot(y, params["fc_last_w"], precision=hp) + params["fc_last_b"]
    return jax.nn.log_softmax(logits, axis=-1)


if __name__ == "__main__":
    # Small shapes consistent with the module's parameterization.
    B, H_IN, W_IN = 2, 16, 16
    NUM_CONV_LAYERS = 2
    NUM_CHANNELS = 8
    NUM_LINEAR_LAYERS = 2
    HIDDEN = 32
    NUM_CLASSES = 3

    key = jax.random.PRNGKey(0)
    k_x, k_p = jax.random.split(key)
    x = jax.random.normal(k_x, (B, H_IN, W_IN), jnp.float32)
    params = init_params(k_p,
                         num_conv_layers=NUM_CONV_LAYERS,
                         num_channels=NUM_CHANNELS,
                         num_linear_layers=NUM_LINEAR_LAYERS,
                         hidden_size=HIDDEN,
                         num_classes=NUM_CLASSES,
                         h_in=H_IN, w_in=W_IN)

    out = jax.block_until_ready(jax.jit(lcnn_forward)(x, params))

    # Sanity: shape, finiteness, log_softmax rows exponentiate to ~1.
    assert out.shape == (B, NUM_CLASSES)
    assert bool(jnp.all(jnp.isfinite(out)))
    row_sums = jnp.exp(out).sum(axis=1)
    assert bool(jnp.all(jnp.abs(row_sums - 1.0) < 1e-4))

    # Verify against a pure-JAX reference of the torch module.
    ref = jax.block_until_ready(jax.jit(lcnn_reference)(x, params))
    max_err = float(jnp.max(jnp.abs(out - ref)))
    assert max_err < 2e-2, f"mismatch vs reference: max abs err = {max_err}"

    print("KERNEL_OK")
</pallas_src>

<mosaic_0001>
module attributes {stable_mosaic.version = 11 : i64} {
  func.func @kernel(%arg0: i32, %arg1: memref<1x512xf32, #tpu.memory_space<vmem>>, %arg2: memref<9x512xf32, #tpu.memory_space<vmem>>, %arg3: memref<8x9xf32, #tpu.memory_space<vmem>>, %arg4: memref<8x1xf32, #tpu.memory_space<vmem>>, %arg5: memref<8x72xf32, #tpu.memory_space<vmem>>, %arg6: memref<8x1xf32, #tpu.memory_space<vmem>>, %arg7: memref<8x72xf32, #tpu.memory_space<vmem>>, %arg8: memref<8x1xf32, #tpu.memory_space<vmem>>, %arg9: memref<2048x32xf32, #tpu.memory_space<any>>, %arg10: memref<1x32xf32, #tpu.memory_space<vmem>>, %arg11: memref<32x32xf32, #tpu.memory_space<vmem>>, %arg12: memref<1x32xf32, #tpu.memory_space<vmem>>, %arg13: memref<32x3xf32, #tpu.memory_space<vmem>>, %arg14: memref<1x3xf32, #tpu.memory_space<vmem>>, %arg15: memref<2x3xf32, #tpu.memory_space<vmem>>, %arg16: memref<72x512xf32, #tpu.memory_space<vmem>>, %arg17: memref<2048x32xf32, #tpu.memory_space<vmem>>, %arg18: memref<!tpu.dma_semaphore, #tpu.memory_space<semaphore_mem>>) attributes {dimension_semantics = [#tpu.dimension_semantics<arbitrary>], iteration_bounds = array<i64: 1>, scalar_prefetch = 0 : i64, scratch_operands = 3 : i64, tpu.core_type = #tpu.core_type<tc>, window_params = [{pipeline_mode = #tpu.pipeline_mode<synchronous>, transform_indices = @transform_0, window_bounds = array<i64: 1, 512>}, {pipeline_mode = #tpu.pipeline_mode<synchronous>, transform_indices = @transform_1, window_bounds = array<i64: 9, 512>}, {pipeline_mode = #tpu.pipeline_mode<synchronous>, transform_indices = @transform_2, window_bounds = array<i64: 8, 9>}, {pipeline_mode = #tpu.pipeline_mode<synchronous>, transform_indices = @transform_3, window_bounds = array<i64: 8, 1>}, {pipeline_mode = #tpu.pipeline_mode<synchronous>, transform_indices = @transform_4, window_bounds = array<i64: 8, 72>}, {pipeline_mode = #tpu.pipeline_mode<synchronous>, transform_indices = @transform_5, window_bounds = array<i64: 8, 1>}, {pipeline_mode = #tpu.pipeline_mode<synchronous>, transform_indices = @transform_6, window_bounds = array<i64: 8, 72>}, {pipeline_mode = #tpu.pipeline_mode<synchronous>, transform_indices = @transform_7, window_bounds = array<i64: 8, 1>}, {}, {pipeline_mode = #tpu.pipeline_mode<synchronous>, transform_indices = @transform_9, window_bounds = array<i64: 1, 32>}, {pipeline_mode = #tpu.pipeline_mode<synchronous>, transform_indices = @transform_10, window_bounds = array<i64: 32, 32>}, {pipeline_mode = #tpu.pipeline_mode<synchronous>, transform_indices = @transform_11, window_bounds = array<i64: 1, 32>}, {pipeline_mode = #tpu.pipeline_mode<synchronous>, transform_indices = @transform_12, window_bounds = array<i64: 32, 3>}, {pipeline_mode = #tpu.pipeline_mode<synchronous>, transform_indices = @transform_13, window_bounds = array<i64: 1, 3>}, {pipeline_mode = #tpu.pipeline_mode<synchronous>, transform_indices = @transform_14, window_bounds = array<i64: 2, 3>}]} {
    tpu.enqueue_dma source(%arg9 : memref<2048x32xf32, #tpu.memory_space<any>>) target(%arg17 : memref<2048x32xf32, #tpu.memory_space<vmem>>) target_semaphore(%arg18 : memref<!tpu.dma_semaphore, #tpu.memory_space<semaphore_mem>>)
    %c0 = arith.constant 0 : index
    %c0_0 = arith.constant 0 : index
    %0 = vector.load %arg1[%c0, %c0_0] : memref<1x512xf32, #tpu.memory_space<vmem>>, vector<1x512xf32>
    %c17_i32 = arith.constant 17 : i32
    %1 = tpu.dynamic_rotate %0 by %c17_i32 dim 1 : vector<1x512xf32>, i32 -> vector<1x512xf32>
    %c0_1 = arith.constant 0 : index
    %c0_2 = arith.constant 0 : index
    %2 = vector.load %arg2[%c0_1, %c0_2] : memref<9x512xf32, #tpu.memory_space<vmem>>, vector<1x512xf32>
    %3 = arith.mulf %1, %2 : vector<1x512xf32>
    %c0_3 = arith.constant 0 : index
    %c0_4 = arith.constant 0 : index
    %4 = vector.load %arg16[%c0_3, %c0_4] : memref<72x512xf32, #tpu.memory_space<vmem>>, vector<1x512xf32>
    tpu.vector_store %arg16[%c0_3, %c0_4], %3 {strides = array<i32>} : memref<72x512xf32, #tpu.memory_space<vmem>>, vector<1x512xf32>,
    %c16_i32 = arith.constant 16 : i32
    %5 = tpu.dynamic_rotate %0 by %c16_i32 dim 1 : vector<1x512xf32>, i32 -> vector<1x512xf32>
    %c1 = arith.constant 1 : index
    %c0_5 = arith.constant 0 : index
    %6 = vector.load %arg2[%c1, %c0_5] : memref<9x512xf32, #tpu.memory_space<vmem>>, vector<1x512xf32>
    %7 = arith.mulf %5, %6 : vector<1x512xf32>
    %c1_6 = arith.constant 1 : index
    %c0_7 = arith.constant 0 : index
    %8 = vector.load %arg16[%c1_6, %c0_7] : memref<72x512xf32, #tpu.memory_space<vmem>>, vector<1x512xf32>
    tpu.vector_store %arg16[%c1_6, %c0_7], %7 {strides = array<i32>} : memref<72x512xf32, #tpu.memory_space<vmem>>, vector<1x512xf32>,
    %c15_i32 = arith.constant 15 : i32
    %9 = tpu.dynamic_rotate %0 by %c15_i32 dim 1 : vector<1x512xf32>, i32 -> vector<1x512xf32>
    %c2 = arith.constant 2 : index
    %c0_8 = arith.constant 0 : index
    %10 = vector.load %arg2[%c2, %c0_8] : memref<9x512xf32, #tpu.memory_space<vmem>>, vector<1x512xf32>
    %11 = arith.mulf %9, %10 : vector<1x512xf32>
    %c2_9 = arith.constant 2 : index
    %c0_10 = arith.constant 0 : index
    %12 = vector.load %arg16[%c2_9, %c0_10] : memref<72x512xf32, #tpu.memory_space<vmem>>, vector<1x512xf32>
    tpu.vector_store %arg16[%c2_9, %c0_10], %11 {strides = array<i32>} : memref<72x512xf32, #tpu.memory_space<vmem>>, vector<1x512xf32>,
    %c1_i32 = arith.constant 1 : i32
    %13 = tpu.dynamic_rotate %0 by %c1_i32 dim 1 : vector<1x512xf32>, i32 -> vector<1x512xf32>
    %c3 = arith.constant 3 : index
    %c0_11 = arith.constant 0 : index
    %14 = vector.load %arg2[%c3, %c0_11] : memref<9x512xf32, #tpu.memory_space<vmem>>, vector<1x512xf32>
    %15 = arith.mulf %13, %14 : vector<1x512xf32>
    %c3_12 = arith.constant 3 : index
    %c0_13 = arith.constant 0 : index
    %16 = vector.load %arg16[%c3_12, %c0_13] : memref<72x512xf32, #tpu.memory_space<vmem>>, vector<1x512xf32>
    tpu.vector_store %arg16[%c3_12, %c0_13], %15 {strides = array<i32>} : memref<72x512xf32, #tpu.memory_space<vmem>>, vector<1x512xf32>,
    %c4 = arith.constant 4 : index
    %c0_14 = arith.constant 0 : index
    %17 = vector.load %arg2[%c4, %c0_14] : memref<9x512xf32, #tpu.memory_space<vmem>>, vector<1x512xf32>
    %18 = arith.mulf %0, %17 : vector<1x512xf32>
    %c4_15 = arith.constant 4 : index
    %c0_16 = arith.constant 0 : index
    %19 = vector.load %arg16[%c4_15, %c0_16] : memref<72x512xf32, #tpu.memory_space<vmem>>, vector<1x512xf32>
    tpu.vector_store %arg16[%c4_15, %c0_16], %18 {strides = array<i32>} : memref<72x512xf32, #tpu.memory_space<vmem>>, vector<1x512xf32>,
    %c511_i32 = arith.constant 511 : i32
    %20 = tpu.dynamic_rotate %0 by %c511_i32 dim 1 : vector<1x512xf32>, i32 -> vector<1x512xf32>
    %c5 = arith.constant 5 : index
    %c0_17 = arith.constant 0 : index
    %21 = vector.load %arg2[%c5, %c0_17] : memref<9x512xf32, #tpu.memory_space<vmem>>, vector<1x512xf32>
    %22 = arith.mulf %20, %21 : vector<1x512xf32>
    %c5_18 = arith.constant 5 : index
    %c0_19 = arith.constant 0 : index
    %23 = vector.load %arg16[%c5_18, %c0_19] : memref<72x512xf32, #tpu.memory_space<vmem>>, vector<1x512xf32>
    tpu.vector_store %arg16[%c5_18, %c0_19], %22 {strides = array<i32>} : memref<72x512xf32, #tpu.memory_space<vmem>>, vector<1x512xf32>,
    %c497_i32 = arith.constant 497 : i32
    %24 = tpu.dynamic_rotate %0 by %c497_i32 dim 1 : vector<1x512xf32>, i32 -> vector<1x512xf32>
    %c6 = arith.constant 6 : index
    %c0_20 = arith.constant 0 : index
    %25 = vector.load %arg2[%c6, %c0_20] : memref<9x512xf32, #tpu.memory_space<vmem>>, vector<1x512xf32>
    %26 = arith.mulf %24, %25 : vector<1x512xf32>
    %c6_21 = arith.constant 6 : index
    %c0_22 = arith.constant 0 : index
    %27 = vector.load %arg16[%c6_21, %c0_22] : memref<72x512xf32, #tpu.memory_space<vmem>>, vector<1x512xf32>
    tpu.vector_store %arg16[%c6_21, %c0_22], %26 {strides = array<i32>} : memref<72x512xf32, #tpu.memory_space<vmem>>, vector<1x512xf32>,
    %c496_i32 = arith.constant 496 : i32
    %28 = tpu.dynamic_rotate %0 by %c496_i32 dim 1 : vector<1x512xf32>, i32 -> vector<1x512xf32>
    %c7 = arith.constant 7 : index
    %c0_23 = arith.constant 0 : index
    %29 = vector.load %arg2[%c7, %c0_23] : memref<9x512xf32, #tpu.memory_space<vmem>>, vector<1x512xf32>
    %30 = arith.mulf %28, %29 : vector<1x512xf32>
    %c7_24 = arith.constant 7 : index
    %c0_25 = arith.constant 0 : index
    %31 = vector.load %arg16[%c7_24, %c0_25] : memref<72x512xf32, #tpu.memory_space<vmem>>, vector<1x512xf32>
    tpu.vector_store %arg16[%c7_24, %c0_25], %30 {strides = array<i32>} : memref<72x512xf32, #tpu.memory_space<vmem>>, vector<1x512xf32>,
    %c495_i32 = arith.constant 495 : i32
    %32 = tpu.dynamic_rotate %0 by %c495_i32 dim 1 : vector<1x512xf32>, i32 -> vector<1x512xf32>
    %c8 = arith.constant 8 : index
    %c0_26 = arith.constant 0 : index
    %33 = vector.load %arg2[%c8, %c0_26] : memref<9x512xf32, #tpu.memory_space<vmem>>, vector<1x512xf32>
    %34 = arith.mulf %32, %33 : vector<1x512xf32>
    %c8_27 = arith.constant 8 : index
    %c0_28 = arith.constant 0 : index
    %35 = vector.load %arg16[%c8_27, %c0_28] : memref<72x512xf32, #tpu.memory_space<vmem>>, vector<1x512xf32>
    tpu.vector_store %arg16[%c8_27, %c0_28], %34 {strides = array<i32>} : memref<72x512xf32, #tpu.memory_space<vmem>>, vector<1x512xf32>,
    %c0_29 = arith.constant 0 : index
    %c0_30 = arith.constant 0 : index
    %36 = vector.load %arg3[%c0_29, %c0_30] : memref<8x9xf32, #tpu.memory_space<vmem>>, vector<8x9xf32>
    %c0_31 = arith.constant 0 : index
    %c0_32 = arith.constant 0 : index
    %37 = vector.load %arg16[%c0_31, %c0_32] : memref<72x512xf32, #tpu.memory_space<vmem>>, vector<9x512xf32>
    %cst = arith.constant dense<0.000000e+00> : vector<8x512xf32>
    %38 = tpu.matmul %36, %37, %cst {dimension_numbers = #tpu.dot_dimension_numbers<[1], [0], [0], [1], [0, 0, 1, 1], [], []>} : vector<8x9xf32>, vector<9x512xf32>, vector<8x512xf32> -> vector<8x512xf32>
    %c0_33 = arith.constant 0 : index
    %c0_34 = arith.constant 0 : index
    %39 = vector.load %arg4[%c0_33, %c0_34] : memref<8x1xf32, #tpu.memory_space<vmem>>, vector<8x1xf32>
    %40 = vector.broadcast %39 : vector<8x1xf32> to vector<8x512xf32>
    %41 = arith.addf %38, %40 : vector<8x512xf32>
    %c17_i32_35 = arith.constant 17 : i32
    %42 = tpu.dynamic_rotate %41 by %c17_i32_35 dim 1 : vector<8x512xf32>, i32 -> vector<8x512xf32>
    %c0_36 = arith.constant 0 : index
    %c0_37 = arith.constant 0 : index
    %43 = vector.load %arg2[%c0_36, %c0_37] : memref<9x512xf32, #tpu.memory_space<vmem>>, vector<1x512xf32>
    %44 = vector.broadcast %43 : vector<1x512xf32> to vector<8x512xf32>
    %45 = arith.mulf %42, %44 : vector<8x512xf32>
    %c0_38 = arith.constant 0 : index
    %c0_39 = arith.constant 0 : index
    %46 = vector.load %arg16[%c0_38, %c0_39] : memref<72x512xf32, #tpu.memory_space<vmem>>, vector<8x512xf32>
    tpu.vector_store %arg16[%c0_38, %c0_39], %45 {strides = array<i32>} : memref<72x512xf32, #tpu.memory_space<vmem>>, vector<8x512xf32>,
    %c16_i32_40 = arith.constant 16 : i32
    %47 = tpu.dynamic_rotate %41 by %c16_i32_40 dim 1 : vector<8x512xf32>, i32 -> vector<8x512xf32>
    %c1_41 = arith.constant 1 : index
    %c0_42 = arith.constant 0 : index
    %48 = vector.load %arg2[%c1_41, %c0_42] : memref<9x512xf32, #tpu.memory_space<vmem>>, vector<1x512xf32>
    %49 = vector.broadcast %48 : vector<1x512xf32> to vector<8x512xf32>
    %50 = arith.mulf %47, %49 : vector<8x512xf32>
    %c8_43 = arith.constant 8 : index
    %c0_44 = arith.constant 0 : index
    %51 = vector.load %arg16[%c8_43, %c0_44] : memref<72x512xf32, #tpu.memory_space<vmem>>, vector<8x512xf32>
    tpu.vector_store %arg16[%c8_43, %c0_44], %50 {strides = array<i32>} : memref<72x512xf32, #tpu.memory_space<vmem>>, vector<8x512xf32>,
    %c15_i32_45 = arith.constant 15 : i32
    %52 = tpu.dynamic_rotate %41 by %c15_i32_45 dim 1 : vector<8x512xf32>, i32 -> vector<8x512xf32>
    %c2_46 = arith.constant 2 : index
    %c0_47 = arith.constant 0 : index
    %53 = vector.load %arg2[%c2_46, %c0_47] : memref<9x512xf32, #tpu.memory_space<vmem>>, vector<1x512xf32>
    %54 = vector.broadcast %53 : vector<1x512xf32> to vector<8x512xf32>
    %55 = arith.mulf %52, %54 : vector<8x512xf32>
    %c16 = arith.constant 16 : index
    %c0_48 = arith.constant 0 : index
    %56 = vector.load %arg16[%c16, %c0_48] : memref<72x512xf32, #tpu.memory_space<vmem>>, vector<8x512xf32>
    tpu.vector_store %arg16[%c16, %c0_48], %55 {strides = array<i32>} : memref<72x512xf32, #tpu.memory_space<vmem>>, vector<8x512xf32>,
    %c1_i32_49 = arith.constant 1 : i32
    %57 = tpu.dynamic_rotate %41 by %c1_i32_49 dim 1 : vector<8x512xf32>, i32 -> vector<8x512xf32>
    %c3_50 = arith.constant 3 : index
    %c0_51 = arith.constant 0 : index
    %58 = vector.load %arg2[%c3_50, %c0_51] : memref<9x512xf32, #tpu.memory_space<vmem>>, vector<1x512xf32>
    %59 = vector.broadcast %58 : vector<1x512xf32> to vector<8x512xf32>
    %60 = arith.mulf %57, %59 : vector<8x512xf32>
    %c24 = arith.constant 24 : index
    %c0_52 = arith.constant 0 : index
    %61 = vector.load %arg16[%c24, %c0_52] : memref<72x512xf32, #tpu.memory_space<vmem>>, vector<8x512xf32>
    tpu.vector_store %arg16[%c24, %c0_52], %60 {strides = array<i32>} : memref<72x512xf32, #tpu.memory_space<vmem>>, vector<8x512xf32>,
    %c4_53 = arith.constant 4 : index
    %c0_54 = arith.constant 0 : index
    %62 = vector.load %arg2[%c4_53, %c0_54] : memref<9x512xf32, #tpu.memory_space<vmem>>, vector<1x512xf32>
    %63 = vector.broadcast %62 : vector<1x512xf32> to vector<8x512xf32>
    %64 = arith.mulf %41, %63 : vector<8x512xf32>
    %c32 = arith.constant 32 : index
    %c0_55 = arith.constant 0 : index
    %65 = vector.load %arg16[%c32, %c0_55] : memref<72x512xf32, #tpu.memory_space<vmem>>, vector<8x512xf32>
    tpu.vector_store %arg16[%c32, %c0_55], %64 {strides = array<i32>} : memref<72x512xf32, #tpu.memory_space<vmem>>, vector<8x512xf32>,
    %c511_i32_56 = arith.constant 511 : i32
    %66 = tpu.dynamic_rotate %41 by %c511_i32_56 dim 1 : vector<8x512xf32>, i32 -> vector<8x512xf32>
    %c5_57 = arith.constant 5 : index
    %c0_58 = arith.constant 0 : index
    %67 = vector.load %arg2[%c5_57, %c0_58] : memref<9x512xf32, #tpu.memory_space<vmem>>, vector<1x512xf32>
    %68 = vector.broadcast %67 : vector<1x512xf32> to vector<8x512xf32>
    %69 = arith.mulf %66, %68 : vector<8x512xf32>
    %c40 = arith.constant 40 : index
    %c0_59 = arith.constant 0 : index
    %70 = vector.load %arg16[%c40, %c0_59] : memref<72x512xf32, #tpu.memory_space<vmem>>, vector<8x512xf32>
    tpu.vector_store %arg16[%c40, %c0_59], %69 {strides = array<i32>} : memref<72x512xf32, #tpu.memory_space<vmem>>, vector<8x512xf32>,
    %c497_i32_60 = arith.constant 497 : i32
    %71 = tpu.dynamic_rotate %41 by %c497_i32_60 dim 1 : vector<8x512xf32>, i32 -> vector<8x512xf32>
    %c6_61 = arith.constant 6 : index
    %c0_62 = arith.constant 0 : index
    %72 = vector.load %arg2[%c6_61, %c0_62] : memref<9x512xf32, #tpu.memory_space<vmem>>, vector<1x512xf32>
    %73 = vector.broadcast %72 : vector<1x512xf32> to vector<8x512xf32>
    %74 = arith.mulf %71, %73 : vector<8x512xf32>
    %c48 = arith.constant 48 : index
    %c0_63 = arith.constant 0 : index
    %75 = vector.load %arg16[%c48, %c0_63] : memref<72x512xf32, #tpu.memory_space<vmem>>, vector<8x512xf32>
    tpu.vector_store %arg16[%c48, %c0_63], %74 {strides = array<i32>} : memref<72x512xf32, #tpu.memory_space<vmem>>, vector<8x512xf32>,
    %c496_i32_64 = arith.constant 496 : i32
    %76 = tpu.dynamic_rotate %41 by %c496_i32_64 dim 1 : vector<8x512xf32>, i32 -> vector<8x512xf32>
    %c7_65 = arith.constant 7 : index
    %c0_66 = arith.constant 0 : index
    %77 = vector.load %arg2[%c7_65, %c0_66] : memref<9x512xf32, #tpu.memory_space<vmem>>, vector<1x512xf32>
    %78 = vector.broadcast %77 : vector<1x512xf32> to vector<8x512xf32>
    %79 = arith.mulf %76, %78 : vector<8x512xf32>
    %c56 = arith.constant 56 : index
    %c0_67 = arith.constant 0 : index
    %80 = vector.load %arg16[%c56, %c0_67] : memref<72x512xf32, #tpu.memory_space<vmem>>, vector<8x512xf32>
    tpu.vector_store %arg16[%c56, %c0_67], %79 {strides = array<i32>} : memref<72x512xf32, #tpu.memory_space<vmem>>, vector<8x512xf32>,
    %c495_i32_68 = arith.constant 495 : i32
    %81 = tpu.dynamic_rotate %41 by %c495_i32_68 dim 1 : vector<8x512xf32>, i32 -> vector<8x512xf32>
    %c8_69 = arith.constant 8 : index
    %c0_70 = arith.constant 0 : index
    %82 = vector.load %arg2[%c8_69, %c0_70] : memref<9x512xf32, #tpu.memory_space<vmem>>, vector<1x512xf32>
    %83 = vector.broadcast %82 : vector<1x512xf32> to vector<8x512xf32>
    %84 = arith.mulf %81, %83 : vector<8x512xf32>
    %c64 = arith.constant 64 : index
    %c0_71 = arith.constant 0 : index
    %85 = vector.load %arg16[%c64, %c0_71] : memref<72x512xf32, #tpu.memory_space<vmem>>, vector<8x512xf32>
    tpu.vector_store %arg16[%c64, %c0_71], %84 {strides = array<i32>} : memref<72x512xf32, #tpu.memory_space<vmem>>, vector<8x512xf32>,
    %c0_72 = arith.constant 0 : index
    %c0_73 = arith.constant 0 : index
    %86 = vector.load %arg5[%c0_72, %c0_73] : memref<8x72xf32, #tpu.memory_space<vmem>>, vector<8x72xf32>
    %c0_74 = arith.constant 0 : index
    %c0_75 = arith.constant 0 : index
    %87 = vector.load %arg16[%c0_74, %c0_75] : memref<72x512xf32, #tpu.memory_space<vmem>>, vector<72x512xf32>
    %cst_76 = arith.constant dense<0.000000e+00> : vector<8x512xf32>
    %88 = tpu.matmul %86, %87, %cst_76 {dimension_numbers = #tpu.dot_dimension_numbers<[1], [0], [0], [1], [0, 0, 1, 1], [], []>} : vector<8x72xf32>, vector<72x512xf32>, vector<8x512xf32> -> vector<8x512xf32>
    %c0_77 = arith.constant 0 : index
    %c0_78 = arith.constant 0 : index
    %89 = vector.load %arg6[%c0_77, %c0_78] : memref<8x1xf32, #tpu.memory_space<vmem>>, vector<8x1xf32>
    %90 = vector.broadcast %89 : vector<8x1xf32> to vector<8x512xf32>
    %91 = arith.addf %88, %90 : vector<8x512xf32>
    %cst_79 = arith.constant 0.000000e+00 : f32
    %92 = vector.broadcast %cst_79 : f32 to vector<8x512xf32>
    %93 = arith.maximumf %91, %92 : vector<8x512xf32>
    %c17_i32_80 = arith.constant 17 : i32
    %94 = tpu.dynamic_rotate %93 by %c17_i32_80 dim 1 : vector<8x512xf32>, i32 -> vector<8x512xf32>
    %c0_81 = arith.constant 0 : index
    %c0_82 = arith.constant 0 : index
    %95 = vector.load %arg2[%c0_81, %c0_82] : memref<9x512xf32, #tpu.memory_space<vmem>>, vector<1x512xf32>
    %96 = vector.broadcast %95 : vector<1x512xf32> to vector<8x512xf32>
    %97 = arith.mulf %94, %96 : vector<8x512xf32>
    %c0_83 = arith.constant 0 : index
    %c0_84 = arith.constant 0 : index
    %98 = vector.load %arg16[%c0_83, %c0_84] : memref<72x512xf32, #tpu.memory_space<vmem>>, vector<8x512xf32>
    tpu.vector_store %arg16[%c0_83, %c0_84], %97 {strides = array<i32>} : memref<72x512xf32, #tpu.memory_space<vmem>>, vector<8x512xf32>,
    %c16_i32_85 = arith.constant 16 : i32
    %99 = tpu.dynamic_rotate %93 by %c16_i32_85 dim 1 : vector<8x512xf32>, i32 -> vector<8x512xf32>
    %c1_86 = arith.constant 1 : index
    %c0_87 = arith.constant 0 : index
    %100 = vector.load %arg2[%c1_86, %c0_87] : memref<9x512xf32, #tpu.memory_space<vmem>>, vector<1x512xf32>
    %101 = vector.broadcast %100 : vector<1x512xf32> to vector<8x512xf32>
    %102 = arith.mulf %99, %101 : vector<8x512xf32>
    %c8_88 = arith.constant 8 : index
    %c0_89 = arith.constant 0 : index
    %103 = vector.load %arg16[%c8_88, %c0_89] : memref<72x512xf32, #tpu.memory_space<vmem>>, vector<8x512xf32>
    tpu.vector_store %arg16[%c8_88, %c0_89], %102 {strides = array<i32>} : memref<72x512xf32, #tpu.memory_space<vmem>>, vector<8x512xf32>,
    %c15_i32_90 = arith.constant 15 : i32
    %104 = tpu.dynamic_rotate %93 by %c15_i32_90 dim 1 : vector<8x512xf32>, i32 -> vector<8x512xf32>
    %c2_91 = arith.constant 2 : index
    %c0_92 = arith.constant 0 : index
    %105 = vector.load %arg2[%c2_91, %c0_92] : memref<9x512xf32, #tpu.memory_space<vmem>>, vector<1x512xf32>
    %106 = vector.broadcast %105 : vector<1x512xf32> to vector<8x512xf32>
    %107 = arith.mulf %104, %106 : vector<8x512xf32>
    %c16_93 = arith.constant 16 : index
    %c0_94 = arith.constant 0 : index
    %108 = vector.load %arg16[%c16_93, %c0_94] : memref<72x512xf32, #tpu.memory_space<vmem>>, vector<8x512xf32>
    tpu.vector_store %arg16[%c16_93, %c0_94], %107 {strides = array<i32>} : memref<72x512xf32, #tpu.memory_space<vmem>>, vector<8x512xf32>,
    %c1_i32_95 = arith.constant 1 : i32
    %109 = tpu.dynamic_rotate %93 by %c1_i32_95 dim 1 : vector<8x512xf32>, i32 -> vector<8x512xf32>
    %c3_96 = arith.constant 3 : index
    %c0_97 = arith.constant 0 : index
    %110 = vector.load %arg2[%c3_96, %c0_97] : memref<9x512xf32, #tpu.memory_space<vmem>>, vector<1x512xf32>
    %111 = vector.broadcast %110 : vector<1x512xf32> to vector<8x512xf32>
    %112 = arith.mulf %109, %111 : vector<8x512xf32>
    %c24_98 = arith.constant 24 : index
    %c0_99 = arith.constant 0 : index
    %113 = vector.load %arg16[%c24_98, %c0_99] : memref<72x512xf32, #tpu.memory_space<vmem>>, vector<8x512xf32>
    tpu.vector_store %arg16[%c24_98, %c0_99], %112 {strides = array<i32>} : memref<72x512xf32, #tpu.memory_space<vmem>>, vector<8x512xf32>,
    %c4_100 = arith.constant 4 : index
    %c0_101 = arith.constant 0 : index
    %114 = vector.load %arg2[%c4_100, %c0_101] : memref<9x512xf32, #tpu.memory_space<vmem>>, vector<1x512xf32>
    %115 = vector.broadcast %114 : vector<1x512xf32> to vector<8x512xf32>
    %116 = arith.mulf %93, %115 : vector<8x512xf32>
    %c32_102 = arith.constant 32 : index
    %c0_103 = arith.constant 0 : index
    %117 = vector.load %arg16[%c32_102, %c0_103] : memref<72x512xf32, #tpu.memory_space<vmem>>, vector<8x512xf32>
    tpu.vector_store %arg16[%c32_102, %c0_103], %116 {strides = array<i32>} : memref<72x512xf32, #tpu.memory_space<vmem>>, vector<8x512xf32>,
    %c511_i32_104 = arith.constant 511 : i32
    %118 = tpu.dynamic_rotate %93 by %c511_i32_104 dim 1 : vector<8x512xf32>, i32 -> vector<8x512xf32>
    %c5_105 = arith.constant 5 : index
    %c0_106 = arith.constant 0 : index
    %119 = vector.load %arg2[%c5_105, %c0_106] : memref<9x512xf32, #tpu.memory_space<vmem>>, vector<1x512xf32>
    %120 = vector.broadcast %119 : vector<1x512xf32> to vector<8x512xf32>
    %121 = arith.mulf %118, %120 : vector<8x512xf32>
    %c40_107 = arith.constant 40 : index
    %c0_108 = arith.constant 0 : index
    %122 = vector.load %arg16[%c40_107, %c0_108] : memref<72x512xf32, #tpu.memory_space<vmem>>, vector<8x512xf32>
    tpu.vector_store %arg16[%c40_107, %c0_108], %121 {strides = array<i32>} : memref<72x512xf32, #tpu.memory_space<vmem>>, vector<8x512xf32>,
    %c497_i32_109 = arith.constant 497 : i32
    %123 = tpu.dynamic_rotate %93 by %c497_i32_109 dim 1 : vector<8x512xf32>, i32 -> vector<8x512xf32>
    %c6_110 = arith.constant 6 : index
    %c0_111 = arith.constant 0 : index
    %124 = vector.load %arg2[%c6_110, %c0_111] : memref<9x512xf32, #tpu.memory_space<vmem>>, vector<1x512xf32>
    %125 = vector.broadcast %124 : vector<1x512xf32> to vector<8x512xf32>
    %126 = arith.mulf %123, %125 : vector<8x512xf32>
    %c48_112 = arith.constant 48 : index
    %c0_113 = arith.constant 0 : index
    %127 = vector.load %arg16[%c48_112, %c0_113] : memref<72x512xf32, #tpu.memory_space<vmem>>, vector<8x512xf32>
    tpu.vector_store %arg16[%c48_112, %c0_113], %126 {strides = array<i32>} : memref<72x512xf32, #tpu.memory_space<vmem>>, vector<8x512xf32>,
    %c496_i32_114 = arith.constant 496 : i32
    %128 = tpu.dynamic_rotate %93 by %c496_i32_114 dim 1 : vector<8x512xf32>, i32 -> vector<8x512xf32>
    %c7_115 = arith.constant 7 : index
    %c0_116 = arith.constant 0 : index
    %129 = vector.load %arg2[%c7_115, %c0_116] : memref<9x512xf32, #tpu.memory_space<vmem>>, vector<1x512xf32>
    %130 = vector.broadcast %129 : vector<1x512xf32> to vector<8x512xf32>
    %131 = arith.mulf %128, %130 : vector<8x512xf32>
    %c56_117 = arith.constant 56 : index
    %c0_118 = arith.constant 0 : index
    %132 = vector.load %arg16[%c56_117, %c0_118] : memref<72x512xf32, #tpu.memory_space<vmem>>, vector<8x512xf32>
    tpu.vector_store %arg16[%c56_117, %c0_118], %131 {strides = array<i32>} : memref<72x512xf32, #tpu.memory_space<vmem>>, vector<8x512xf32>,
    %c495_i32_119 = arith.constant 495 : i32
    %133 = tpu.dynamic_rotate %93 by %c495_i32_119 dim 1 : vector<8x512xf32>, i32 -> vector<8x512xf32>
    %c8_120 = arith.constant 8 : index
    %c0_121 = arith.constant 0 : index
    %134 = vector.load %arg2[%c8_120, %c0_121] : memref<9x512xf32, #tpu.memory_space<vmem>>, vector<1x512xf32>
    %135 = vector.broadcast %134 : vector<1x512xf32> to vector<8x512xf32>
    %136 = arith.mulf %133, %135 : vector<8x512xf32>
    %c64_122 = arith.constant 64 : index
    %c0_123 = arith.constant 0 : index
    %137 = vector.load %arg16[%c64_122, %c0_123] : memref<72x512xf32, #tpu.memory_space<vmem>>, vector<8x512xf32>
    tpu.vector_store %arg16[%c64_122, %c0_123], %136 {strides = array<i32>} : memref<72x512xf32, #tpu.memory_space<vmem>>, vector<8x512xf32>,
    %c0_124 = arith.constant 0 : index
    %c0_125 = arith.constant 0 : index
    %138 = vector.load %arg7[%c0_124, %c0_125] : memref<8x72xf32, #tpu.memory_space<vmem>>, vector<8x72xf32>
    %c0_126 = arith.constant 0 : index
    %c0_127 = arith.constant 0 : index
    %139 = vector.load %arg16[%c0_126, %c0_127] : memref<72x512xf32, #tpu.memory_space<vmem>>, vector<72x512xf32>
    %cst_128 = arith.constant dense<0.000000e+00> : vector<8x512xf32>
    %140 = tpu.matmul %138, %139, %cst_128 {dimension_numbers = #tpu.dot_dimension_numbers<[1], [0], [0], [1], [0, 0, 1, 1], [], []>} : vector<8x72xf32>, vector<72x512xf32>, vector<8x512xf32> -> vector<8x512xf32>
    %c0_129 = arith.constant 0 : index
    %c0_130 = arith.constant 0 : index
    %141 = vector.load %arg8[%c0_129, %c0_130] : memref<8x1xf32, #tpu.memory_space<vmem>>, vector<8x1xf32>
    %142 = vector.broadcast %141 : vector<8x1xf32> to vector<8x512xf32>
    %143 = arith.addf %140, %142 : vector<8x512xf32>
    %cst_131 = arith.constant 0.000000e+00 : f32
    %144 = vector.broadcast %cst_131 : f32 to vector<8x512xf32>
    %145 = arith.maximumf %143, %144 : vector<8x512xf32>
    %146 = vector.extract_strided_slice %145 {offsets = [0, 0], sizes = [1, 256], strides = [1, 1]} : vector<8x512xf32> to vector<1x256xf32>
    %147 = vector.extract_strided_slice %145 {offsets = [1, 0], sizes = [1, 256], strides = [1, 1]} : vector<8x512xf32> to vector<1x256xf32>
    %148 = vector.extract_strided_slice %145 {offsets = [2, 0], sizes = [1, 256], strides = [1, 1]} : vector<8x512xf32> to vector<1x256xf32>
    %149 = vector.extract_strided_slice %145 {offsets = [3, 0], sizes = [1, 256], strides = [1, 1]} : vector<8x512xf32> to vector<1x256xf32>
    %150 = vector.extract_strided_slice %145 {offsets = [4, 0], sizes = [1, 256], strides = [1, 1]} : vector<8x512xf32> to vector<1x256xf32>
    %151 = vector.extract_strided_slice %145 {offsets = [5, 0], sizes = [1, 256], strides = [1, 1]} : vector<8x512xf32> to vector<1x256xf32>
    %152 = vector.extract_strided_slice %145 {offsets = [6, 0], sizes = [1, 256], strides = [1, 1]} : vector<8x512xf32> to vector<1x256xf32>
    %153 = vector.extract_strided_slice %145 {offsets = [7, 0], sizes = [1, 256], strides = [1, 1]} : vector<8x512xf32> to vector<1x256xf32>
    %154 = tpu.concatenate %146, %147, %148, %149, %150, %151, %152, %153 in 1 : vector<1x256xf32>, vector<1x256xf32>, vector<1x256xf32>, vector<1x256xf32>, vector<1x256xf32>, vector<1x256xf32>, vector<1x256xf32>, vector<1x256xf32> -> vector<1x2048xf32>
    %155 = vector.extract_strided_slice %145 {offsets = [0, 256], sizes = [1, 256], strides = [1, 1]} : vector<8x512xf32> to vector<1x256xf32>
    %156 = vector.extract_strided_slice %145 {offsets = [1, 256], sizes = [1, 256], strides = [1, 1]} : vector<8x512xf32> to vector<1x256xf32>
    %157 = vector.extract_strided_slice %145 {offsets = [2, 256], sizes = [1, 256], strides = [1, 1]} : vector<8x512xf32> to vector<1x256xf32>
    %158 = vector.extract_strided_slice %145 {offsets = [3, 256], sizes = [1, 256], strides = [1, 1]} : vector<8x512xf32> to vector<1x256xf32>
    %159 = vector.extract_strided_slice %145 {offsets = [4, 256], sizes = [1, 256], strides = [1, 1]} : vector<8x512xf32> to vector<1x256xf32>
    %160 = vector.extract_strided_slice %145 {offsets = [5, 256], sizes = [1, 256], strides = [1, 1]} : vector<8x512xf32> to vector<1x256xf32>
    %161 = vector.extract_strided_slice %145 {offsets = [6, 256], sizes = [1, 256], strides = [1, 1]} : vector<8x512xf32> to vector<1x256xf32>
    %162 = vector.extract_strided_slice %145 {offsets = [7, 256], sizes = [1, 256], strides = [1, 1]} : vector<8x512xf32> to vector<1x256xf32>
    %163 = tpu.concatenate %155, %156, %157, %158, %159, %160, %161, %162 in 1 : vector<1x256xf32>, vector<1x256xf32>, vector<1x256xf32>, vector<1x256xf32>, vector<1x256xf32>, vector<1x256xf32>, vector<1x256xf32>, vector<1x256xf32> -> vector<1x2048xf32>
    %164 = tpu.concatenate %154, %163 in 0 : vector<1x2048xf32>, vector<1x2048xf32> -> vector<2x2048xf32>
    tpu.wait_dma2 semaphore(%arg18 : memref<!tpu.dma_semaphore, #tpu.memory_space<semaphore_mem>>) src(%arg9 : memref<2048x32xf32, #tpu.memory_space<any>>) dst(%arg17 : memref<2048x32xf32, #tpu.memory_space<vmem>>)
    %c0_132 = arith.constant 0 : index
    %c0_133 = arith.constant 0 : index
    %165 = vector.load %arg17[%c0_132, %c0_133] : memref<2048x32xf32, #tpu.memory_space<vmem>>, vector<2048x32xf32>
    %cst_134 = arith.constant dense<0.000000e+00> : vector<2x32xf32>
    %166 = tpu.matmul %164, %165, %cst_134 {dimension_numbers = #tpu.dot_dimension_numbers<[1], [0], [0], [1], [0, 0, 1, 1], [], []>} : vector<2x2048xf32>, vector<2048x32xf32>, vector<2x32xf32> -> vector<2x32xf32>
    %c0_135 = arith.constant 0 : index
    %c0_136 = arith.constant 0 : index
    %167 = vector.load %arg10[%c0_135, %c0_136] : memref<1x32xf32, #tpu.memory_space<vmem>>, vector<1x32xf32>
    %168 = vector.broadcast %167 : vector<1x32xf32> to vector<2x32xf32>
    %169 = arith.addf %166, %168 : vector<2x32xf32>
    %cst_137 = arith.constant 0.000000e+00 : f32
    %170 = vector.broadcast %cst_137 : f32 to vector<2x32xf32>
    %171 = arith.maximumf %169, %170 : vector<2x32xf32>
    %c0_138 = arith.constant 0 : index
    %c0_139 = arith.constant 0 : index
    %172 = vector.load %arg11[%c0_138, %c0_139] : memref<32x32xf32, #tpu.memory_space<vmem>>, vector<32x32xf32>
    %cst_140 = arith.constant dense<0.000000e+00> : vector<2x32xf32>
    %173 = tpu.matmul %171, %172, %cst_140 {dimension_numbers = #tpu.dot_dimension_numbers<[1], [0], [0], [1], [0, 0, 1, 1], [], []>} : vector<2x32xf32>, vector<32x32xf32>, vector<2x32xf32> -> vector<2x32xf32>
    %c0_141 = arith.constant 0 : index
    %c0_142 = arith.constant 0 : index
    %174 = vector.load %arg12[%c0_141, %c0_142] : memref<1x32xf32, #tpu.memory_space<vmem>>, vector<1x32xf32>
    %175 = vector.broadcast %174 : vector<1x32xf32> to vector<2x32xf32>
    %176 = arith.addf %173, %175 : vector<2x32xf32>
    %cst_143 = arith.constant 0.000000e+00 : f32
    %177 = vector.broadcast %cst_143 : f32 to vector<2x32xf32>
    %178 = arith.maximumf %176, %177 : vector<2x32xf32>
    %c0_144 = arith.constant 0 : index
    %c0_145 = arith.constant 0 : index
    %179 = vector.load %arg13[%c0_144, %c0_145] : memref<32x3xf32, #tpu.memory_space<vmem>>, vector<32x3xf32>
    %cst_146 = arith.constant dense<0.000000e+00> : vector<2x3xf32>
    %180 = tpu.matmul %178, %179, %cst_146 {dimension_numbers = #tpu.dot_dimension_numbers<[1], [0], [0], [1], [0, 0, 1, 1], [], []>} : vector<2x32xf32>, vector<32x3xf32>, vector<2x3xf32> -> vector<2x3xf32>
    %c0_147 = arith.constant 0 : index
    %c0_148 = arith.constant 0 : index
    %181 = vector.load %arg14[%c0_147, %c0_148] : memref<1x3xf32, #tpu.memory_space<vmem>>, vector<1x3xf32>
    %182 = vector.broadcast %181 : vector<1x3xf32> to vector<2x3xf32>
    %183 = arith.addf %180, %182 : vector<2x3xf32>
    %cst_149 = arith.constant dense<0xFF800000> : vector<2xf32>
    %184 = vector.multi_reduction <maximumf>, %183, %cst_149 [1] : vector<2x3xf32> to vector<2xf32>
    %185 = vector.shape_cast %184 : vector<2xf32> to vector<2x1xf32>
    %186 = vector.broadcast %185 : vector<2x1xf32> to vector<2x3xf32>
    %187 = arith.subf %183, %186 : vector<2x3xf32>
    %188 = math.exp %187 : vector<2x3xf32>
    %cst_150 = arith.constant dense<0.000000e+00> : vector<2xf32>
    %189 = vector.multi_reduction <add>, %188, %cst_150 [1] : vector<2x3xf32> to vector<2xf32>
    %190 = vector.shape_cast %189 : vector<2xf32> to vector<2x1xf32>
    %191 = math.log %190 : vector<2x1xf32>
    %192 = vector.broadcast %191 : vector<2x1xf32> to vector<2x3xf32>
    %193 = arith.subf %187, %192 : vector<2x3xf32>
    %c0_151 = arith.constant 0 : index
    %c0_152 = arith.constant 0 : index
    %194 = vector.load %arg15[%c0_151, %c0_152] : memref<2x3xf32, #tpu.memory_space<vmem>>, vector<2x3xf32>
    tpu.vector_store %arg15[%c0_151, %c0_152], %193 {strides = array<i32>} : memref<2x3xf32, #tpu.memory_space<vmem>>, vector<2x3xf32>,
    return
  }
  func.func @transform_0(%arg0: i32) -> (i32, i32) {
    %c0_i32 = arith.constant 0 : i32
    %c0_i32_0 = arith.constant 0 : i32
    %c0_i32_1 = arith.constant 0 : i32
    return %c0_i32, %c0_i32_0 : i32, i32
  }
  func.func @transform_1(%arg0: i32) -> (i32, i32) {
    %c0_i32 = arith.constant 0 : i32
    %c0_i32_0 = arith.constant 0 : i32
    %c0_i32_1 = arith.constant 0 : i32
    return %c0_i32, %c0_i32_0 : i32, i32
  }
  func.func @transform_2(%arg0: i32) -> (i32, i32) {
    %c0_i32 = arith.constant 0 : i32
    %c0_i32_0 = arith.constant 0 : i32
    %c0_i32_1 = arith.constant 0 : i32
    return %c0_i32, %c0_i32_0 : i32, i32
  }
  func.func @transform_3(%arg0: i32) -> (i32, i32) {
    %c0_i32 = arith.constant 0 : i32
    %c0_i32_0 = arith.constant 0 : i32
    %c0_i32_1 = arith.constant 0 : i32
    return %c0_i32, %c0_i32_0 : i32, i32
  }
  func.func @transform_4(%arg0: i32) -> (i32, i32) {
    %c0_i32 = arith.constant 0 : i32
    %c0_i32_0 = arith.constant 0 : i32
    %c0_i32_1 = arith.constant 0 : i32
    return %c0_i32, %c0_i32_0 : i32, i32
  }
  func.func @transform_5(%arg0: i32) -> (i32, i32) {
    %c0_i32 = arith.constant 0 : i32
    %c0_i32_0 = arith.constant 0 : i32
    %c0_i32_1 = arith.constant 0 : i32
    return %c0_i32, %c0_i32_0 : i32, i32
  }
  func.func @transform_6(%arg0: i32) -> (i32, i32) {
    %c0_i32 = arith.constant 0 : i32
    %c0_i32_0 = arith.constant 0 : i32
    %c0_i32_1 = arith.constant 0 : i32
    return %c0_i32, %c0_i32_0 : i32, i32
  }
  func.func @transform_7(%arg0: i32) -> (i32, i32) {
    %c0_i32 = arith.constant 0 : i32
    %c0_i32_0 = arith.constant 0 : i32
    %c0_i32_1 = arith.constant 0 : i32
    return %c0_i32, %c0_i32_0 : i32, i32
  }
  func.func @transform_9(%arg0: i32) -> (i32, i32) {
    %c0_i32 = arith.constant 0 : i32
    %c0_i32_0 = arith.constant 0 : i32
    %c0_i32_1 = arith.constant 0 : i32
    return %c0_i32, %c0_i32_0 : i32, i32
  }
  func.func @transform_10(%arg0: i32) -> (i32, i32) {
    %c0_i32 = arith.constant 0 : i32
    %c0_i32_0 = arith.constant 0 : i32
    %c0_i32_1 = arith.constant 0 : i32
    return %c0_i32, %c0_i32_0 : i32, i32
  }
  func.func @transform_11(%arg0: i32) -> (i32, i32) {
    %c0_i32 = arith.constant 0 : i32
    %c0_i32_0 = arith.constant 0 : i32
    %c0_i32_1 = arith.constant 0 : i32
    return %c0_i32, %c0_i32_0 : i32, i32
  }
  func.func @transform_12(%arg0: i32) -> (i32, i32) {
    %c0_i32 = arith.constant 0 : i32
    %c0_i32_0 = arith.constant 0 : i32
    %c0_i32_1 = arith.constant 0 : i32
    return %c0_i32, %c0_i32_0 : i32, i32
  }
  func.func @transform_13(%arg0: i32) -> (i32, i32) {
    %c0_i32 = arith.constant 0 : i32
    %c0_i32_0 = arith.constant 0 : i32
    %c0_i32_1 = arith.constant 0 : i32
    return %c0_i32, %c0_i32_0 : i32, i32
  }
  func.func @transform_14(%arg0: i32) -> (i32, i32) {
    %c0_i32 = arith.constant 0 : i32
    %c0_i32_0 = arith.constant 0 : i32
    %c0_i32_1 = arith.constant 0 : i32
    return %c0_i32, %c0_i32_0 : i32, i32
  }
}

</mosaic_0001>

<llo_original>
// kernel: lcnn_forward.1
$region0: #{lcnn_forward.1}
  #allocation0 [shape = 'u32[]', space=smem, size = 0x4, offset = 0x4, fixed_abs, tag = 'smem constant byte address 0x4 - core index']
  #allocation1 [shape = 'u32[144,128]{1,0:T(1,128)}', space=vmem, size = 0x12000, scoped, tag = 'internal scratch']
  #allocation2 [shape = 'f32[72,512]{1,0:T(8,128)}', space=vmem, size = 0x24000, scoped, tag = 'scratch operand']
  #allocation3 [shape = 'f32[2048,32]{1,0:T(8,128)}', space=vmem, size = 0x100000, scoped, tag = 'scratch operand']
  #allocation4 [shape = 's32[1]{0}', space=sflag, size = 0x4, scoped, tag = 'scratch operand']
  #allocation7 [shape = 's32[]', space=sflag, size = 0x4, offset = 0, fixed_abs, tag = 'sflag constant byte address 0x0 - dummy sync flag']
  %s0 = inlined_call_operand.vmem [shape: f32[1,512], index: 0, kind: input, shape index: {}]
  %s1 = inlined_call_operand.vmem [shape: f32[9,512], index: 1, kind: input, shape index: {}]
  %s2 = inlined_call_operand.vmem [shape: f32[8,9], index: 2, kind: input, shape index: {}]
  %s3 = inlined_call_operand.vmem [shape: f32[8,1], index: 3, kind: input, shape index: {}]
  %s4 = inlined_call_operand.vmem [shape: f32[8,72], index: 4, kind: input, shape index: {}]
  %s5 = inlined_call_operand.vmem [shape: f32[8,1], index: 5, kind: input, shape index: {}]
  %s6 = inlined_call_operand.vmem [shape: f32[8,72], index: 6, kind: input, shape index: {}]
  %s7 = inlined_call_operand.vmem [shape: f32[8,1], index: 7, kind: input, shape index: {}]
  %s8 = inlined_call_operand.vmem [shape: f32[2048,32], index: 8, kind: input, shape index: {}]
  %s9 = inlined_call_operand.vmem [shape: f32[1,32], index: 9, kind: input, shape index: {}]
  %s10 = inlined_call_operand.vmem [shape: f32[32,32], index: 10, kind: input, shape index: {}]
  %s11 = inlined_call_operand.vmem [shape: f32[1,32], index: 11, kind: input, shape index: {}]
  %s12 = inlined_call_operand.vmem [shape: f32[32,3], index: 12, kind: input, shape index: {}]
  %s13 = inlined_call_operand.vmem [shape: f32[1,3], index: 13, kind: input, shape index: {}]
  %s14 = inlined_call_operand.hbm [shape: f32[2,3], index: 14, kind: output, shape index: {}]
  %s15 = sld [smem:[#allocation0]]
  $region96: #{lcnn_forward.1} parent=0
    _
  %s17 = ssub.s32 1, %s15
  %s18 = scalar_select 0, %s17, %s15
  $region1: #{lcnn_forward.1} parent=0
    #allocation5 [shape = 'u8[1024]{0}', space=vmem, size = 0x400, scoped, tag = 'output window, operand 0, single buffered']
    #allocation6 [shape = 's32[1]{0}', space=sflag, size = 0x4, scoped, tag = 'scoped memory for lcnn_forward.1']
    %19 = vsyncpa [#allocation6], 0
    // Predicated region
    $region2: #{lcnn_forward.1} parent=1 // pred_check
      _
    $region3: #{lcnn_forward.1} parent=1 // pred_check_branch
      %21 = sbr.rel (0) target = $region5
    $region4: #{lcnn_forward.1} parent=1 // pred_region
      _
    $region5: #{lcnn_forward.1} parent=1 // pred_fallthru
      _
    // Predicated region
    $region6: #{lcnn_forward.1} parent=1 // pred_check
      _
    $region7: #{lcnn_forward.1} parent=1 // pred_check_branch
      %23 = sbr.rel (0) target = $region9
    $region8: #{lcnn_forward.1} parent=1 // pred_region
      _
    $region9: #{lcnn_forward.1} parent=1 // pred_fallthru
      _
    // Predicated region
    $region10: #{lcnn_forward.1} parent=1 // pred_check
      _
    $region11: #{lcnn_forward.1} parent=1 // pred_check_branch
      %25 = sbr.rel (0) target = $region13
    $region12: #{lcnn_forward.1} parent=1 // pred_region
      _
    $region13: #{lcnn_forward.1} parent=1 // pred_fallthru
      _
    // Predicated region
    $region14: #{lcnn_forward.1} parent=1 // pred_check
      _
    $region15: #{lcnn_forward.1} parent=1 // pred_check_branch
      %27 = sbr.rel (0) target = $region17
    $region16: #{lcnn_forward.1} parent=1 // pred_region
      _
    $region17: #{lcnn_forward.1} parent=1 // pred_fallthru
      _
    // Predicated region
    $region18: #{lcnn_forward.1} parent=1 // pred_check
      _
    $region19: #{lcnn_forward.1} parent=1 // pred_check_branch
      %29 = sbr.rel (0) target = $region21
    $region20: #{lcnn_forward.1} parent=1 // pred_region
      _
    $region21: #{lcnn_forward.1} parent=1 // pred_fallthru
      _
    // Predicated region
    $region22: #{lcnn_forward.1} parent=1 // pred_check
      _
    $region23: #{lcnn_forward.1} parent=1 // pred_check_branch
      %31 = sbr.rel (0) target = $region25
    $region24: #{lcnn_forward.1} parent=1 // pred_region
      _
    $region25: #{lcnn_forward.1} parent=1 // pred_fallthru
      _
    // Predicated region
    $region26: #{lcnn_forward.1} parent=1 // pred_check
      _
    $region27: #{lcnn_forward.1} parent=1 // pred_check_branch
      %33 = sbr.rel (0) target = $region29
    $region28: #{lcnn_forward.1} parent=1 // pred_region
      _
    $region29: #{lcnn_forward.1} parent=1 // pred_fallthru
      _
    // Predicated region
    $region30: #{lcnn_forward.1} parent=1 // pred_check
      _
    $region31: #{lcnn_forward.1} parent=1 // pred_check_branch
      %35 = sbr.rel (0) target = $region33
    $region32: #{lcnn_forward.1} parent=1 // pred_region
      _
    $region33: #{lcnn_forward.1} parent=1 // pred_fallthru
      _
    // Predicated region
    $region34: #{lcnn_forward.1} parent=1 // pred_check
      _
    $region35: #{lcnn_forward.1} parent=1 // pred_check_branch
      %37 = sbr.rel (0) target = $region37
    $region36: #{lcnn_forward.1} parent=1 // pred_region
      _
    $region37: #{lcnn_forward.1} parent=1 // pred_fallthru
      _
    // Predicated region
    $region38: #{lcnn_forward.1} parent=1 // pred_check
      _
    $region39: #{lcnn_forward.1} parent=1 // pred_check_branch
      %39 = sbr.rel (0) target = $region41
    $region40: #{lcnn_forward.1} parent=1 // pred_region
      _
    $region41: #{lcnn_forward.1} parent=1 // pred_fallthru
      _
    // Predicated region
    $region42: #{lcnn_forward.1} parent=1 // pred_check
      _
    $region43: #{lcnn_forward.1} parent=1 // pred_check_branch
      %41 = sbr.rel (0) target = $region45
    $region44: #{lcnn_forward.1} parent=1 // pred_region
      _
    $region45: #{lcnn_forward.1} parent=1 // pred_fallthru
      _
    // Predicated region
    $region46: #{lcnn_forward.1} parent=1 // pred_check
      _
    $region47: #{lcnn_forward.1} parent=1 // pred_check_branch
      %43 = sbr.rel (0) target = $region49
    $region48: #{lcnn_forward.1} parent=1 // pred_region
      _
    $region49: #{lcnn_forward.1} parent=1 // pred_fallthru
      _
    // Predicated region
    $region50: #{lcnn_forward.1} parent=1 // pred_check
      _
    $region51: #{lcnn_forward.1} parent=1 // pred_check_branch
      %45 = sbr.rel (0) target = $region53
    $region52: #{lcnn_forward.1} parent=1 // pred_region
      _
    $region53: #{lcnn_forward.1} parent=1 // pred_fallthru
      _
    %p47 = scmp.lt.u32.totalorder 2048, 8
    %p48 = pneg %p47
    // Predicated region
    $region54: #{lcnn_forward.1} parent=1 // pred_check
      _
    $region55: #{lcnn_forward.1} parent=1 // pred_check_branch
      %50 = sbr.rel (%p47) target = $region57
    $region56: #{lcnn_forward.1} parent=1 // pred_region
      %s65 = sand.u32 2048, 7
      %p66 = scmp.eq.s32.totalorder %s65, 0
      // Predicated region
      $region69: #{lcnn_forward.1} parent=56 // pred_check
        %p67 = pneg %p66
      $region70: #{lcnn_forward.1} parent=56 // pred_check_branch
        %69 = sbr.rel (%p67) target = $region72
      $region71: #{lcnn_forward.1} parent=56 // pred_region
        loop: start=0, step=1, limit=1
        $region73: #{lcnn_forward.1} parent=71 // loop_pre_header
          _
        $region74: #{lcnn_forward.1} parent=71 // loop_header
          %s71 = sphi 0, %s75
          %p72 = scmp.ge.s32.totalorder %s71, 1
          %s76 = sphi %s8, %s8
          %s77 = sphi [#allocation3], [#allocation3]
        $region75: #{lcnn_forward.1} parent=71 // loop_header_branch
          %74 = sbr.rel (%p72) target = $region79
        $region76: #{lcnn_forward.1} parent=71 // loop_body
          %v78 = vld [vmem:[%s76] sm:$0xff]
          %79 = vst [vmem:[%s77] sm:$0xff] %v78
          %v80 = vld [vmem:[%s76 + $0x8] sm:$0xff]
          %81 = vst [vmem:[%s77 + $0x8] sm:$0xff] %v80
          %v82 = vld [vmem:[%s76 + $0x10] sm:$0xff]
          %83 = vst [vmem:[%s77 + $0x10] sm:$0xff] %v82
          %v84 = vld [vmem:[%s76 + $0x18] sm:$0xff]
          %85 = vst [vmem:[%s77 + $0x18] sm:$0xff] %v84
          %v86 = vld [vmem:[%s76 + $0x20] sm:$0xff]
          %87 = vst [vmem:[%s77 + $0x20] sm:$0xff] %v86
          %v88 = vld [vmem:[%s76 + $0x28] sm:$0xff]
          %89 = vst [vmem:[%s77 + $0x28] sm:$0xff] %v88
          %v90 = vld [vmem:[%s76 + $0x30] sm:$0xff]
          %91 = vst [vmem:[%s77 + $0x30] sm:$0xff] %v90
          %v92 = vld [vmem:[%s76 + $0x38] sm:$0xff]
          %93 = vst [vmem:[%s77 + $0x38] sm:$0xff] %v92
          %v94 = vld [vmem:[%s76 + $0x40] sm:$0xff]
          %95 = vst [vmem:[%s77 + $0x40] sm:$0xff] %v94
          %v96 = vld [vmem:[%s76 + $0x48] sm:$0xff]
          %97 = vst [vmem:[%s77 + $0x48] sm:$0xff] %v96
          %v98 = vld [vmem:[%s76 + $0x50] sm:$0xff]
          %99 = vst [vmem:[%s77 + $0x50] sm:$0xff] %v98
          %v100 = vld [vmem:[%s76 + $0x58] sm:$0xff]
          %101 = vst [vmem:[%s77 + $0x58] sm:$0xff] %v100
          %v102 = vld [vmem:[%s76 + $0x60] sm:$0xff]
          %103 = vst [vmem:[%s77 + $0x60] sm:$0xff] %v102
          %v104 = vld [vmem:[%s76 + $0x68] sm:$0xff]
          %105 = vst [vmem:[%s77 + $0x68] sm:$0xff] %v104
          %v106 = vld [vmem:[%s76 + $0x70] sm:$0xff]
          %107 = vst [vmem:[%s77 + $0x70] sm:$0xff] %v106
          %v108 = vld [vmem:[%s76 + $0x78] sm:$0xff]
          %109 = vst [vmem:[%s77 + $0x78] sm:$0xff] %v108
          %v110 = vld [vmem:[%s76 + $0x80] sm:$0xff]
          %111 = vst [vmem:[%s77 + $0x80] sm:$0xff] %v110
          %v112 = vld [vmem:[%s76 + $0x88] sm:$0xff]
          %113 = vst [vmem:[%s77 + $0x88] sm:$0xff] %v112
          %v114 = vld [vmem:[%s76 + $0x90] sm:$0xff]
          %115 = vst [vmem:[%s77 + $0x90] sm:$0xff] %v114
          %v116 = vld [vmem:[%s76 + $0x98] sm:$0xff]
          %117 = vst [vmem:[%s77 + $0x98] sm:$0xff] %v116
          %v118 = vld [vmem:[%s76 + $0xa0] sm:$0xff]
          %119 = vst [vmem:[%s77 + $0xa0] sm:$0xff] %v118
          %v120 = vld [vmem:[%s76 + $0xa8] sm:$0xff]
          %121 = vst [vmem:[%s77 + $0xa8] sm:$0xff] %v120
          %v122 = vld [vmem:[%s76 + $0xb0] sm:$0xff]
          %123 = vst [vmem:[%s77 + $0xb0] sm:$0xff] %v122
          %v124 = vld [vmem:[%s76 + $0xb8] sm:$0xff]
          %125 = vst [vmem:[%s77 + $0xb8] sm:$0xff] %v124
          %v126 = vld [vmem:[%s76 + $0xc0] sm:$0xff]
          %127 = vst [vmem:[%s77 + $0xc0] sm:$0xff] %v126
          %v128 = vld [vmem:[%s76 + $0xc8] sm:$0xff]
          %129 = vst [vmem:[%s77 + $0xc8] sm:$0xff] %v128
          %v130 = vld [vmem:[%s76 + $0xd0] sm:$0xff]
          %131 = vst [vmem:[%s77 + $0xd0] sm:$0xff] %v130
          %v132 = vld [vmem:[%s76 + $0xd8] sm:$0xff]
          %133 = vst [vmem:[%s77 + $0xd8] sm:$0xff] %v132
          %v134 = vld [vmem:[%s76 + $0xe0] sm:$0xff]
          %135 = vst [vmem:[%s77 + $0xe0] sm:$0xff] %v134
          %v136 = vld [vmem:[%s76 + $0xe8] sm:$0xff]
          %137 = vst [vmem:[%s77 + $0xe8] sm:$0xff] %v136
          %v138 = vld [vmem:[%s76 + $0xf0] sm:$0xff]
          %139 = vst [vmem:[%s77 + $0xf0] sm:$0xff] %v138
          %v140 = vld [vmem:[%s76 + $0xf8] sm:$0xff]
          %141 = vst [vmem:[%s77 + $0xf8] sm:$0xff] %v140
          %v142 = vld [vmem:[%s76 + $0x100] sm:$0xff]
          %143 = vst [vmem:[%s77 + $0x100] sm:$0xff] %v142
          %v144 = vld [vmem:[%s76 + $0x108] sm:$0xff]
          %145 = vst [vmem:[%s77 + $0x108] sm:$0xff] %v144
          %v146 = vld [vmem:[%s76 + $0x110] sm:$0xff]
          %147 = vst [vmem:[%s77 + $0x110] sm:$0xff] %v146
          %v148 = vld [vmem:[%s76 + $0x118] sm:$0xff]
          %149 = vst [vmem:[%s77 + $0x118] sm:$0xff] %v148
          %v150 = vld [vmem:[%s76 + $0x120] sm:$0xff]
          %151 = vst [vmem:[%s77 + $0x120] sm:$0xff] %v150
          %v152 = vld [vmem:[%s76 + $0x128] sm:$0xff]
          %153 = vst [vmem:[%s77 + $0x128] sm:$0xff] %v152
          %v154 = vld [vmem:[%s76 + $0x130] sm:$0xff]
          %155 = vst [vmem:[%s77 + $0x130] sm:$0xff] %v154
          %v156 = vld [vmem:[%s76 + $0x138] sm:$0xff]
          %157 = vst [vmem:[%s77 + $0x138] sm:$0xff] %v156
          %v158 = vld [vmem:[%s76 + $0x140] sm:$0xff]
          %159 = vst [vmem:[%s77 + $0x140] sm:$0xff] %v158
          %v160 = vld [vmem:[%s76 + $0x148] sm:$0xff]
          %161 = vst [vmem:[%s77 + $0x148] sm:$0xff] %v160
          %v162 = vld [vmem:[%s76 + $0x150] sm:$0xff]
          %163 = vst [vmem:[%s77 + $0x150] sm:$0xff] %v162
          %v164 = vld [vmem:[%s76 + $0x158] sm:$0xff]
          %165 = vst [vmem:[%s77 + $0x158] sm:$0xff] %v164
          %v166 = vld [vmem:[%s76 + $0x160] sm:$0xff]
          %167 = vst [vmem:[%s77 + $0x160] sm:$0xff] %v166
          %v168 = vld [vmem:[%s76 + $0x168] sm:$0xff]
          %169 = vst [vmem:[%s77 + $0x168] sm:$0xff] %v168
          %v170 = vld [vmem:[%s76 + $0x170] sm:$0xff]
          %171 = vst [vmem:[%s77 + $0x170] sm:$0xff] %v170
          %v172 = vld [vmem:[%s76 + $0x178] sm:$0xff]
          %173 = vst [vmem:[%s77 + $0x178] sm:$0xff] %v172
          %v174 = vld [vmem:[%s76 + $0x180] sm:$0xff]
          %175 = vst [vmem:[%s77 + $0x180] sm:$0xff] %v174
          %v176 = vld [vmem:[%s76 + $0x188] sm:$0xff]
          %177 = vst [vmem:[%s77 + $0x188] sm:$0xff] %v176
          %v178 = vld [vmem:[%s76 + $0x190] sm:$0xff]
          %179 = vst [vmem:[%s77 + $0x190] sm:$0xff] %v178
          %v180 = vld [vmem:[%s76 + $0x198] sm:$0xff]
          %181 = vst [vmem:[%s77 + $0x198] sm:$0xff] %v180
          %v182 = vld [vmem:[%s76 + $0x1a0] sm:$0xff]
          %183 = vst [vmem:[%s77 + $0x1a0] sm:$0xff] %v182
          %v184 = vld [vmem:[%s76 + $0x1a8] sm:$0xff]
          %185 = vst [vmem:[%s77 + $0x1a8] sm:$0xff] %v184
          %v186 = vld [vmem:[%s76 + $0x1b0] sm:$0xff]
          %187 = vst [vmem:[%s77 + $0x1b0] sm:$0xff] %v186
          %v188 = vld [vmem:[%s76 + $0x1b8] sm:$0xff]
          %189 = vst [vmem:[%s77 + $0x1b8] sm:$0xff] %v188
          %v190 = vld [vmem:[%s76 + $0x1c0] sm:$0xff]
          %191 = vst [vmem:[%s77 + $0x1c0] sm:$0xff] %v190
          %v192 = vld [vmem:[%s76 + $0x1c8] sm:$0xff]
          %193 = vst [vmem:[%s77 + $0x1c8] sm:$0xff] %v192
          %v194 = vld [vmem:[%s76 + $0x1d0] sm:$0xff]
          %195 = vst [vmem:[%s77 + $0x1d0] sm:$0xff] %v194
          %v196 = vld [vmem:[%s76 + $0x1d8] sm:$0xff]
          %197 = vst [vmem:[%s77 + $0x1d8] sm:$0xff] %v196
          %v198 = vld [vmem:[%s76 + $0x1e0] sm:$0xff]
          %199 = vst [vmem:[%s77 + $0x1e0] sm:$0xff] %v198
          %v200 = vld [vmem:[%s76 + $0x1e8] sm:$0xff]
          %201 = vst [vmem:[%s77 + $0x1e8] sm:$0xff] %v200
          %v202 = vld [vmem:[%s76 + $0x1f0] sm:$0xff]
          %203 = vst [vmem:[%s77 + $0x1f0] sm:$0xff] %v202
          %v204 = vld [vmem:[%s76 + $0x1f8] sm:$0xff]
          %205 = vst [vmem:[%s77 + $0x1f8] sm:$0xff] %v204
          %v206 = vld [vmem:[%s76 + $0x200] sm:$0xff]
          %207 = vst [vmem:[%s77 + $0x200] sm:$0xff] %v206
          %v208 = vld [vmem:[%s76 + $0x208] sm:$0xff]
          %209 = vst [vmem:[%s77 + $0x208] sm:$0xff] %v208
          %v210 = vld [vmem:[%s76 + $0x210] sm:$0xff]
          %211 = vst [vmem:[%s77 + $0x210] sm:$0xff] %v210
          %v212 = vld [vmem:[%s76 + $0x218] sm:$0xff]
          %213 = vst [vmem:[%s77 + $0x218] sm:$0xff] %v212
          %v214 = vld [vmem:[%s76 + $0x220] sm:$0xff]
          %215 = vst [vmem:[%s77 + $0x220] sm:$0xff] %v214
          %v216 = vld [vmem:[%s76 + $0x228] sm:$0xff]
          %217 = vst [vmem:[%s77 + $0x228] sm:$0xff] %v216
          %v218 = vld [vmem:[%s76 + $0x230] sm:$0xff]
          %219 = vst [vmem:[%s77 + $0x230] sm:$0xff] %v218
          %v220 = vld [vmem:[%s76 + $0x238] sm:$0xff]
          %221 = vst [vmem:[%s77 + $0x238] sm:$0xff] %v220
          %v222 = vld [vmem:[%s76 + $0x240] sm:$0xff]
          %223 = vst [vmem:[%s77 + $0x240] sm:$0xff] %v222
          %v224 = vld [vmem:[%s76 + $0x248] sm:$0xff]
          %225 = vst [vmem:[%s77 + $0x248] sm:$0xff] %v224
          %v226 = vld [vmem:[%s76 + $0x250] sm:$0xff]
          %227 = vst [vmem:[%s77 + $0x250] sm:$0xff] %v226
          %v228 = vld [vmem:[%s76 + $0x258] sm:$0xff]
          %229 = vst [vmem:[%s77 + $0x258] sm:$0xff] %v228
          %v230 = vld [vmem:[%s76 + $0x260] sm:$0xff]
          %231 = vst [vmem:[%s77 + $0x260] sm:$0xff] %v230
          %v232 = vld [vmem:[%s76 + $0x268] sm:$0xff]
          %233 = vst [vmem:[%s77 + $0x268] sm:$0xff] %v232
          %v234 = vld [vmem:[%s76 + $0x270] sm:$0xff]
          %235 = vst [vmem:[%s77 + $0x270] sm:$0xff] %v234
          %v236 = vld [vmem:[%s76 + $0x278] sm:$0xff]
          %237 = vst [vmem:[%s77 + $0x278] sm:$0xff] %v236
          %v238 = vld [vmem:[%s76 + $0x280] sm:$0xff]
          %239 = vst [vmem:[%s77 + $0x280] sm:$0xff] %v238
          %v240 = vld [vmem:[%s76 + $0x288] sm:$0xff]
          %241 = vst [vmem:[%s77 + $0x288] sm:$0xff] %v240
          %v242 = vld [vmem:[%s76 + $0x290] sm:$0xff]
          %243 = vst [vmem:[%s77 + $0x290] sm:$0xff] %v242
          %v244 = vld [vmem:[%s76 + $0x298] sm:$0xff]
          %245 = vst [vmem:[%s77 + $0x298] sm:$0xff] %v244
          %v246 = vld [vmem:[%s76 + $0x2a0] sm:$0xff]
          %247 = vst [vmem:[%s77 + $0x2a0] sm:$0xff] %v246
          %v248 = vld [vmem:[%s76 + $0x2a8] sm:$0xff]
          %249 = vst [vmem:[%s77 + $0x2a8] sm:$0xff] %v248
          %v250 = vld [vmem:[%s76 + $0x2b0] sm:$0xff]
          %251 = vst [vmem:[%s77 + $0x2b0] sm:$0xff] %v250
          %v252 = vld [vmem:[%s76 + $0x2b8] sm:$0xff]
          %253 = vst [vmem:[%s77 + $0x2b8] sm:$0xff] %v252
          %v254 = vld [vmem:[%s76 + $0x2c0] sm:$0xff]
          %255 = vst [vmem:[%s77 + $0x2c0] sm:$0xff] %v254
          %v256 = vld [vmem:[%s76 + $0x2c8] sm:$0xff]
          %257 = vst [vmem:[%s77 + $0x2c8] sm:$0xff] %v256
          %v258 = vld [vmem:[%s76 + $0x2d0] sm:$0xff]
          %259 = vst [vmem:[%s77 + $0x2d0] sm:$0xff] %v258
          %v260 = vld [vmem:[%s76 + $0x2d8] sm:$0xff]
          %261 = vst [vmem:[%s77 + $0x2d8] sm:$0xff] %v260
          %v262 = vld [vmem:[%s76 + $0x2e0] sm:$0xff]
          %263 = vst [vmem:[%s77 + $0x2e0] sm:$0xff] %v262
          %v264 = vld [vmem:[%s76 + $0x2e8] sm:$0xff]
          %265 = vst [vmem:[%s77 + $0x2e8] sm:$0xff] %v264
          %v266 = vld [vmem:[%s76 + $0x2f0] sm:$0xff]
          %267 = vst [vmem:[%s77 + $0x2f0] sm:$0xff] %v266
          %v268 = vld [vmem:[%s76 + $0x2f8] sm:$0xff]
          %269 = vst [vmem:[%s77 + $0x2f8] sm:$0xff] %v268
          %v270 = vld [vmem:[%s76 + $0x300] sm:$0xff]
          %271 = vst [vmem:[%s77 + $0x300] sm:$0xff] %v270
          %v272 = vld [vmem:[%s76 + $0x308] sm:$0xff]
          %273 = vst [vmem:[%s77 + $0x308] sm:$0xff] %v272
          %v274 = vld [vmem:[%s76 + $0x310] sm:$0xff]
          %275 = vst [vmem:[%s77 + $0x310] sm:$0xff] %v274
          %v276 = vld [vmem:[%s76 + $0x318] sm:$0xff]
          %277 = vst [vmem:[%s77 + $0x318] sm:$0xff] %v276
          %v278 = vld [vmem:[%s76 + $0x320] sm:$0xff]
          %279 = vst [vmem:[%s77 + $0x320] sm:$0xff] %v278
          %v280 = vld [vmem:[%s76 + $0x328] sm:$0xff]
          %281 = vst [vmem:[%s77 + $0x328] sm:$0xff] %v280
          %v282 = vld [vmem:[%s76 + $0x330] sm:$0xff]
          %283 = vst [vmem:[%s77 + $0x330] sm:$0xff] %v282
          %v284 = vld [vmem:[%s76 + $0x338] sm:$0xff]
          %285 = vst [vmem:[%s77 + $0x338] sm:$0xff] %v284
          %v286 = vld [vmem:[%s76 + $0x340] sm:$0xff]
          %287 = vst [vmem:[%s77 + $0x340] sm:$0xff] %v286
          %v288 = vld [vmem:[%s76 + $0x348] sm:$0xff]
          %289 = vst [vmem:[%s77 + $0x348] sm:$0xff] %v288
          %v290 = vld [vmem:[%s76 + $0x350] sm:$0xff]
          %291 = vst [vmem:[%s77 + $0x350] sm:$0xff] %v290
          %v292 = vld [vmem:[%s76 + $0x358] sm:$0xff]
          %293 = vst [vmem:[%s77 + $0x358] sm:$0xff] %v292
          %v294 = vld [vmem:[%s76 + $0x360] sm:$0xff]
          %295 = vst [vmem:[%s77 + $0x360] sm:$0xff] %v294
          %v296 = vld [vmem:[%s76 + $0x368] sm:$0xff]
          %297 = vst [vmem:[%s77 + $0x368] sm:$0xff] %v296
          %v298 = vld [vmem:[%s76 + $0x370] sm:$0xff]
          %299 = vst [vmem:[%s77 + $0x370] sm:$0xff] %v298
          %v300 = vld [vmem:[%s76 + $0x378] sm:$0xff]
          %301 = vst [vmem:[%s77 + $0x378] sm:$0xff] %v300
          %v302 = vld [vmem:[%s76 + $0x380] sm:$0xff]
          %303 = vst [vmem:[%s77 + $0x380] sm:$0xff] %v302
          %v304 = vld [vmem:[%s76 + $0x388] sm:$0xff]
          %305 = vst [vmem:[%s77 + $0x388] sm:$0xff] %v304
          %v306 = vld [vmem:[%s76 + $0x390] sm:$0xff]
          %307 = vst [vmem:[%s77 + $0x390] sm:$0xff] %v306
          %v308 = vld [vmem:[%s76 + $0x398] sm:$0xff]
          %309 = vst [vmem:[%s77 + $0x398] sm:$0xff] %v308
          %v310 = vld [vmem:[%s76 + $0x3a0] sm:$0xff]
          %311 = vst [vmem:[%s77 + $0x3a0] sm:$0xff] %v310
          %v312 = vld [vmem:[%s76 + $0x3a8] sm:$0xff]
          %313 = vst [vmem:[%s77 + $0x3a8] sm:$0xff] %v312
          %v314 = vld [vmem:[%s76 + $0x3b0] sm:$0xff]
          %315 = vst [vmem:[%s77 + $0x3b0] sm:$0xff] %v314
          %v316 = vld [vmem:[%s76 + $0x3b8] sm:$0xff]
          %317 = vst [vmem:[%s77 + $0x3b8] sm:$0xff] %v316
          %v318 = vld [vmem:[%s76 + $0x3c0] sm:$0xff]
          %319 = vst [vmem:[%s77 + $0x3c0] sm:$0xff] %v318
          %v320 = vld [vmem:[%s76 + $0x3c8] sm:$0xff]
          %321 = vst [vmem:[%s77 + $0x3c8] sm:$0xff] %v320
          %v322 = vld [vmem:[%s76 + $0x3d0] sm:$0xff]
          %323 = vst [vmem:[%s77 + $0x3d0] sm:$0xff] %v322
          %v324 = vld [vmem:[%s76 + $0x3d8] sm:$0xff]
          %325 = vst [vmem:[%s77 + $0x3d8] sm:$0xff] %v324
          %v326 = vld [vmem:[%s76 + $0x3e0] sm:$0xff]
          %327 = vst [vmem:[%s77 + $0x3e0] sm:$0xff] %v326
          %v328 = vld [vmem:[%s76 + $0x3e8] sm:$0xff]
          %329 = vst [vmem:[%s77 + $0x3e8] sm:$0xff] %v328
          %v330 = vld [vmem:[%s76 + $0x3f0] sm:$0xff]
          %331 = vst [vmem:[%s77 + $0x3f0] sm:$0xff] %v330
          %v332 = vld [vmem:[%s76 + $0x3f8] sm:$0xff]
          %333 = vst [vmem:[%s77 + $0x3f8] sm:$0xff] %v332
          %v334 = vld [vmem:[%s76 + $0x400] sm:$0xff]
          %335 = vst [vmem:[%s77 + $0x400] sm:$0xff] %v334
          %v336 = vld [vmem:[%s76 + $0x408] sm:$0xff]
          %337 = vst [vmem:[%s77 + $0x408] sm:$0xff] %v336
          %v338 = vld [vmem:[%s76 + $0x410] sm:$0xff]
          %339 = vst [vmem:[%s77 + $0x410] sm:$0xff] %v338
          %v340 = vld [vmem:[%s76 + $0x418] sm:$0xff]
          %341 = vst [vmem:[%s77 + $0x418] sm:$0xff] %v340
          %v342 = vld [vmem:[%s76 + $0x420] sm:$0xff]
          %343 = vst [vmem:[%s77 + $0x420] sm:$0xff] %v342
          %v344 = vld [vmem:[%s76 + $0x428] sm:$0xff]
          %345 = vst [vmem:[%s77 + $0x428] sm:$0xff] %v344
          %v346 = vld [vmem:[%s76 + $0x430] sm:$0xff]
          %347 = vst [vmem:[%s77 + $0x430] sm:$0xff] %v346
          %v348 = vld [vmem:[%s76 + $0x438] sm:$0xff]
          %349 = vst [vmem:[%s77 + $0x438] sm:$0xff] %v348
          %v350 = vld [vmem:[%s76 + $0x440] sm:$0xff]
          %351 = vst [vmem:[%s77 + $0x440] sm:$0xff] %v350
          %v352 = vld [vmem:[%s76 + $0x448] sm:$0xff]
          %353 = vst [vmem:[%s77 + $0x448] sm:$0xff] %v352
          %v354 = vld [vmem:[%s76 + $0x450] sm:$0xff]
          %355 = vst [vmem:[%s77 + $0x450] sm:$0xff] %v354
          %v356 = vld [vmem:[%s76 + $0x458] sm:$0xff]
          %357 = vst [vmem:[%s77 + $0x458] sm:$0xff] %v356
          %v358 = vld [vmem:[%s76 + $0x460] sm:$0xff]
          %359 = vst [vmem:[%s77 + $0x460] sm:$0xff] %v358
          %v360 = vld [vmem:[%s76 + $0x468] sm:$0xff]
          %361 = vst [vmem:[%s77 + $0x468] sm:$0xff] %v360
          %v362 = vld [vmem:[%s76 + $0x470] sm:$0xff]
          %363 = vst [vmem:[%s77 + $0x470] sm:$0xff] %v362
          %v364 = vld [vmem:[%s76 + $0x478] sm:$0xff]
          %365 = vst [vmem:[%s77 + $0x478] sm:$0xff] %v364
          %v366 = vld [vmem:[%s76 + $0x480] sm:$0xff]
          %367 = vst [vmem:[%s77 + $0x480] sm:$0xff] %v366
          %v368 = vld [vmem:[%s76 + $0x488] sm:$0xff]
          %369 = vst [vmem:[%s77 + $0x488] sm:$0xff] %v368
          %v370 = vld [vmem:[%s76 + $0x490] sm:$0xff]
          %371 = vst [vmem:[%s77 + $0x490] sm:$0xff] %v370
          %v372 = vld [vmem:[%s76 + $0x498] sm:$0xff]
          %373 = vst [vmem:[%s77 + $0x498] sm:$0xff] %v372
          %v374 = vld [vmem:[%s76 + $0x4a0] sm:$0xff]
          %375 = vst [vmem:[%s77 + $0x4a0] sm:$0xff] %v374
          %v376 = vld [vmem:[%s76 + $0x4a8] sm:$0xff]
          %377 = vst [vmem:[%s77 + $0x4a8] sm:$0xff] %v376
          %v378 = vld [vmem:[%s76 + $0x4b0] sm:$0xff]
          %379 = vst [vmem:[%s77 + $0x4b0] sm:$0xff] %v378
          %v380 = vld [vmem:[%s76 + $0x4b8] sm:$0xff]
          %381 = vst [vmem:[%s77 + $0x4b8] sm:$0xff] %v380
          %v382 = vld [vmem:[%s76 + $0x4c0] sm:$0xff]
          %383 = vst [vmem:[%s77 + $0x4c0] sm:$0xff] %v382
          %v384 = vld [vmem:[%s76 + $0x4c8] sm:$0xff]
          %385 = vst [vmem:[%s77 + $0x4c8] sm:$0xff] %v384
          %v386 = vld [vmem:[%s76 + $0x4d0] sm:$0xff]
          %387 = vst [vmem:[%s77 + $0x4d0] sm:$0xff] %v386
          %v388 = vld [vmem:[%s76 + $0x4d8] sm:$0xff]
          %389 = vst [vmem:[%s77 + $0x4d8] sm:$0xff] %v388
          %v390 = vld [vmem:[%s76 + $0x4e0] sm:$0xff]
          %391 = vst [vmem:[%s77 + $0x4e0] sm:$0xff] %v390
          %v392 = vld [vmem:[%s76 + $0x4e8] sm:$0xff]
          %393 = vst [vmem:[%s77 + $0x4e8] sm:$0xff] %v392
          %v394 = vld [vmem:[%s76 + $0x4f0] sm:$0xff]
          %395 = vst [vmem:[%s77 + $0x4f0] sm:$0xff] %v394
          %v396 = vld [vmem:[%s76 + $0x4f8] sm:$0xff]
          %397 = vst [vmem:[%s77 + $0x4f8] sm:$0xff] %v396
          %v398 = vld [vmem:[%s76 + $0x500] sm:$0xff]
          %399 = vst [vmem:[%s77 + $0x500] sm:$0xff] %v398
          %v400 = vld [vmem:[%s76 + $0x508] sm:$0xff]
          %401 = vst [vmem:[%s77 + $0x508] sm:$0xff] %v400
          %v402 = vld [vmem:[%s76 + $0x510] sm:$0xff]
          %403 = vst [vmem:[%s77 + $0x510] sm:$0xff] %v402
          %v404 = vld [vmem:[%s76 + $0x518] sm:$0xff]
          %405 = vst [vmem:[%s77 + $0x518] sm:$0xff] %v404
          %v406 = vld [vmem:[%s76 + $0x520] sm:$0xff]
          %407 = vst [vmem:[%s77 + $0x520] sm:$0xff] %v406
          %v408 = vld [vmem:[%s76 + $0x528] sm:$0xff]
          %409 = vst [vmem:[%s77 + $0x528] sm:$0xff] %v408
          %v410 = vld [vmem:[%s76 + $0x530] sm:$0xff]
          %411 = vst [vmem:[%s77 + $0x530] sm:$0xff] %v410
          %v412 = vld [vmem:[%s76 + $0x538] sm:$0xff]
          %413 = vst [vmem:[%s77 + $0x538] sm:$0xff] %v412
          %v414 = vld [vmem:[%s76 + $0x540] sm:$0xff]
          %415 = vst [vmem:[%s77 + $0x540] sm:$0xff] %v414
          %v416 = vld [vmem:[%s76 + $0x548] sm:$0xff]
          %417 = vst [vmem:[%s77 + $0x548] sm:$0xff] %v416
          %v418 = vld [vmem:[%s76 + $0x550] sm:$0xff]
          %419 = vst [vmem:[%s77 + $0x550] sm:$0xff] %v418
          %v420 = vld [vmem:[%s76 + $0x558] sm:$0xff]
          %421 = vst [vmem:[%s77 + $0x558] sm:$0xff] %v420
          %v422 = vld [vmem:[%s76 + $0x560] sm:$0xff]
          %423 = vst [vmem:[%s77 + $0x560] sm:$0xff] %v422
          %v424 = vld [vmem:[%s76 + $0x568] sm:$0xff]
          %425 = vst [vmem:[%s77 + $0x568] sm:$0xff] %v424
          %v426 = vld [vmem:[%s76 + $0x570] sm:$0xff]
          %427 = vst [vmem:[%s77 + $0x570] sm:$0xff] %v426
          %v428 = vld [vmem:[%s76 + $0x578] sm:$0xff]
          %429 = vst [vmem:[%s77 + $0x578] sm:$0xff] %v428
          %v430 = vld [vmem:[%s76 + $0x580] sm:$0xff]
          %431 = vst [vmem:[%s77 + $0x580] sm:$0xff] %v430
          %v432 = vld [vmem:[%s76 + $0x588] sm:$0xff]
          %433 = vst [vmem:[%s77 + $0x588] sm:$0xff] %v432
          %v434 = vld [vmem:[%s76 + $0x590] sm:$0xff]
          %435 = vst [vmem:[%s77 + $0x590] sm:$0xff] %v434
          %v436 = vld [vmem:[%s76 + $0x598] sm:$0xff]
          %437 = vst [vmem:[%s77 + $0x598] sm:$0xff] %v436
          %v438 = vld [vmem:[%s76 + $0x5a0] sm:$0xff]
          %439 = vst [vmem:[%s77 + $0x5a0] sm:$0xff] %v438
          %v440 = vld [vmem:[%s76 + $0x5a8] sm:$0xff]
          %441 = vst [vmem:[%s77 + $0x5a8] sm:$0xff] %v440
          %v442 = vld [vmem:[%s76 + $0x5b0] sm:$0xff]
          %443 = vst [vmem:[%s77 + $0x5b0] sm:$0xff] %v442
          %v444 = vld [vmem:[%s76 + $0x5b8] sm:$0xff]
          %445 = vst [vmem:[%s77 + $0x5b8] sm:$0xff] %v444
          %v446 = vld [vmem:[%s76 + $0x5c0] sm:$0xff]
          %447 = vst [vmem:[%s77 + $0x5c0] sm:$0xff] %v446
          %v448 = vld [vmem:[%s76 + $0x5c8] sm:$0xff]
          %449 = vst [vmem:[%s77 + $0x5c8] sm:$0xff] %v448
          %v450 = vld [vmem:[%s76 + $0x5d0] sm:$0xff]
          %451 = vst [vmem:[%s77 + $0x5d0] sm:$0xff] %v450
          %v452 = vld [vmem:[%s76 + $0x5d8] sm:$0xff]
          %453 = vst [vmem:[%s77 + $0x5d8] sm:$0xff] %v452
          %v454 = vld [vmem:[%s76 + $0x5e0] sm:$0xff]
          %455 = vst [vmem:[%s77 + $0x5e0] sm:$0xff] %v454
          %v456 = vld [vmem:[%s76 + $0x5e8] sm:$0xff]
          %457 = vst [vmem:[%s77 + $0x5e8] sm:$0xff] %v456
          %v458 = vld [vmem:[%s76 + $0x5f0] sm:$0xff]
          %459 = vst [vmem:[%s77 + $0x5f0] sm:$0xff] %v458
          %v460 = vld [vmem:[%s76 + $0x5f8] sm:$0xff]
          %461 = vst [vmem:[%s77 + $0x5f8] sm:$0xff] %v460
          %v462 = vld [vmem:[%s76 + $0x600] sm:$0xff]
          %463 = vst [vmem:[%s77 + $0x600] sm:$0xff] %v462
          %v464 = vld [vmem:[%s76 + $0x608] sm:$0xff]
          %465 = vst [vmem:[%s77 + $0x608] sm:$0xff] %v464
          %v466 = vld [vmem:[%s76 + $0x610] sm:$0xff]
          %467 = vst [vmem:[%s77 + $0x610] sm:$0xff] %v466
          %v468 = vld [vmem:[%s76 + $0x618] sm:$0xff]
          %469 = vst [vmem:[%s77 + $0x618] sm:$0xff] %v468
          %v470 = vld [vmem:[%s76 + $0x620] sm:$0xff]
          %471 = vst [vmem:[%s77 + $0x620] sm:$0xff] %v470
          %v472 = vld [vmem:[%s76 + $0x628] sm:$0xff]
          %473 = vst [vmem:[%s77 + $0x628] sm:$0xff] %v472
          %v474 = vld [vmem:[%s76 + $0x630] sm:$0xff]
          %475 = vst [vmem:[%s77 + $0x630] sm:$0xff] %v474
          %v476 = vld [vmem:[%s76 + $0x638] sm:$0xff]
          %477 = vst [vmem:[%s77 + $0x638] sm:$0xff] %v476
          %v478 = vld [vmem:[%s76 + $0x640] sm:$0xff]
          %479 = vst [vmem:[%s77 + $0x640] sm:$0xff] %v478
          %v480 = vld [vmem:[%s76 + $0x648] sm:$0xff]
          %481 = vst [vmem:[%s77 + $0x648] sm:$0xff] %v480
          %v482 = vld [vmem:[%s76 + $0x650] sm:$0xff]
          %483 = vst [vmem:[%s77 + $0x650] sm:$0xff] %v482
          %v484 = vld [vmem:[%s76 + $0x658] sm:$0xff]
          %485 = vst [vmem:[%s77 + $0x658] sm:$0xff] %v484
          %v486 = vld [vmem:[%s76 + $0x660] sm:$0xff]
          %487 = vst [vmem:[%s77 + $0x660] sm:$0xff] %v486
          %v488 = vld [vmem:[%s76 + $0x668] sm:$0xff]
          %489 = vst [vmem:[%s77 + $0x668] sm:$0xff] %v488
          %v490 = vld [vmem:[%s76 + $0x670] sm:$0xff]
          %491 = vst [vmem:[%s77 + $0x670] sm:$0xff] %v490
          %v492 = vld [vmem:[%s76 + $0x678] sm:$0xff]
          %493 = vst [vmem:[%s77 + $0x678] sm:$0xff] %v492
          %v494 = vld [vmem:[%s76 + $0x680] sm:$0xff]
          %495 = vst [vmem:[%s77 + $0x680] sm:$0xff] %v494
          %v496 = vld [vmem:[%s76 + $0x688] sm:$0xff]
          %497 = vst [vmem:[%s77 + $0x688] sm:$0xff] %v496
          %v498 = vld [vmem:[%s76 + $0x690] sm:$0xff]
          %499 = vst [vmem:[%s77 + $0x690] sm:$0xff] %v498
          %v500 = vld [vmem:[%s76 + $0x698] sm:$0xff]
          %501 = vst [vmem:[%s77 + $0x698] sm:$0xff] %v500
          %v502 = vld [vmem:[%s76 + $0x6a0] sm:$0xff]
          %503 = vst [vmem:[%s77 + $0x6a0] sm:$0xff] %v502
          %v504 = vld [vmem:[%s76 + $0x6a8] sm:$0xff]
          %505 = vst [vmem:[%s77 + $0x6a8] sm:$0xff] %v504
          %v506 = vld [vmem:[%s76 + $0x6b0] sm:$0xff]
          %507 = vst [vmem:[%s77 + $0x6b0] sm:$0xff] %v506
          %v508 = vld [vmem:[%s76 + $0x6b8] sm:$0xff]
          %509 = vst [vmem:[%s77 + $0x6b8] sm:$0xff] %v508
          %v510 = vld [vmem:[%s76 + $0x6c0] sm:$0xff]
          %511 = vst [vmem:[%s77 + $0x6c0] sm:$0xff] %v510
          %v512 = vld [vmem:[%s76 + $0x6c8] sm:$0xff]
          %513 = vst [vmem:[%s77 + $0x6c8] sm:$0xff] %v512
          %v514 = vld [vmem:[%s76 + $0x6d0] sm:$0xff]
          %515 = vst [vmem:[%s77 + $0x6d0] sm:$0xff] %v514
          %v516 = vld [vmem:[%s76 + $0x6d8] sm:$0xff]
          %517 = vst [vmem:[%s77 + $0x6d8] sm:$0xff] %v516
          %v518 = vld [vmem:[%s76 + $0x6e0] sm:$0xff]
          %519 = vst [vmem:[%s77 + $0x6e0] sm:$0xff] %v518
          %v520 = vld [vmem:[%s76 + $0x6e8] sm:$0xff]
          %521 = vst [vmem:[%s77 + $0x6e8] sm:$0xff] %v520
          %v522 = vld [vmem:[%s76 + $0x6f0] sm:$0xff]
          %523 = vst [vmem:[%s77 + $0x6f0] sm:$0xff] %v522
          %v524 = vld [vmem:[%s76 + $0x6f8] sm:$0xff]
          %525 = vst [vmem:[%s77 + $0x6f8] sm:$0xff] %v524
          %v526 = vld [vmem:[%s76 + $0x700] sm:$0xff]
          %527 = vst [vmem:[%s77 + $0x700] sm:$0xff] %v526
          %v528 = vld [vmem:[%s76 + $0x708] sm:$0xff]
          %529 = vst [vmem:[%s77 + $0x708] sm:$0xff] %v528
          %v530 = vld [vmem:[%s76 + $0x710] sm:$0xff]
          %531 = vst [vmem:[%s77 + $0x710] sm:$0xff] %v530
          %v532 = vld [vmem:[%s76 + $0x718] sm:$0xff]
          %533 = vst [vmem:[%s77 + $0x718] sm:$0xff] %v532
          %v534 = vld [vmem:[%s76 + $0x720] sm:$0xff]
          %535 = vst [vmem:[%s77 + $0x720] sm:$0xff] %v534
          %v536 = vld [vmem:[%s76 + $0x728] sm:$0xff]
          %537 = vst [vmem:[%s77 + $0x728] sm:$0xff] %v536
          %v538 = vld [vmem:[%s76 + $0x730] sm:$0xff]
          %539 = vst [vmem:[%s77 + $0x730] sm:$0xff] %v538
          %v540 = vld [vmem:[%s76 + $0x738] sm:$0xff]
          %541 = vst [vmem:[%s77 + $0x738] sm:$0xff] %v540
          %v542 = vld [vmem:[%s76 + $0x740] sm:$0xff]
          %543 = vst [vmem:[%s77 + $0x740] sm:$0xff] %v542
          %v544 = vld [vmem:[%s76 + $0x748] sm:$0xff]
          %545 = vst [vmem:[%s77 + $0x748] sm:$0xff] %v544
          %v546 = vld [vmem:[%s76 + $0x750] sm:$0xff]
          %547 = vst [vmem:[%s77 + $0x750] sm:$0xff] %v546
          %v548 = vld [vmem:[%s76 + $0x758] sm:$0xff]
          %549 = vst [vmem:[%s77 + $0x758] sm:$0xff] %v548
          %v550 = vld [vmem:[%s76 + $0x760] sm:$0xff]
          %551 = vst [vmem:[%s77 + $0x760] sm:$0xff] %v550
          %v552 = vld [vmem:[%s76 + $0x768] sm:$0xff]
          %553 = vst [vmem:[%s77 + $0x768] sm:$0xff] %v552
          %v554 = vld [vmem:[%s76 + $0x770] sm:$0xff]
          %555 = vst [vmem:[%s77 + $0x770] sm:$0xff] %v554
          %v556 = vld [vmem:[%s76 + $0x778] sm:$0xff]
          %557 = vst [vmem:[%s77 + $0x778] sm:$0xff] %v556
          %v558 = vld [vmem:[%s76 + $0x780] sm:$0xff]
          %559 = vst [vmem:[%s77 + $0x780] sm:$0xff] %v558
          %v560 = vld [vmem:[%s76 + $0x788] sm:$0xff]
          %561 = vst [vmem:[%s77 + $0x788] sm:$0xff] %v560
          %v562 = vld [vmem:[%s76 + $0x790] sm:$0xff]
          %563 = vst [vmem:[%s77 + $0x790] sm:$0xff] %v562
          %v564 = vld [vmem:[%s76 + $0x798] sm:$0xff]
          %565 = vst [vmem:[%s77 + $0x798] sm:$0xff] %v564
          %v566 = vld [vmem:[%s76 + $0x7a0] sm:$0xff]
          %567 = vst [vmem:[%s77 + $0x7a0] sm:$0xff] %v566
          %v568 = vld [vmem:[%s76 + $0x7a8] sm:$0xff]
          %569 = vst [vmem:[%s77 + $0x7a8] sm:$0xff] %v568
          %v570 = vld [vmem:[%s76 + $0x7b0] sm:$0xff]
          %571 = vst [vmem:[%s77 + $0x7b0] sm:$0xff] %v570
          %v572 = vld [vmem:[%s76 + $0x7b8] sm:$0xff]
          %573 = vst [vmem:[%s77 + $0x7b8] sm:$0xff] %v572
          %v574 = vld [vmem:[%s76 + $0x7c0] sm:$0xff]
          %575 = vst [vmem:[%s77 + $0x7c0] sm:$0xff] %v574
          %v576 = vld [vmem:[%s76 + $0x7c8] sm:$0xff]
          %577 = vst [vmem:[%s77 + $0x7c8] sm:$0xff] %v576
          %v578 = vld [vmem:[%s76 + $0x7d0] sm:$0xff]
          %579 = vst [vmem:[%s77 + $0x7d0] sm:$0xff] %v578
          %v580 = vld [vmem:[%s76 + $0x7d8] sm:$0xff]
          %581 = vst [vmem:[%s77 + $0x7d8] sm:$0xff] %v580
          %v582 = vld [vmem:[%s76 + $0x7e0] sm:$0xff]
          %583 = vst [vmem:[%s77 + $0x7e0] sm:$0xff] %v582
          %v584 = vld [vmem:[%s76 + $0x7e8] sm:$0xff]
          %585 = vst [vmem:[%s77 + $0x7e8] sm:$0xff] %v584
          %v586 = vld [vmem:[%s76 + $0x7f0] sm:$0xff]
          %587 = vst [vmem:[%s77 + $0x7f0] sm:$0xff] %v586
          %v588 = vld [vmem:[%s76 + $0x7f8] sm:$0xff]
          %589 = vst [vmem:[%s77 + $0x7f8] sm:$0xff] %v588
        $region77: #{lcnn_forward.1} parent=71 // loop_footer
          %s75 = sadd.s32 1, %s71
        $region78: #{lcnn_forward.1} parent=71 // loop_footer_branch
          %70 = sbr.rel target = $region74
        $region79: #{lcnn_forward.1} parent=71 // loop_exit
          _
      $region72: #{lcnn_forward.1} parent=56 // pred_fallthru
        _
      %p590 = pneg %p66
      // Predicated region
      $region80: #{lcnn_forward.1} parent=56 // pred_check
        _
      $region81: #{lcnn_forward.1} parent=56 // pred_check_branch
        %592 = sbr.rel (%p66) target = $region83
      $region82: #{lcnn_forward.1} parent=56 // pred_region
        %s593 = sand.u32 2048, 7
      $region83: #{lcnn_forward.1} parent=56 // pred_fallthru
        _
    $region57: #{lcnn_forward.1} parent=1 // pred_fallthru
      _
    // Predicated region
    $region58: #{lcnn_forward.1} parent=1 // pred_check
      %p51 = pneg %p47
    $region59: #{lcnn_forward.1} parent=1 // pred_check_branch
      %53 = sbr.rel (%p51) target = $region61
    $region60: #{lcnn_forward.1} parent=1 // pred_region
      %s54 = sshllo.u32 0, 2048
      loop: start=0, step=1, limit=1
      $region62: #{lcnn_forward.1} parent=60 // loop_pre_header
        _
      $region63: #{lcnn_forward.1} parent=60 // loop_header
        %s56 = sphi 0, %s60
        %p57 = scmp.ge.s32.totalorder %s56, 1
        %s61 = sphi %s8, %s8
        %s62 = sphi [#allocation3], [#allocation3]
      $region64: #{lcnn_forward.1} parent=60 // loop_header_branch
        %59 = sbr.rel (%p57) target = $region68
      $region65: #{lcnn_forward.1} parent=60 // loop_body
        %v63 = vld [vmem:[%s61] sm:%s54]
        %64 = vst [vmem:[%s62] sm:%s54] %v63
      $region66: #{lcnn_forward.1} parent=60 // loop_footer
        %s60 = sadd.s32 1, %s56
      $region67: #{lcnn_forward.1} parent=60 // loop_footer_branch
        %55 = sbr.rel target = $region63
      $region68: #{lcnn_forward.1} parent=60 // loop_exit
        _
    $region61: #{lcnn_forward.1} parent=1 // pred_fallthru
      _
    // Predicated region
    $region84: #{lcnn_forward.1} parent=1 // pred_check
      _
    $region85: #{lcnn_forward.1} parent=1 // pred_check_branch
      %596 = sbr.rel (0) target = $region87
    $region86: #{lcnn_forward.1} parent=1 // pred_region
      %597 = vsyncadd [#allocation4], 32768
    $region87: #{lcnn_forward.1} parent=1 // pred_fallthru
      _
    %v598 = vld [vmem:[%s0] sm:$0xf]
    %v600 = vlaneseq
    %v601 = vshrl.u32 %v600, 7
    %v602 = vsub.s32 0, %v601
    %v603 = vrot.slane %v598, %v602
    %v604 = vlaneseq
    %v605 = vshrl.u32 %v604, 7
    %v606 = vsub.s32 1, %v605
    %v607 = vrot.slane %v598, %v606
    %v608 = vlaneseq
    %v609 = vshrl.u32 %v608, 7
    %v610 = vsub.s32 2, %v609
    %v611 = vrot.slane %v598, %v610
    %v612 = vlaneseq
    %v613 = vshrl.u32 %v612, 7
    %v614 = vsub.s32 3, %v613
    %v615 = vrot.slane %v598, %v614
    %620 = vrot.lane.b32.xlu0 %v603, 17
    %v621 = vpop.permute.xlu0 %620
    %622 = vrot.lane.b32.xlu0 %v607, 17
    %v623 = vpop.permute.xlu0 %622
    %624 = vrot.lane.b32.xlu0 %v611, 17
    %v625 = vpop.permute.xlu0 %624
    %626 = vrot.lane.b32.xlu0 %v615, 17
    %v627 = vpop.permute.xlu0 %626
    %v628 = vlaneseq
    %v629 = vand.u32 %v628, 127
    %vm630 = vcmp.lt.s32.totalorder %v629, 17
    %v631 = vsel %vm630, %v625, %v627
    %v632 = vsel %vm630, %v623, %v625
    %v633 = vsel %vm630, %v621, %v623
    %v634 = vsel %vm630, %v627, %v621
    %v635 = vld [vmem:[%s1] ss:$8 sm:$0xf]
    %v637 = vlaneseq
    %v638 = vshrl.u32 %v637, 7
    %v639 = vsub.s32 0, %v638
    %v640 = vrot.slane %v635, %v639
    %v641 = vlaneseq
    %v642 = vshrl.u32 %v641, 7
    %v643 = vsub.s32 1, %v642
    %v644 = vrot.slane %v635, %v643
    %v645 = vlaneseq
    %v646 = vshrl.u32 %v645, 7
    %v647 = vsub.s32 2, %v646
    %v648 = vrot.slane %v635, %v647
    %v649 = vlaneseq
    %v650 = vshrl.u32 %v649, 7
    %v651 = vsub.s32 3, %v650
    %v652 = vrot.slane %v635, %v651
    %v657 = vmul.f32 %v634, %v640
    %v658 = vmul.f32 %v633, %v644
    %v659 = vmul.f32 %v632, %v648
    %v660 = vmul.f32 %v631, %v652
    %v665 = vcombine.low %v657, %v658
    %v666 = vcombine.low %v659, %v660
    %v668 = vunpack.c.l.s4 1966171168
    %v669 = vunpack.c.0.s8 %v668
    %v670 = vlaneseq
    %v671 = vshrl.u32 %v670, 7
    %v672 = vsub.s32 %v669, %v671
    %v673 = vrot.slane %v665, %v672
    %v675 = vunpack.c.l.s4 1966171168
    %v676 = vunpack.c.0.s8 %v675
    %v677 = vlaneseq
    %v678 = vshrl.u32 %v677, 7
    %v679 = vsub.s32 %v676, %v678
    %v680 = vrot.slane %v666, %v679
    %v681 = vcombine.low %v673, %v680
    %v683 = vunpack.c.l.s4 1966171168
    %v684 = vunpack.c.0.s8 %v683
    %v685 = vlaneseq
    %v686 = vshrl.u32 %v685, 7
    %v687 = vsub.s32 %v684, %v686
    %v688 = vrot.slane %v681, %v687
    %v690 = vlaneseq
    %vm691 = vcmp.ge.s32.totalorder %v690, 0
    %vm692 = vcmp.lt.s32.totalorder %v690, 512
    %vm693 = vmand %vm691, %vm692
    %694 = vst.msk [vmem:[#allocation2] ss:$8 sm:$0xf] %vm693, %v688
    %695 = vst.msk [vmem:[#allocation2] ss:$8 sm:$0x0] %vm693, %v688
    %696 = vrot.lane.b32.xlu0 %v603, 16
    %v697 = vpop.permute.xlu0 %696
    %698 = vrot.lane.b32.xlu0 %v607, 16
    %v699 = vpop.permute.xlu0 %698
    %700 = vrot.lane.b32.xlu0 %v611, 16
    %v701 = vpop.permute.xlu0 %700
    %702 = vrot.lane.b32.xlu0 %v615, 16
    %v703 = vpop.permute.xlu0 %702
    %vm704 = vcmp.lt.s32.totalorder %v629, 16
    %v705 = vsel %vm704, %v701, %v703
    %v706 = vsel %vm704, %v699, %v701
    %v707 = vsel %vm704, %v697, %v699
    %v708 = vsel %vm704, %v703, %v697
    %s709 = scalar_lea.vmem %s1, 1
    %v710 = vld [vmem:[%s709] ss:$8 sm:$0xf]
    %v712 = vlaneseq
    %v713 = vshrl.u32 %v712, 7
    %v714 = vsub.s32 0, %v713
    %v715 = vrot.slane %v710, %v714
    %v716 = vlaneseq
    %v717 = vshrl.u32 %v716, 7
    %v718 = vsub.s32 1, %v717
    %v719 = vrot.slane %v710, %v718
    %v720 = vlaneseq
    %v721 = vshrl.u32 %v720, 7
    %v722 = vsub.s32 2, %v721
    %v723 = vrot.slane %v710, %v722
    %v724 = vlaneseq
    %v725 = vshrl.u32 %v724, 7
    %v726 = vsub.s32 3, %v725
    %v727 = vrot.slane %v710, %v726
    %v732 = vmul.f32 %v708, %v715
    %v733 = vmul.f32 %v707, %v719
    %v734 = vmul.f32 %v706, %v723
    %v735 = vmul.f32 %v705, %v727
    %v740 = vcombine.low %v732, %v733
    %v741 = vcombine.low %v734, %v735
    %v743 = vunpack.c.l.s4 1966171168
    %v744 = vunpack.c.0.s8 %v743
    %v745 = vlaneseq
    %v746 = vshrl.u32 %v745, 7
    %v747 = vsub.s32 %v744, %v746
    %v748 = vrot.slane %v740, %v747
    %v750 = vunpack.c.l.s4 1966171168
    %v751 = vunpack.c.0.s8 %v750
    %v752 = vlaneseq
    %v753 = vshrl.u32 %v752, 7
    %v754 = vsub.s32 %v751, %v753
    %v755 = vrot.slane %v741, %v754
    %v756 = vcombine.low %v748, %v755
    %v758 = vunpack.c.l.s4 1966171168
    %v759 = vunpack.c.0.s8 %v758
    %v760 = vlaneseq
    %v761 = vshrl.u32 %v760, 7
    %v762 = vsub.s32 %v759, %v761
    %v763 = vrot.slane %v756, %v762
    %s765 = scalar_lea.vmem [#allocation2], 1
    %766 = vst.msk [vmem:[%s765] ss:$8 sm:$0xf] %vm693, %v763
    %767 = vst.msk [vmem:[%s765] ss:$8 sm:$0x0] %vm693, %v763
    %768 = vrot.lane.b32.xlu0 %v603, 15
    %v769 = vpop.permute.xlu0 %768
    %770 = vrot.lane.b32.xlu0 %v607, 15
    %v771 = vpop.permute.xlu0 %770
    %772 = vrot.lane.b32.xlu0 %v611, 15
    %v773 = vpop.permute.xlu0 %772
    %774 = vrot.lane.b32.xlu0 %v615, 15
    %v775 = vpop.permute.xlu0 %774
    %vm776 = vcmp.lt.s32.totalorder %v629, 15
    %v777 = vsel %vm776, %v773, %v775
    %v778 = vsel %vm776, %v771, %v773
    %v779 = vsel %vm776, %v769, %v771
    %v780 = vsel %vm776, %v775, %v769
    %s781 = scalar_lea.vmem %s1, 2
    %v782 = vld [vmem:[%s781] ss:$8 sm:$0xf]
    %v784 = vlaneseq
    %v785 = vshrl.u32 %v784, 7
    %v786 = vsub.s32 0, %v785
    %v787 = vrot.slane %v782, %v786
    %v788 = vlaneseq
    %v789 = vshrl.u32 %v788, 7
    %v790 = vsub.s32 1, %v789
    %v791 = vrot.slane %v782, %v790
    %v792 = vlaneseq
    %v793 = vshrl.u32 %v792, 7
    %v794 = vsub.s32 2, %v793
    %v795 = vrot.slane %v782, %v794
    %v796 = vlaneseq
    %v797 = vshrl.u32 %v796, 7
    %v798 = vsub.s32 3, %v797
    %v799 = vrot.slane %v782, %v798
    %v804 = vmul.f32 %v780, %v787
    %v805 = vmul.f32 %v779, %v791
    %v806 = vmul.f32 %v778, %v795
    %v807 = vmul.f32 %v777, %v799
    %v812 = vcombine.low %v804, %v805
    %v813 = vcombine.low %v806, %v807
    %v815 = vunpack.c.l.s4 1966171168
    %v816 = vunpack.c.0.s8 %v815
    %v817 = vlaneseq
    %v818 = vshrl.u32 %v817, 7
    %v819 = vsub.s32 %v816, %v818
    %v820 = vrot.slane %v812, %v819
    %v822 = vunpack.c.l.s4 1966171168
    %v823 = vunpack.c.0.s8 %v822
    %v824 = vlaneseq
    %v825 = vshrl.u32 %v824, 7
    %v826 = vsub.s32 %v823, %v825
    %v827 = vrot.slane %v813, %v826
    %v828 = vcombine.low %v820, %v827
    %v830 = vunpack.c.l.s4 1966171168
    %v831 = vunpack.c.0.s8 %v830
    %v832 = vlaneseq
    %v833 = vshrl.u32 %v832, 7
    %v834 = vsub.s32 %v831, %v833
    %v835 = vrot.slane %v828, %v834
    %s837 = scalar_lea.vmem [#allocation2], 2
    %838 = vst.msk [vmem:[%s837] ss:$8 sm:$0xf] %vm693, %v835
    %839 = vst.msk [vmem:[%s837] ss:$8 sm:$0x0] %vm693, %v835
    %840 = vrot.lane.b32.xlu0 %v603, 1
    %v841 = vpop.permute.xlu0 %840
    %842 = vrot.lane.b32.xlu0 %v607, 1
    %v843 = vpop.permute.xlu0 %842
    %844 = vrot.lane.b32.xlu0 %v611, 1
    %v845 = vpop.permute.xlu0 %844
    %846 = vrot.lane.b32.xlu0 %v615, 1
    %v847 = vpop.permute.xlu0 %846
    %vm848 = vcmp.lt.s32.totalorder %v629, 1
    %v849 = vsel %vm848, %v845, %v847
    %v850 = vsel %vm848, %v843, %v845
    %v851 = vsel %vm848, %v841, %v843
    %v852 = vsel %vm848, %v847, %v841
    %s853 = scalar_lea.vmem %s1, 3
    %v854 = vld [vmem:[%s853] ss:$8 sm:$0xf]
    %v856 = vlaneseq
    %v857 = vshrl.u32 %v856, 7
    %v858 = vsub.s32 0, %v857
    %v859 = vrot.slane %v854, %v858
    %v860 = vlaneseq
    %v861 = vshrl.u32 %v860, 7
    %v862 = vsub.s32 1, %v861
    %v863 = vrot.slane %v854, %v862
    %v864 = vlaneseq
    %v865 = vshrl.u32 %v864, 7
    %v866 = vsub.s32 2, %v865
    %v867 = vrot.slane %v854, %v866
    %v868 = vlaneseq
    %v869 = vshrl.u32 %v868, 7
    %v870 = vsub.s32 3, %v869
    %v871 = vrot.slane %v854, %v870
    %v876 = vmul.f32 %v852, %v859
    %v877 = vmul.f32 %v851, %v863
    %v878 = vmul.f32 %v850, %v867
    %v879 = vmul.f32 %v849, %v871
    %v884 = vcombine.low %v876, %v877
    %v885 = vcombine.low %v878, %v879
    %v887 = vunpack.c.l.s4 1966171168
    %v888 = vunpack.c.0.s8 %v887
    %v889 = vlaneseq
    %v890 = vshrl.u32 %v889, 7
    %v891 = vsub.s32 %v888, %v890
    %v892 = vrot.slane %v884, %v891
    %v894 = vunpack.c.l.s4 1966171168
    %v895 = vunpack.c.0.s8 %v894
    %v896 = vlaneseq
    %v897 = vshrl.u32 %v896, 7
    %v898 = vsub.s32 %v895, %v897
    %v899 = vrot.slane %v885, %v898
    %v900 = vcombine.low %v892, %v899
    %v902 = vunpack.c.l.s4 1966171168
    %v903 = vunpack.c.0.s8 %v902
    %v904 = vlaneseq
    %v905 = vshrl.u32 %v904, 7
    %v906 = vsub.s32 %v903, %v905
    %v907 = vrot.slane %v900, %v906
    %s909 = scalar_lea.vmem [#allocation2], 3
    %910 = vst.msk [vmem:[%s909] ss:$8 sm:$0xf] %vm693, %v907
    %911 = vst.msk [vmem:[%s909] ss:$8 sm:$0x0] %vm693, %v907
    %s912 = scalar_lea.vmem %s1, 4
    %v913 = vld [vmem:[%s912] ss:$8 sm:$0xf]
    %v914 = vmul.f32 %v598, %v913
    %s915 = scalar_lea.vmem [#allocation2], 4
    %916 = vst.msk [vmem:[%s915] ss:$8 sm:$0xf] %vm693, %v914
    %917 = vst.msk [vmem:[%s915] ss:$8 sm:$0x0] %vm693, %v914
    %918 = vrot.lane.b32.xlu0 %v603, 127
    %v919 = vpop.permute.xlu0 %918
    %920 = vrot.lane.b32.xlu0 %v607, 127
    %v921 = vpop.permute.xlu0 %920
    %922 = vrot.lane.b32.xlu0 %v611, 127
    %v923 = vpop.permute.xlu0 %922
    %924 = vrot.lane.b32.xlu0 %v615, 127
    %v925 = vpop.permute.xlu0 %924
    %vm926 = vcmp.lt.s32.totalorder %v629, 127
    %v927 = vsel %vm926, %v923, %v925
    %v928 = vsel %vm926, %v921, %v923
    %v929 = vsel %vm926, %v919, %v921
    %v930 = vsel %vm926, %v925, %v919
    %s931 = scalar_lea.vmem %s1, 5
    %v932 = vld [vmem:[%s931] ss:$8 sm:$0xf]
    %v934 = vlaneseq
    %v935 = vshrl.u32 %v934, 7
    %v936 = vsub.s32 0, %v935
    %v937 = vrot.slane %v932, %v936
    %v938 = vlaneseq
    %v939 = vshrl.u32 %v938, 7
    %v940 = vsub.s32 1, %v939
    %v941 = vrot.slane %v932, %v940
    %v942 = vlaneseq
    %v943 = vshrl.u32 %v942, 7
    %v944 = vsub.s32 2, %v943
    %v945 = vrot.slane %v932, %v944
    %v946 = vlaneseq
    %v947 = vshrl.u32 %v946, 7
    %v948 = vsub.s32 3, %v947
    %v949 = vrot.slane %v932, %v948
    %v954 = vmul.f32 %v929, %v937
    %v955 = vmul.f32 %v928, %v941
    %v956 = vmul.f32 %v927, %v945
    %v957 = vmul.f32 %v930, %v949
    %v962 = vcombine.low %v954, %v955
    %v963 = vcombine.low %v956, %v957
    %v965 = vunpack.c.l.s4 1966171168
    %v966 = vunpack.c.0.s8 %v965
    %v967 = vlaneseq
    %v968 = vshrl.u32 %v967, 7
    %v969 = vsub.s32 %v966, %v968
    %v970 = vrot.slane %v962, %v969
    %v972 = vunpack.c.l.s4 1966171168
    %v973 = vunpack.c.0.s8 %v972
    %v974 = vlaneseq
    %v975 = vshrl.u32 %v974, 7
    %v976 = vsub.s32 %v973, %v975
    %v977 = vrot.slane %v963, %v976
    %v978 = vcombine.low %v970, %v977
    %v980 = vunpack.c.l.s4 1966171168
    %v981 = vunpack.c.0.s8 %v980
    %v982 = vlaneseq
    %v983 = vshrl.u32 %v982, 7
    %v984 = vsub.s32 %v981, %v983
    %v985 = vrot.slane %v978, %v984
    %s987 = scalar_lea.vmem [#allocation2], 5
    %988 = vst.msk [vmem:[%s987] ss:$8 sm:$0xf] %vm693, %v985
    %989 = vst.msk [vmem:[%s987] ss:$8 sm:$0x0] %vm693, %v985
    %990 = vrot.lane.b32.xlu0 %v603, 113
    %v991 = vpop.permute.xlu0 %990
    %992 = vrot.lane.b32.xlu0 %v607, 113
    %v993 = vpop.permute.xlu0 %992
    %994 = vrot.lane.b32.xlu0 %v611, 113
    %v995 = vpop.permute.xlu0 %994
    %996 = vrot.lane.b32.xlu0 %v615, 113
    %v997 = vpop.permute.xlu0 %996
    %vm998 = vcmp.lt.s32.totalorder %v629, 113
    %v999 = vsel %vm998, %v995, %v997
    %v1000 = vsel %vm998, %v993, %v995
    %v1001 = vsel %vm998, %v991, %v993
    %v1002 = vsel %vm998, %v997, %v991
    %s1003 = scalar_lea.vmem %s1, 6
    %v1004 = vld [vmem:[%s1003] ss:$8 sm:$0xf]
    %v1006 = vlaneseq
    %v1007 = vshrl.u32 %v1006, 7
    %v1008 = vsub.s32 0, %v1007
    %v1009 = vrot.slane %v1004, %v1008
    %v1010 = vlaneseq
    %v1011 = vshrl.u32 %v1010, 7
    %v1012 = vsub.s32 1, %v1011
    %v1013 = vrot.slane %v1004, %v1012
    %v1014 = vlaneseq
    %v1015 = vshrl.u32 %v1014, 7
    %v1016 = vsub.s32 2, %v1015
    %v1017 = vrot.slane %v1004, %v1016
    %v1018 = vlaneseq
    %v1019 = vshrl.u32 %v1018, 7
    %v1020 = vsub.s32 3, %v1019
    %v1021 = vrot.slane %v1004, %v1020
    %v1026 = vmul.f32 %v1001, %v1009
    %v1027 = vmul.f32 %v1000, %v1013
    %v1028 = vmul.f32 %v999, %v1017
    %v1029 = vmul.f32 %v1002, %v1021
    %v1034 = vcombine.low %v1026, %v1027
    %v1035 = vcombine.low %v1028, %v1029
    %v1037 = vunpack.c.l.s4 1966171168
    %v1038 = vunpack.c.0.s8 %v1037
    %v1039 = vlaneseq
    %v1040 = vshrl.u32 %v1039, 7
    %v1041 = vsub.s32 %v1038, %v1040
    %v1042 = vrot.slane %v1034, %v1041
    %v1044 = vunpack.c.l.s4 1966171168
    %v1045 = vunpack.c.0.s8 %v1044
    %v1046 = vlaneseq
    %v1047 = vshrl.u32 %v1046, 7
    %v1048 = vsub.s32 %v1045, %v1047
    %v1049 = vrot.slane %v1035, %v1048
    %v1050 = vcombine.low %v1042, %v1049
    %v1052 = vunpack.c.l.s4 1966171168
    %v1053 = vunpack.c.0.s8 %v1052
    %v1054 = vlaneseq
    %v1055 = vshrl.u32 %v1054, 7
    %v1056 = vsub.s32 %v1053, %v1055
    %v1057 = vrot.slane %v1050, %v1056
    %s1059 = scalar_lea.vmem [#allocation2], 6
    %1060 = vst.msk [vmem:[%s1059] ss:$8 sm:$0xf] %vm693, %v1057
    %1061 = vst.msk [vmem:[%s1059] ss:$8 sm:$0x0] %vm693, %v1057
    %1062 = vrot.lane.b32.xlu0 %v603, 112
    %v1063 = vpop.permute.xlu0 %1062
    %1064 = vrot.lane.b32.xlu0 %v607, 112
    %v1065 = vpop.permute.xlu0 %1064
    %1066 = vrot.lane.b32.xlu0 %v611, 112
    %v1067 = vpop.permute.xlu0 %1066
    %1068 = vrot.lane.b32.xlu0 %v615, 112
    %v1069 = vpop.permute.xlu0 %1068
    %vm1070 = vcmp.lt.s32.totalorder %v629, 112
    %v1071 = vsel %vm1070, %v1067, %v1069
    %v1072 = vsel %vm1070, %v1065, %v1067
    %v1073 = vsel %vm1070, %v1063, %v1065
    %v1074 = vsel %vm1070, %v1069, %v1063
    %s1075 = scalar_lea.vmem %s1, 7
    %v1076 = vld [vmem:[%s1075] ss:$8 sm:$0xf]
    %v1078 = vlaneseq
    %v1079 = vshrl.u32 %v1078, 7
    %v1080 = vsub.s32 0, %v1079
    %v1081 = vrot.slane %v1076, %v1080
    %v1082 = vlaneseq
    %v1083 = vshrl.u32 %v1082, 7
    %v1084 = vsub.s32 1, %v1083
    %v1085 = vrot.slane %v1076, %v1084
    %v1086 = vlaneseq
    %v1087 = vshrl.u32 %v1086, 7
    %v1088 = vsub.s32 2, %v1087
    %v1089 = vrot.slane %v1076, %v1088
    %v1090 = vlaneseq
    %v1091 = vshrl.u32 %v1090, 7
    %v1092 = vsub.s32 3, %v1091
    %v1093 = vrot.slane %v1076, %v1092
    %v1098 = vmul.f32 %v1073, %v1081
    %v1099 = vmul.f32 %v1072, %v1085
    %v1100 = vmul.f32 %v1071, %v1089
    %v1101 = vmul.f32 %v1074, %v1093
    %v1106 = vcombine.low %v1098, %v1099
    %v1107 = vcombine.low %v1100, %v1101
    %v1109 = vunpack.c.l.s4 1966171168
    %v1110 = vunpack.c.0.s8 %v1109
    %v1111 = vlaneseq
    %v1112 = vshrl.u32 %v1111, 7
    %v1113 = vsub.s32 %v1110, %v1112
    %v1114 = vrot.slane %v1106, %v1113
    %v1116 = vunpack.c.l.s4 1966171168
    %v1117 = vunpack.c.0.s8 %v1116
    %v1118 = vlaneseq
    %v1119 = vshrl.u32 %v1118, 7
    %v1120 = vsub.s32 %v1117, %v1119
    %v1121 = vrot.slane %v1107, %v1120
    %v1122 = vcombine.low %v1114, %v1121
    %v1124 = vunpack.c.l.s4 1966171168
    %v1125 = vunpack.c.0.s8 %v1124
    %v1126 = vlaneseq
    %v1127 = vshrl.u32 %v1126, 7
    %v1128 = vsub.s32 %v1125, %v1127
    %v1129 = vrot.slane %v1122, %v1128
    %s1131 = scalar_lea.vmem [#allocation2], 7
    %1132 = vst.msk [vmem:[%s1131] ss:$8 sm:$0xf] %vm693, %v1129
    %1133 = vst.msk [vmem:[%s1131] ss:$8 sm:$0x0] %vm693, %v1129
    %1134 = vrot.lane.b32.xlu0 %v603, 111
    %v1135 = vpop.permute.xlu0 %1134
    %1136 = vrot.lane.b32.xlu0 %v607, 111
    %v1137 = vpop.permute.xlu0 %1136
    %1138 = vrot.lane.b32.xlu0 %v611, 111
    %v1139 = vpop.permute.xlu0 %1138
    %1140 = vrot.lane.b32.xlu0 %v615, 111
    %v1141 = vpop.permute.xlu0 %1140
    %vm1142 = vcmp.lt.s32.totalorder %v629, 111
    %v1143 = vsel %vm1142, %v1139, %v1141
    %v1144 = vsel %vm1142, %v1137, %v1139
    %v1145 = vsel %vm1142, %v1135, %v1137
    %v1146 = vsel %vm1142, %v1141, %v1135
    %s1147 = scalar_lea.vmem %s1, 32
    %v1148 = vld [vmem:[%s1147] ss:$8 sm:$0xf]
    %v1150 = vlaneseq
    %v1151 = vshrl.u32 %v1150, 7
    %v1152 = vsub.s32 0, %v1151
    %v1153 = vrot.slane %v1148, %v1152
    %v1154 = vlaneseq
    %v1155 = vshrl.u32 %v1154, 7
    %v1156 = vsub.s32 1, %v1155
    %v1157 = vrot.slane %v1148, %v1156
    %v1158 = vlaneseq
    %v1159 = vshrl.u32 %v1158, 7
    %v1160 = vsub.s32 2, %v1159
    %v1161 = vrot.slane %v1148, %v1160
    %v1162 = vlaneseq
    %v1163 = vshrl.u32 %v1162, 7
    %v1164 = vsub.s32 3, %v1163
    %v1165 = vrot.slane %v1148, %v1164
    %v1170 = vmul.f32 %v1145, %v1153
    %v1171 = vmul.f32 %v1144, %v1157
    %v1172 = vmul.f32 %v1143, %v1161
    %v1173 = vmul.f32 %v1146, %v1165
    %v1178 = vcombine.low %v1170, %v1171
    %v1179 = vcombine.low %v1172, %v1173
    %v1181 = vunpack.c.l.s4 1966171168
    %v1182 = vunpack.c.0.s8 %v1181
    %v1183 = vlaneseq
    %v1184 = vshrl.u32 %v1183, 7
    %v1185 = vsub.s32 %v1182, %v1184
    %v1186 = vrot.slane %v1178, %v1185
    %v1188 = vunpack.c.l.s4 1966171168
    %v1189 = vunpack.c.0.s8 %v1188
    %v1190 = vlaneseq
    %v1191 = vshrl.u32 %v1190, 7
    %v1192 = vsub.s32 %v1189, %v1191
    %v1193 = vrot.slane %v1179, %v1192
    %v1194 = vcombine.low %v1186, %v1193
    %v1196 = vunpack.c.l.s4 1966171168
    %v1197 = vunpack.c.0.s8 %v1196
    %v1198 = vlaneseq
    %v1199 = vshrl.u32 %v1198, 7
    %v1200 = vsub.s32 %v1197, %v1199
    %v1201 = vrot.slane %v1194, %v1200
    %s1203 = scalar_lea.vmem [#allocation2], 32
    %1204 = vst.msk [vmem:[%s1203] ss:$8 sm:$0xf] %vm693, %v1201
    %1205 = vst.msk [vmem:[%s1203] ss:$8 sm:$0x0] %vm693, %v1201
    %v1206 = vld [vmem:[%s2] sm:$0xff]
    %v1207 = vld [vmem:[#allocation2] sm:$0xff]
    %v1208 = vld [vmem:[#allocation2 + $0x8] sm:$0xff]
    %v1209 = vld [vmem:[#allocation2 + $0x10] sm:$0xff]
    %v1210 = vld [vmem:[#allocation2 + $0x18] sm:$0xff]
    %v1211 = vld [vmem:[#allocation2 + $0x20] sm:$0x1]
    %v1212 = vld [vmem:[#allocation2 + $0x28] sm:$0x1]
    %v1213 = vld [vmem:[#allocation2 + $0x30] sm:$0x1]
    %v1214 = vld [vmem:[#allocation2 + $0x38] sm:$0x1]
    %v1215 = vld [vmem:[%s3] sm:$0xff]
    %1217 = vset.pattern.permute.xlu0 0
    %1218 = vperm.xlu0 %1217, %v1215
    %v1219 = vpop.permute.xlu0 %1218
    %vm1221 = vcmask 72704
    %v1223 = vsel %vm1221, %v1206, 0
    %vm1225 = vcmask 1040384
    %v1227 = vsel %vm1225, %v1211, 0
    %v1230 = vsel %vm1225, %v1212, 0
    %v1233 = vsel %vm1225, %v1213, 0
    %v1236 = vsel %vm1225, %v1214, 0
    %1238 = vmatprep.subr.mxu0 %v1208
    %1239 = vmatpush1.msra.mxu0 %v1207
    %1240 = vmatprep.subr.mxu0 %v1230
    %1241 = vmatpush1.msra.mxu0 %v1227
    %1242 = vmatprep.subr.mxu0 0.0
    %1243 = vmatpush1.msra.mxu0 0.0
    %1244 = vmatprep.subr.mxu0 0.0
    %1245 = vmatpush1.msra.mxu0 0.0
    %1246 = vmatprep.subr.mxu0 0.0
    %1247 = vmatpush1.msra.mxu0 0.0
    %1248 = vmatprep.subr.mxu0 0.0
    %1249 = vmatpush1.msra.mxu0 0.0
    %1250 = vmatprep.subr.mxu0 0.0
    %1251 = vmatpush1.msra.mxu0 0.0
    %1252 = vmatprep.subr.mxu0 0.0
    %1253 = vmatpush1.msra.mxu0 0.0
    %1254 = vmatprep.subr.mxu0 0.0
    %1255 = vmatpush1.msra.mxu0 0.0
    %1256 = vmatprep.subr.mxu0 0.0
    %1257 = vmatpush1.msra.mxu0 0.0
    %1258 = vmatprep.subr.mxu0 0.0
    %1259 = vmatpush1.msra.mxu0 0.0
    %1260 = vmatprep.subr.mxu0 0.0
    %1261 = vmatpush1.msra.mxu0 0.0
    %1262 = vmatprep.subr.mxu0 0.0
    %1263 = vmatpush1.msra.mxu0 0.0
    %1264 = vmatprep.subr.mxu0 0.0
    %1265 = vmatpush1.msra.mxu0 0.0
    %1266 = vmatprep.subr.mxu0 0.0
    %1267 = vmatpush1.msra.mxu0 0.0
    %1268 = vmatprep.subr.mxu0 0.0
    %1269 = vmatpush1.msra.mxu0 0.0
    %1270 = vmatprep.subr.mxu0 0.0
    %1271 = vmatpush1.msra.mxu0 0.0
    %1272 = vmatprep.subr.mxu0 0.0
    %1273 = vmatpush1.msra.mxu0 0.0
    %1274 = vmatprep.subr.mxu0 0.0
    %1275 = vmatpush1.msra.mxu0 0.0
    %1276 = vmatprep.subr.mxu0 0.0
    %1277 = vmatpush1.msra.mxu0 0.0
    %1278 = vmatprep.subr.mxu0 0.0
    %1279 = vmatpush1.msra.mxu0 0.0
    %1280 = vmatprep.subr.mxu0 0.0
    %1281 = vmatpush1.msra.mxu0 0.0
    %1282 = vmatprep.subr.mxu0 0.0
    %1283 = vmatpush1.msra.mxu0 0.0
    %1284 = vmatprep.subr.mxu0 0.0
    %1285 = vmatpush1.msra.mxu0 0.0
    %1286 = vmatprep.subr.mxu0 0.0
    %1287 = vmatpush1.msra.mxu0 0.0
    %1288 = vmatprep.subr.mxu0 0.0
    %1289 = vmatpush1.msra.mxu0 0.0
    %1290 = vmatprep.subr.mxu0 0.0
    %1291 = vmatpush1.msra.mxu0 0.0
    %1292 = vmatprep.subr.mxu0 0.0
    %1293 = vmatpush1.msra.mxu0 0.0
    %1294 = vmatprep.subr.mxu0 0.0
    %1295 = vmatpush1.msra.mxu0 0.0
    %1296 = vmatprep.subr.mxu0 0.0
    %1297 = vmatpush1.msra.mxu0 0.0
    %1298 = vmatprep.subr.mxu0 0.0
    %1299 = vmatpush1.msra.mxu0 0.0
    %1300 = vmatprep.subr.mxu0 0.0
    %1301 = vmatpush1.msra.mxu0 0.0
    %1302 = vmatprep.mubr.f32.mxu0 0.0
    %1303 = vmatmul.mubr.f32.gmra.mrb[0].mxu0 %v1223
    %v1304 = vpop.f32.mrb[0].mxu0
    %v1305 = vadd.f32 %v1219, %v1304
    %v1306 = vpop.f32.mrb[0].mxu0
    %v1307 = vadd.f32 %v1219, %v1306
    %1308 = vdwg.mxu0
    %1309 = vmatprep.subr.mxu0 %v1210
    %1310 = vmatpush1.msra.mxu0 %v1209
    %1311 = vmatprep.subr.mxu0 %v1236
    %1312 = vmatpush1.msra.mxu0 %v1233
    %1313 = vmatprep.subr.mxu0 0.0
    %1314 = vmatpush1.msra.mxu0 0.0
    %1315 = vmatprep.subr.mxu0 0.0
    %1316 = vmatpush1.msra.mxu0 0.0
    %1317 = vmatprep.subr.mxu0 0.0
    %1318 = vmatpush1.msra.mxu0 0.0
    %1319 = vmatprep.subr.mxu0 0.0
    %1320 = vmatpush1.msra.mxu0 0.0
    %1321 = vmatprep.subr.mxu0 0.0
    %1322 = vmatpush1.msra.mxu0 0.0
    %1323 = vmatprep.subr.mxu0 0.0
    %1324 = vmatpush1.msra.mxu0 0.0
    %1325 = vmatprep.subr.mxu0 0.0
    %1326 = vmatpush1.msra.mxu0 0.0
    %1327 = vmatprep.subr.mxu0 0.0
    %1328 = vmatpush1.msra.mxu0 0.0
    %1329 = vmatprep.subr.mxu0 0.0
    %1330 = vmatpush1.msra.mxu0 0.0
    %1331 = vmatprep.subr.mxu0 0.0
    %1332 = vmatpush1.msra.mxu0 0.0
    %1333 = vmatprep.subr.mxu0 0.0
    %1334 = vmatpush1.msra.mxu0 0.0
    %1335 = vmatprep.subr.mxu0 0.0
    %1336 = vmatpush1.msra.mxu0 0.0
    %1337 = vmatprep.subr.mxu0 0.0
    %1338 = vmatpush1.msra.mxu0 0.0
    %1339 = vmatprep.subr.mxu0 0.0
    %1340 = vmatpush1.msra.mxu0 0.0
    %1341 = vmatprep.subr.mxu0 0.0
    %1342 = vmatpush1.msra.mxu0 0.0
    %1343 = vmatprep.subr.mxu0 0.0
    %1344 = vmatpush1.msra.mxu0 0.0
    %1345 = vmatprep.subr.mxu0 0.0
    %1346 = vmatpush1.msra.mxu0 0.0
    %1347 = vmatprep.subr.mxu0 0.0
    %1348 = vmatpush1.msra.mxu0 0.0
    %1349 = vmatprep.subr.mxu0 0.0
    %1350 = vmatpush1.msra.mxu0 0.0
    %1351 = vmatprep.subr.mxu0 0.0
    %1352 = vmatpush1.msra.mxu0 0.0
    %1353 = vmatprep.subr.mxu0 0.0
    %1354 = vmatpush1.msra.mxu0 0.0
    %1355 = vmatprep.subr.mxu0 0.0
    %1356 = vmatpush1.msra.mxu0 0.0
    %1357 = vmatprep.subr.mxu0 0.0
    %1358 = vmatpush1.msra.mxu0 0.0
    %1359 = vmatprep.subr.mxu0 0.0
    %1360 = vmatpush1.msra.mxu0 0.0
    %1361 = vmatprep.subr.mxu0 0.0
    %1362 = vmatpush1.msra.mxu0 0.0
    %1363 = vmatprep.subr.mxu0 0.0
    %1364 = vmatpush1.msra.mxu0 0.0
    %1365 = vmatprep.subr.mxu0 0.0
    %1366 = vmatpush1.msra.mxu0 0.0
    %1367 = vmatprep.subr.mxu0 0.0
    %1368 = vmatpush1.msra.mxu0 0.0
    %1369 = vmatprep.subr.mxu0 0.0
    %1370 = vmatpush1.msra.mxu0 0.0
    %1371 = vmatprep.subr.mxu0 0.0
    %1372 = vmatpush1.msra.mxu0 0.0
    %1373 = vmatprep.mubr.f32.mxu0 0.0
    %1374 = vmatmul.mubr.f32.gmra.mrb[0].mxu0 %v1223
    %v1375 = vpop.f32.mrb[0].mxu0
    %v1376 = vadd.f32 %v1219, %v1375
    %v1377 = vpop.f32.mrb[0].mxu0
    %v1378 = vadd.f32 %v1219, %v1377
    %1379 = vdwg.mxu0
    %1380 = vrot.lane.b32.xlu0 %v1305, 17
    %v1381 = vpop.permute.xlu0 %1380
    %1382 = vrot.lane.b32.xlu0 %v1307, 17
    %v1383 = vpop.permute.xlu0 %1382
    %1384 = vrot.lane.b32.xlu0 %v1376, 17
    %v1385 = vpop.permute.xlu0 %1384
    %1386 = vrot.lane.b32.xlu0 %v1378, 17
    %v1387 = vpop.permute.xlu0 %1386
    %v1388 = vsel %vm630, %v1385, %v1387
    %v1389 = vsel %vm630, %v1383, %v1385
    %v1390 = vsel %vm630, %v1381, %v1383
    %v1391 = vsel %vm630, %v1387, %v1381
    %v1392 = vld [vmem:[%s1] ss:$8 sm:$0xf]
    %v1394 = vlaneseq
    %v1395 = vshrl.u32 %v1394, 7
    %v1396 = vsub.s32 0, %v1395
    %v1397 = vrot.slane %v1392, %v1396
    %v1398 = vlaneseq
    %v1399 = vshrl.u32 %v1398, 7
    %v1400 = vsub.s32 1, %v1399
    %v1401 = vrot.slane %v1392, %v1400
    %v1402 = vlaneseq
    %v1403 = vshrl.u32 %v1402, 7
    %v1404 = vsub.s32 2, %v1403
    %v1405 = vrot.slane %v1392, %v1404
    %v1406 = vlaneseq
    %v1407 = vshrl.u32 %v1406, 7
    %v1408 = vsub.s32 3, %v1407
    %v1409 = vrot.slane %v1392, %v1408
    %v1414 = vmul.f32 %v1391, %v1397
    %v1415 = vmul.f32 %v1390, %v1401
    %v1416 = vmul.f32 %v1389, %v1405
    %v1417 = vmul.f32 %v1388, %v1409
    %1418 = vst [vmem:[#allocation2] sm:$0xff] %v1414
    %1419 = vst [vmem:[#allocation2 + $0x8] sm:$0xff] %v1415
    %1420 = vst [vmem:[#allocation2 + $0x10] sm:$0xff] %v1416
    %1421 = vst [vmem:[#allocation2 + $0x18] sm:$0xff] %v1417
    %1422 = vrot.lane.b32.xlu0 %v1305, 16
    %v1423 = vpop.permute.xlu0 %1422
    %1424 = vrot.lane.b32.xlu0 %v1307, 16
    %v1425 = vpop.permute.xlu0 %1424
    %1426 = vrot.lane.b32.xlu0 %v1376, 16
    %v1427 = vpop.permute.xlu0 %1426
    %1428 = vrot.lane.b32.xlu0 %v1378, 16
    %v1429 = vpop.permute.xlu0 %1428
    %v1430 = vsel %vm704, %v1427, %v1429
    %v1431 = vsel %vm704, %v1425, %v1427
    %v1432 = vsel %vm704, %v1423, %v1425
    %v1433 = vsel %vm704, %v1429, %v1423
    %v1434 = vld [vmem:[%s709] ss:$8 sm:$0xf]
    %v1436 = vlaneseq
    %v1437 = vshrl.u32 %v1436, 7
    %v1438 = vsub.s32 0, %v1437
    %v1439 = vrot.slane %v1434, %v1438
    %v1440 = vlaneseq
    %v1441 = vshrl.u32 %v1440, 7
    %v1442 = vsub.s32 1, %v1441
    %v1443 = vrot.slane %v1434, %v1442
    %v1444 = vlaneseq
    %v1445 = vshrl.u32 %v1444, 7
    %v1446 = vsub.s32 2, %v1445
    %v1447 = vrot.slane %v1434, %v1446
    %v1448 = vlaneseq
    %v1449 = vshrl.u32 %v1448, 7
    %v1450 = vsub.s32 3, %v1449
    %v1451 = vrot.slane %v1434, %v1450
    %v1456 = vmul.f32 %v1433, %v1439
    %v1457 = vmul.f32 %v1432, %v1443
    %v1458 = vmul.f32 %v1431, %v1447
    %v1459 = vmul.f32 %v1430, %v1451
    %1460 = vst [vmem:[#allocation2 + $0x20] sm:$0xff] %v1456
    %1461 = vst [vmem:[#allocation2 + $0x28] sm:$0xff] %v1457
    %1462 = vst [vmem:[#allocation2 + $0x30] sm:$0xff] %v1458
    %1463 = vst [vmem:[#allocation2 + $0x38] sm:$0xff] %v1459
    %1464 = vrot.lane.b32.xlu0 %v1305, 15
    %v1465 = vpop.permute.xlu0 %1464
    %1466 = vrot.lane.b32.xlu0 %v1307, 15
    %v1467 = vpop.permute.xlu0 %1466
    %1468 = vrot.lane.b32.xlu0 %v1376, 15
    %v1469 = vpop.permute.xlu0 %1468
    %1470 = vrot.lane.b32.xlu0 %v1378, 15
    %v1471 = vpop.permute.xlu0 %1470
    %v1472 = vsel %vm776, %v1469, %v1471
    %v1473 = vsel %vm776, %v1467, %v1469
    %v1474 = vsel %vm776, %v1465, %v1467
    %v1475 = vsel %vm776, %v1471, %v1465
    %v1476 = vld [vmem:[%s781] ss:$8 sm:$0xf]
    %v1478 = vlaneseq
    %v1479 = vshrl.u32 %v1478, 7
    %v1480 = vsub.s32 0, %v1479
    %v1481 = vrot.slane %v1476, %v1480
    %v1482 = vlaneseq
    %v1483 = vshrl.u32 %v1482, 7
    %v1484 = vsub.s32 1, %v1483
    %v1485 = vrot.slane %v1476, %v1484
    %v1486 = vlaneseq
    %v1487 = vshrl.u32 %v1486, 7
    %v1488 = vsub.s32 2, %v1487
    %v1489 = vrot.slane %v1476, %v1488
    %v1490 = vlaneseq
    %v1491 = vshrl.u32 %v1490, 7
    %v1492 = vsub.s32 3, %v1491
    %v1493 = vrot.slane %v1476, %v1492
    %v1498 = vmul.f32 %v1475, %v1481
    %v1499 = vmul.f32 %v1474, %v1485
    %v1500 = vmul.f32 %v1473, %v1489
    %v1501 = vmul.f32 %v1472, %v1493
    %1502 = vst [vmem:[#allocation2 + $0x40] sm:$0xff] %v1498
    %1503 = vst [vmem:[#allocation2 + $0x48] sm:$0xff] %v1499
    %1504 = vst [vmem:[#allocation2 + $0x50] sm:$0xff] %v1500
    %1505 = vst [vmem:[#allocation2 + $0x58] sm:$0xff] %v1501
    %1506 = vrot.lane.b32.xlu0 %v1305, 1
    %v1507 = vpop.permute.xlu0 %1506
    %1508 = vrot.lane.b32.xlu0 %v1307, 1
    %v1509 = vpop.permute.xlu0 %1508
    %1510 = vrot.lane.b32.xlu0 %v1376, 1
    %v1511 = vpop.permute.xlu0 %1510
    %1512 = vrot.lane.b32.xlu0 %v1378, 1
    %v1513 = vpop.permute.xlu0 %1512
    %v1514 = vsel %vm848, %v1511, %v1513
    %v1515 = vsel %vm848, %v1509, %v1511
    %v1516 = vsel %vm848, %v1507, %v1509
    %v1517 = vsel %vm848, %v1513, %v1507
    %v1518 = vld [vmem:[%s853] ss:$8 sm:$0xf]
    %v1520 = vlaneseq
    %v1521 = vshrl.u32 %v1520, 7
    %v1522 = vsub.s32 0, %v1521
    %v1523 = vrot.slane %v1518, %v1522
    %v1524 = vlaneseq
    %v1525 = vshrl.u32 %v1524, 7
    %v1526 = vsub.s32 1, %v1525
    %v1527 = vrot.slane %v1518, %v1526
    %v1528 = vlaneseq
    %v1529 = vshrl.u32 %v1528, 7
    %v1530 = vsub.s32 2, %v1529
    %v1531 = vrot.slane %v1518, %v1530
    %v1532 = vlaneseq
    %v1533 = vshrl.u32 %v1532, 7
    %v1534 = vsub.s32 3, %v1533
    %v1535 = vrot.slane %v1518, %v1534
    %v1540 = vmul.f32 %v1517, %v1523
    %v1541 = vmul.f32 %v1516, %v1527
    %v1542 = vmul.f32 %v1515, %v1531
    %v1543 = vmul.f32 %v1514, %v1535
    %1544 = vst [vmem:[#allocation2 + $0x60] sm:$0xff] %v1540
    %1545 = vst [vmem:[#allocation2 + $0x68] sm:$0xff] %v1541
    %1546 = vst [vmem:[#allocation2 + $0x70] sm:$0xff] %v1542
    %1547 = vst [vmem:[#allocation2 + $0x78] sm:$0xff] %v1543
    %v1548 = vld [vmem:[%s912] ss:$8 sm:$0xf]
    %v1550 = vlaneseq
    %v1551 = vshrl.u32 %v1550, 7
    %v1552 = vsub.s32 0, %v1551
    %v1553 = vrot.slane %v1548, %v1552
    %v1554 = vlaneseq
    %v1555 = vshrl.u32 %v1554, 7
    %v1556 = vsub.s32 1, %v1555
    %v1557 = vrot.slane %v1548, %v1556
    %v1558 = vlaneseq
    %v1559 = vshrl.u32 %v1558, 7
    %v1560 = vsub.s32 2, %v1559
    %v1561 = vrot.slane %v1548, %v1560
    %v1562 = vlaneseq
    %v1563 = vshrl.u32 %v1562, 7
    %v1564 = vsub.s32 3, %v1563
    %v1565 = vrot.slane %v1548, %v1564
    %v1570 = vmul.f32 %v1305, %v1553
    %v1571 = vmul.f32 %v1307, %v1557
    %v1572 = vmul.f32 %v1376, %v1561
    %v1573 = vmul.f32 %v1378, %v1565
    %1574 = vst [vmem:[#allocation2 + $0x80] sm:$0xff] %v1570
    %1575 = vst [vmem:[#allocation2 + $0x88] sm:$0xff] %v1571
    %1576 = vst [vmem:[#allocation2 + $0x90] sm:$0xff] %v1572
    %1577 = vst [vmem:[#allocation2 + $0x98] sm:$0xff] %v1573
    %1578 = vrot.lane.b32.xlu0 %v1305, 127
    %v1579 = vpop.permute.xlu0 %1578
    %1580 = vrot.lane.b32.xlu0 %v1307, 127
    %v1581 = vpop.permute.xlu0 %1580
    %1582 = vrot.lane.b32.xlu0 %v1376, 127
    %v1583 = vpop.permute.xlu0 %1582
    %1584 = vrot.lane.b32.xlu0 %v1378, 127
    %v1585 = vpop.permute.xlu0 %1584
    %v1586 = vsel %vm926, %v1583, %v1585
    %v1587 = vsel %vm926, %v1581, %v1583
    %v1588 = vsel %vm926, %v1579, %v1581
    %v1589 = vsel %vm926, %v1585, %v1579
    %v1590 = vld [vmem:[%s931] ss:$8 sm:$0xf]
    %v1592 = vlaneseq
    %v1593 = vshrl.u32 %v1592, 7
    %v1594 = vsub.s32 0, %v1593
    %v1595 = vrot.slane %v1590, %v1594
    %v1596 = vlaneseq
    %v1597 = vshrl.u32 %v1596, 7
    %v1598 = vsub.s32 1, %v1597
    %v1599 = vrot.slane %v1590, %v1598
    %v1600 = vlaneseq
    %v1601 = vshrl.u32 %v1600, 7
    %v1602 = vsub.s32 2, %v1601
    %v1603 = vrot.slane %v1590, %v1602
    %v1604 = vlaneseq
    %v1605 = vshrl.u32 %v1604, 7
    %v1606 = vsub.s32 3, %v1605
    %v1607 = vrot.slane %v1590, %v1606
    %v1612 = vmul.f32 %v1588, %v1595
    %v1613 = vmul.f32 %v1587, %v1599
    %v1614 = vmul.f32 %v1586, %v1603
    %v1615 = vmul.f32 %v1589, %v1607
    %1616 = vst [vmem:[#allocation2 + $0xa0] sm:$0xff] %v1612
    %1617 = vst [vmem:[#allocation2 + $0xa8] sm:$0xff] %v1613
    %1618 = vst [vmem:[#allocation2 + $0xb0] sm:$0xff] %v1614
    %1619 = vst [vmem:[#allocation2 + $0xb8] sm:$0xff] %v1615
    %1620 = vrot.lane.b32.xlu0 %v1305, 113
    %v1621 = vpop.permute.xlu0 %1620
    %1622 = vrot.lane.b32.xlu0 %v1307, 113
    %v1623 = vpop.permute.xlu0 %1622
    %1624 = vrot.lane.b32.xlu0 %v1376, 113
    %v1625 = vpop.permute.xlu0 %1624
    %1626 = vrot.lane.b32.xlu0 %v1378, 113
    %v1627 = vpop.permute.xlu0 %1626
    %v1628 = vsel %vm998, %v1625, %v1627
    %v1629 = vsel %vm998, %v1623, %v1625
    %v1630 = vsel %vm998, %v1621, %v1623
    %v1631 = vsel %vm998, %v1627, %v1621
    %v1632 = vld [vmem:[%s1003] ss:$8 sm:$0xf]
    %v1634 = vlaneseq
    %v1635 = vshrl.u32 %v1634, 7
    %v1636 = vsub.s32 0, %v1635
    %v1637 = vrot.slane %v1632, %v1636
    %v1638 = vlaneseq
    %v1639 = vshrl.u32 %v1638, 7
    %v1640 = vsub.s32 1, %v1639
    %v1641 = vrot.slane %v1632, %v1640
    %v1642 = vlaneseq
    %v1643 = vshrl.u32 %v1642, 7
    %v1644 = vsub.s32 2, %v1643
    %v1645 = vrot.slane %v1632, %v1644
    %v1646 = vlaneseq
    %v1647 = vshrl.u32 %v1646, 7
    %v1648 = vsub.s32 3, %v1647
    %v1649 = vrot.slane %v1632, %v1648
    %v1654 = vmul.f32 %v1630, %v1637
    %v1655 = vmul.f32 %v1629, %v1641
    %v1656 = vmul.f32 %v1628, %v1645
    %v1657 = vmul.f32 %v1631, %v1649
    %1658 = vst [vmem:[#allocation2 + $0xc0] sm:$0xff] %v1654
    %1659 = vst [vmem:[#allocation2 + $0xc8] sm:$0xff] %v1655
    %1660 = vst [vmem:[#allocation2 + $0xd0] sm:$0xff] %v1656
    %1661 = vst [vmem:[#allocation2 + $0xd8] sm:$0xff] %v1657
    %1662 = vrot.lane.b32.xlu0 %v1305, 112
    %v1663 = vpop.permute.xlu0 %1662
    %1664 = vrot.lane.b32.xlu0 %v1307, 112
    %v1665 = vpop.permute.xlu0 %1664
    %1666 = vrot.lane.b32.xlu0 %v1376, 112
    %v1667 = vpop.permute.xlu0 %1666
    %1668 = vrot.lane.b32.xlu0 %v1378, 112
    %v1669 = vpop.permute.xlu0 %1668
    %v1670 = vsel %vm1070, %v1667, %v1669
    %v1671 = vsel %vm1070, %v1665, %v1667
    %v1672 = vsel %vm1070, %v1663, %v1665
    %v1673 = vsel %vm1070, %v1669, %v1663
    %v1674 = vld [vmem:[%s1075] ss:$8 sm:$0xf]
    %v1676 = vlaneseq
    %v1677 = vshrl.u32 %v1676, 7
    %v1678 = vsub.s32 0, %v1677
    %v1679 = vrot.slane %v1674, %v1678
    %v1680 = vlaneseq
    %v1681 = vshrl.u32 %v1680, 7
    %v1682 = vsub.s32 1, %v1681
    %v1683 = vrot.slane %v1674, %v1682
    %v1684 = vlaneseq
    %v1685 = vshrl.u32 %v1684, 7
    %v1686 = vsub.s32 2, %v1685
    %v1687 = vrot.slane %v1674, %v1686
    %v1688 = vlaneseq
    %v1689 = vshrl.u32 %v1688, 7
    %v1690 = vsub.s32 3, %v1689
    %v1691 = vrot.slane %v1674, %v1690
    %v1696 = vmul.f32 %v1672, %v1679
    %v1697 = vmul.f32 %v1671, %v1683
    %v1698 = vmul.f32 %v1670, %v1687
    %v1699 = vmul.f32 %v1673, %v1691
    %1700 = vst [vmem:[#allocation2 + $0xe0] sm:$0xff] %v1696
    %1701 = vst [vmem:[#allocation2 + $0xe8] sm:$0xff] %v1697
    %1702 = vst [vmem:[#allocation2 + $0xf0] sm:$0xff] %v1698
    %1703 = vst [vmem:[#allocation2 + $0xf8] sm:$0xff] %v1699
    %1704 = vrot.lane.b32.xlu0 %v1305, 111
    %v1705 = vpop.permute.xlu0 %1704
    %1706 = vrot.lane.b32.xlu0 %v1307, 111
    %v1707 = vpop.permute.xlu0 %1706
    %1708 = vrot.lane.b32.xlu0 %v1376, 111
    %v1709 = vpop.permute.xlu0 %1708
    %1710 = vrot.lane.b32.xlu0 %v1378, 111
    %v1711 = vpop.permute.xlu0 %1710
    %v1712 = vsel %vm1142, %v1709, %v1711
    %v1713 = vsel %vm1142, %v1707, %v1709
    %v1714 = vsel %vm1142, %v1705, %v1707
    %v1715 = vsel %vm1142, %v1711, %v1705
    %v1716 = vld [vmem:[%s1147] ss:$8 sm:$0xf]
    %v1718 = vlaneseq
    %v1719 = vshrl.u32 %v1718, 7
    %v1720 = vsub.s32 0, %v1719
    %v1721 = vrot.slane %v1716, %v1720
    %v1722 = vlaneseq
    %v1723 = vshrl.u32 %v1722, 7
    %v1724 = vsub.s32 1, %v1723
    %v1725 = vrot.slane %v1716, %v1724
    %v1726 = vlaneseq
    %v1727 = vshrl.u32 %v1726, 7
    %v1728 = vsub.s32 2, %v1727
    %v1729 = vrot.slane %v1716, %v1728
    %v1730 = vlaneseq
    %v1731 = vshrl.u32 %v1730, 7
    %v1732 = vsub.s32 3, %v1731
    %v1733 = vrot.slane %v1716, %v1732
    %v1738 = vmul.f32 %v1714, %v1721
    %v1739 = vmul.f32 %v1713, %v1725
    %v1740 = vmul.f32 %v1712, %v1729
    %v1741 = vmul.f32 %v1715, %v1733
    %1742 = vst [vmem:[#allocation2 + $0x100] sm:$0xff] %v1738
    %1743 = vst [vmem:[#allocation2 + $0x108] sm:$0xff] %v1739
    %1744 = vst [vmem:[#allocation2 + $0x110] sm:$0xff] %v1740
    %1745 = vst [vmem:[#allocation2 + $0x118] sm:$0xff] %v1741
    %v1746 = vld [vmem:[%s4] sm:$0xff]
    %v1747 = vld [vmem:[#allocation2] sm:$0xff]
    %v1748 = vld [vmem:[#allocation2 + $0x8] sm:$0xff]
    %v1749 = vld [vmem:[#allocation2 + $0x10] sm:$0xff]
    %v1750 = vld [vmem:[#allocation2 + $0x18] sm:$0xff]
    %v1751 = vld [vmem:[#allocation2 + $0x20] sm:$0xff]
    %v1752 = vld [vmem:[#allocation2 + $0x28] sm:$0xff]
    %v1753 = vld [vmem:[#allocation2 + $0x30] sm:$0xff]
    %v1754 = vld [vmem:[#allocation2 + $0x38] sm:$0xff]
    %v1755 = vld [vmem:[#allocation2 + $0x40] sm:$0xff]
    %v1756 = vld [vmem:[#allocation2 + $0x48] sm:$0xff]
    %v1757 = vld [vmem:[#allocation2 + $0x50] sm:$0xff]
    %v1758 = vld [vmem:[#allocation2 + $0x58] sm:$0xff]
    %v1759 = vld [vmem:[#allocation2 + $0x60] sm:$0xff]
    %v1760 = vld [vmem:[#allocation2 + $0x68] sm:$0xff]
    %v1761 = vld [vmem:[#allocation2 + $0x70] sm:$0xff]
    %v1762 = vld [vmem:[#allocation2 + $0x78] sm:$0xff]
    %v1763 = vld [vmem:[#allocation2 + $0x80] sm:$0xff]
    %v1764 = vld [vmem:[#allocation2 + $0x88] sm:$0xff]
    %v1765 = vld [vmem:[#allocation2 + $0x90] sm:$0xff]
    %v1766 = vld [vmem:[#allocation2 + $0x98] sm:$0xff]
    %v1767 = vld [vmem:[#allocation2 + $0xa0] sm:$0xff]
    %v1768 = vld [vmem:[#allocation2 + $0xa8] sm:$0xff]
    %v1769 = vld [vmem:[#allocation2 + $0xb0] sm:$0xff]
    %v1770 = vld [vmem:[#allocation2 + $0xb8] sm:$0xff]
    %v1771 = vld [vmem:[#allocation2 + $0xc0] sm:$0xff]
    %v1772 = vld [vmem:[#allocation2 + $0xc8] sm:$0xff]
    %v1773 = vld [vmem:[#allocation2 + $0xd0] sm:$0xff]
    %v1774 = vld [vmem:[#allocation2 + $0xd8] sm:$0xff]
    %v1775 = vld [vmem:[#allocation2 + $0xe0] sm:$0xff]
    %v1776 = vld [vmem:[#allocation2 + $0xe8] sm:$0xff]
    %v1777 = vld [vmem:[#allocation2 + $0xf0] sm:$0xff]
    %v1778 = vld [vmem:[#allocation2 + $0xf8] sm:$0xff]
    %v1779 = vld [vmem:[#allocation2 + $0x100] sm:$0xff]
    %v1780 = vld [vmem:[#allocation2 + $0x108] sm:$0xff]
    %v1781 = vld [vmem:[#allocation2 + $0x110] sm:$0xff]
    %v1782 = vld [vmem:[#allocation2 + $0x118] sm:$0xff]
    %v1783 = vld [vmem:[%s5] sm:$0xff]
    %1785 = vset.pattern.permute.xlu0 0
    %1786 = vperm.xlu0 %1785, %v1783
    %v1787 = vpop.permute.xlu0 %1786
    %vm1789 = vcmask 588800
    %v1791 = vsel %vm1789, %v1746, 0
    %1793 = vmatprep.subr.mxu0 %v1748
    %1794 = vmatpush1.msra.mxu0 %v1747
    %1795 = vmatprep.subr.mxu0 %v1752
    %1796 = vmatpush1.msra.mxu0 %v1751
    %1797 = vmatprep.subr.mxu0 %v1756
    %1798 = vmatpush1.msra.mxu0 %v1755
    %1799 = vmatprep.subr.mxu0 %v1760
    %1800 = vmatpush1.msra.mxu0 %v1759
    %1801 = vmatprep.subr.mxu0 %v1764
    %1802 = vmatpush1.msra.mxu0 %v1763
    %1803 = vmatprep.subr.mxu0 %v1768
    %1804 = vmatpush1.msra.mxu0 %v1767
    %1805 = vmatprep.subr.mxu0 %v1772
    %1806 = vmatpush1.msra.mxu0 %v1771
    %1807 = vmatprep.subr.mxu0 %v1776
    %1808 = vmatpush1.msra.mxu0 %v1775
    %1809 = vmatprep.subr.mxu0 %v1780
    %1810 = vmatpush1.msra.mxu0 %v1779
    %1811 = vmatprep.subr.mxu0 0.0
    %1812 = vmatpush1.msra.mxu0 0.0
    %1813 = vmatprep.subr.mxu0 0.0
    %1814 = vmatpush1.msra.mxu0 0.0
    %1815 = vmatprep.subr.mxu0 0.0
    %1816 = vmatpush1.msra.mxu0 0.0
    %1817 = vmatprep.subr.mxu0 0.0
    %1818 = vmatpush1.msra.mxu0 0.0
    %1819 = vmatprep.subr.mxu0 0.0
    %1820 = vmatpush1.msra.mxu0 0.0
    %1821 = vmatprep.subr.mxu0 0.0
    %1822 = vmatpush1.msra.mxu0 0.0
    %1823 = vmatprep.subr.mxu0 0.0
    %1824 = vmatpush1.msra.mxu0 0.0
    %1825 = vmatprep.subr.mxu0 0.0
    %1826 = vmatpush1.msra.mxu0 0.0
    %1827 = vmatprep.subr.mxu0 0.0
    %1828 = vmatpush1.msra.mxu0 0.0
    %1829 = vmatprep.subr.mxu0 0.0
    %1830 = vmatpush1.msra.mxu0 0.0
    %1831 = vmatprep.subr.mxu0 0.0
    %1832 = vmatpush1.msra.mxu0 0.0
    %1833 = vmatprep.subr.mxu0 0.0
    %1834 = vmatpush1.msra.mxu0 0.0
    %1835 = vmatprep.subr.mxu0 0.0
    %1836 = vmatpush1.msra.mxu0 0.0
    %1837 = vmatprep.subr.mxu0 0.0
    %1838 = vmatpush1.msra.mxu0 0.0
    %1839 = vmatprep.subr.mxu0 0.0
    %1840 = vmatpush1.msra.mxu0 0.0
    %1841 = vmatprep.subr.mxu0 0.0
    %1842 = vmatpush1.msra.mxu0 0.0
    %1843 = vmatprep.subr.mxu0 0.0
    %1844 = vmatpush1.msra.mxu0 0.0
    %1845 = vmatprep.subr.mxu0 0.0
    %1846 = vmatpush1.msra.mxu0 0.0
    %1847 = vmatprep.subr.mxu0 0.0
    %1848 = vmatpush1.msra.mxu0 0.0
    %1849 = vmatprep.subr.mxu0 0.0
    %1850 = vmatpush1.msra.mxu0 0.0
    %1851 = vmatprep.subr.mxu0 0.0
    %1852 = vmatpush1.msra.mxu0 0.0
    %1853 = vmatprep.subr.mxu0 0.0
    %1854 = vmatpush1.msra.mxu0 0.0
    %1855 = vmatprep.subr.mxu0 0.0
    %1856 = vmatpush1.msra.mxu0 0.0
    %1857 = vmatprep.mubr.f32.mxu0 0.0
    %1858 = vmatmul.mubr.f32.gmra.mrb[0].mxu0 %v1791
    %v1859 = vpop.f32.mrb[0].mxu0
    %v1860 = vadd.f32 %v1787, %v1859
    %v1861 = vpop.f32.mrb[0].mxu0
    %v1862 = vadd.f32 %v1787, %v1861
    %1863 = vdwg.mxu0
    %1864 = vmatprep.subr.mxu0 %v1750
    %1865 = vmatpush1.msra.mxu0 %v1749
    %1866 = vmatprep.subr.mxu0 %v1754
    %1867 = vmatpush1.msra.mxu0 %v1753
    %1868 = vmatprep.subr.mxu0 %v1758
    %1869 = vmatpush1.msra.mxu0 %v1757
    %1870 = vmatprep.subr.mxu0 %v1762
    %1871 = vmatpush1.msra.mxu0 %v1761
    %1872 = vmatprep.subr.mxu0 %v1766
    %1873 = vmatpush1.msra.mxu0 %v1765
    %1874 = vmatprep.subr.mxu0 %v1770
    %1875 = vmatpush1.msra.mxu0 %v1769
    %1876 = vmatprep.subr.mxu0 %v1774
    %1877 = vmatpush1.msra.mxu0 %v1773
    %1878 = vmatprep.subr.mxu0 %v1778
    %1879 = vmatpush1.msra.mxu0 %v1777
    %1880 = vmatprep.subr.mxu0 %v1782
    %1881 = vmatpush1.msra.mxu0 %v1781
    %1882 = vmatprep.subr.mxu0 0.0
    %1883 = vmatpush1.msra.mxu0 0.0
    %1884 = vmatprep.subr.mxu0 0.0
    %1885 = vmatpush1.msra.mxu0 0.0
    %1886 = vmatprep.subr.mxu0 0.0
    %1887 = vmatpush1.msra.mxu0 0.0
    %1888 = vmatprep.subr.mxu0 0.0
    %1889 = vmatpush1.msra.mxu0 0.0
    %1890 = vmatprep.subr.mxu0 0.0
    %1891 = vmatpush1.msra.mxu0 0.0
    %1892 = vmatprep.subr.mxu0 0.0
    %1893 = vmatpush1.msra.mxu0 0.0
    %1894 = vmatprep.subr.mxu0 0.0
    %1895 = vmatpush1.msra.mxu0 0.0
    %1896 = vmatprep.subr.mxu0 0.0
    %1897 = vmatpush1.msra.mxu0 0.0
    %1898 = vmatprep.subr.mxu0 0.0
    %1899 = vmatpush1.msra.mxu0 0.0
    %1900 = vmatprep.subr.mxu0 0.0
    %1901 = vmatpush1.msra.mxu0 0.0
    %1902 = vmatprep.subr.mxu0 0.0
    %1903 = vmatpush1.msra.mxu0 0.0
    %1904 = vmatprep.subr.mxu0 0.0
    %1905 = vmatpush1.msra.mxu0 0.0
    %1906 = vmatprep.subr.mxu0 0.0
    %1907 = vmatpush1.msra.mxu0 0.0
    %1908 = vmatprep.subr.mxu0 0.0
    %1909 = vmatpush1.msra.mxu0 0.0
    %1910 = vmatprep.subr.mxu0 0.0
    %1911 = vmatpush1.msra.mxu0 0.0
    %1912 = vmatprep.subr.mxu0 0.0
    %1913 = vmatpush1.msra.mxu0 0.0
    %1914 = vmatprep.subr.mxu0 0.0
    %1915 = vmatpush1.msra.mxu0 0.0
    %1916 = vmatprep.subr.mxu0 0.0
    %1917 = vmatpush1.msra.mxu0 0.0
    %1918 = vmatprep.subr.mxu0 0.0
    %1919 = vmatpush1.msra.mxu0 0.0
    %1920 = vmatprep.subr.mxu0 0.0
    %1921 = vmatpush1.msra.mxu0 0.0
    %1922 = vmatprep.subr.mxu0 0.0
    %1923 = vmatpush1.msra.mxu0 0.0
    %1924 = vmatprep.subr.mxu0 0.0
    %1925 = vmatpush1.msra.mxu0 0.0
    %1926 = vmatprep.subr.mxu0 0.0
    %1927 = vmatpush1.msra.mxu0 0.0
    %1928 = vmatprep.mubr.f32.mxu0 0.0
    %1929 = vmatmul.mubr.f32.gmra.mrb[0].mxu0 %v1791
    %v1930 = vpop.f32.mrb[0].mxu0
    %v1931 = vadd.f32 %v1787, %v1930
    %v1932 = vpop.f32.mrb[0].mxu0
    %v1933 = vadd.f32 %v1787, %v1932
    %1934 = vdwg.mxu0
    %v1935 = vmax.f32 %v1860, 0.0
    %v1936 = vmax.f32 %v1862, 0.0
    %v1937 = vmax.f32 %v1931, 0.0
    %v1938 = vmax.f32 %v1933, 0.0
    %1939 = vrot.lane.b32.xlu0 %v1935, 17
    %v1940 = vpop.permute.xlu0 %1939
    %1941 = vrot.lane.b32.xlu0 %v1936, 17
    %v1942 = vpop.permute.xlu0 %1941
    %1943 = vrot.lane.b32.xlu0 %v1937, 17
    %v1944 = vpop.permute.xlu0 %1943
    %1945 = vrot.lane.b32.xlu0 %v1938, 17
    %v1946 = vpop.permute.xlu0 %1945
    %v1947 = vsel %vm630, %v1944, %v1946
    %v1948 = vsel %vm630, %v1942, %v1944
    %v1949 = vsel %vm630, %v1940, %v1942
    %v1950 = vsel %vm630, %v1946, %v1940
    %v1951 = vld [vmem:[%s1] ss:$8 sm:$0xf]
    %v1953 = vlaneseq
    %v1954 = vshrl.u32 %v1953, 7
    %v1955 = vsub.s32 0, %v1954
    %v1956 = vrot.slane %v1951, %v1955
    %v1957 = vlaneseq
    %v1958 = vshrl.u32 %v1957, 7
    %v1959 = vsub.s32 1, %v1958
    %v1960 = vrot.slane %v1951, %v1959
    %v1961 = vlaneseq
    %v1962 = vshrl.u32 %v1961, 7
    %v1963 = vsub.s32 2, %v1962
    %v1964 = vrot.slane %v1951, %v1963
    %v1965 = vlaneseq
    %v1966 = vshrl.u32 %v1965, 7
    %v1967 = vsub.s32 3, %v1966
    %v1968 = vrot.slane %v1951, %v1967
    %v1973 = vmul.f32 %v1950, %v1956
    %v1974 = vmul.f32 %v1949, %v1960
    %v1975 = vmul.f32 %v1948, %v1964
    %v1976 = vmul.f32 %v1947, %v1968
    %1977 = vst [vmem:[#allocation2] sm:$0xff] %v1973
    %1978 = vst [vmem:[#allocation2 + $0x8] sm:$0xff] %v1974
    %1979 = vst [vmem:[#allocation2 + $0x10] sm:$0xff] %v1975
    %1980 = vst [vmem:[#allocation2 + $0x18] sm:$0xff] %v1976
    %1981 = vrot.lane.b32.xlu0 %v1935, 16
    %v1982 = vpop.permute.xlu0 %1981
    %1983 = vrot.lane.b32.xlu0 %v1936, 16
    %v1984 = vpop.permute.xlu0 %1983
    %1985 = vrot.lane.b32.xlu0 %v1937, 16
    %v1986 = vpop.permute.xlu0 %1985
    %1987 = vrot.lane.b32.xlu0 %v1938, 16
    %v1988 = vpop.permute.xlu0 %1987
    %v1989 = vsel %vm704, %v1986, %v1988
    %v1990 = vsel %vm704, %v1984, %v1986
    %v1991 = vsel %vm704, %v1982, %v1984
    %v1992 = vsel %vm704, %v1988, %v1982
    %v1993 = vld [vmem:[%s709] ss:$8 sm:$0xf]
    %v1995 = vlaneseq
    %v1996 = vshrl.u32 %v1995, 7
    %v1997 = vsub.s32 0, %v1996
    %v1998 = vrot.slane %v1993, %v1997
    %v1999 = vlaneseq
    %v2000 = vshrl.u32 %v1999, 7
    %v2001 = vsub.s32 1, %v2000
    %v2002 = vrot.slane %v1993, %v2001
    %v2003 = vlaneseq
    %v2004 = vshrl.u32 %v2003, 7
    %v2005 = vsub.s32 2, %v2004
    %v2006 = vrot.slane %v1993, %v2005
    %v2007 = vlaneseq
    %v2008 = vshrl.u32 %v2007, 7
    %v2009 = vsub.s32 3, %v2008
    %v2010 = vrot.slane %v1993, %v2009
    %v2015 = vmul.f32 %v1992, %v1998
    %v2016 = vmul.f32 %v1991, %v2002
    %v2017 = vmul.f32 %v1990, %v2006
    %v2018 = vmul.f32 %v1989, %v2010
    %2019 = vst [vmem:[#allocation2 + $0x20] sm:$0xff] %v2015
    %2020 = vst [vmem:[#allocation2 + $0x28] sm:$0xff] %v2016
    %2021 = vst [vmem:[#allocation2 + $0x30] sm:$0xff] %v2017
    %2022 = vst [vmem:[#allocation2 + $0x38] sm:$0xff] %v2018
    %2023 = vrot.lane.b32.xlu0 %v1935, 15
    %v2024 = vpop.permute.xlu0 %2023
    %2025 = vrot.lane.b32.xlu0 %v1936, 15
    %v2026 = vpop.permute.xlu0 %2025
    %2027 = vrot.lane.b32.xlu0 %v1937, 15
    %v2028 = vpop.permute.xlu0 %2027
    %2029 = vrot.lane.b32.xlu0 %v1938, 15
    %v2030 = vpop.permute.xlu0 %2029
    %v2031 = vsel %vm776, %v2028, %v2030
    %v2032 = vsel %vm776, %v2026, %v2028
    %v2033 = vsel %vm776, %v2024, %v2026
    %v2034 = vsel %vm776, %v2030, %v2024
    %v2035 = vld [vmem:[%s781] ss:$8 sm:$0xf]
    %v2037 = vlaneseq
    %v2038 = vshrl.u32 %v2037, 7
    %v2039 = vsub.s32 0, %v2038
    %v2040 = vrot.slane %v2035, %v2039
    %v2041 = vlaneseq
    %v2042 = vshrl.u32 %v2041, 7
    %v2043 = vsub.s32 1, %v2042
    %v2044 = vrot.slane %v2035, %v2043
    %v2045 = vlaneseq
    %v2046 = vshrl.u32 %v2045, 7
    %v2047 = vsub.s32 2, %v2046
    %v2048 = vrot.slane %v2035, %v2047
    %v2049 = vlaneseq
    %v2050 = vshrl.u32 %v2049, 7
    %v2051 = vsub.s32 3, %v2050
    %v2052 = vrot.slane %v2035, %v2051
    %v2057 = vmul.f32 %v2034, %v2040
    %v2058 = vmul.f32 %v2033, %v2044
    %v2059 = vmul.f32 %v2032, %v2048
    %v2060 = vmul.f32 %v2031, %v2052
    %2061 = vst [vmem:[#allocation2 + $0x40] sm:$0xff] %v2057
    %2062 = vst [vmem:[#allocation2 + $0x48] sm:$0xff] %v2058
    %2063 = vst [vmem:[#allocation2 + $0x50] sm:$0xff] %v2059
    %2064 = vst [vmem:[#allocation2 + $0x58] sm:$0xff] %v2060
    %2065 = vrot.lane.b32.xlu0 %v1935, 1
    %v2066 = vpop.permute.xlu0 %2065
    %2067 = vrot.lane.b32.xlu0 %v1936, 1
    %v2068 = vpop.permute.xlu0 %2067
    %2069 = vrot.lane.b32.xlu0 %v1937, 1
    %v2070 = vpop.permute.xlu0 %2069
    %2071 = vrot.lane.b32.xlu0 %v1938, 1
    %v2072 = vpop.permute.xlu0 %2071
    %v2073 = vsel %vm848, %v2070, %v2072
    %v2074 = vsel %vm848, %v2068, %v2070
    %v2075 = vsel %vm848, %v2066, %v2068
    %v2076 = vsel %vm848, %v2072, %v2066
    %v2077 = vld [vmem:[%s853] ss:$8 sm:$0xf]
    %v2079 = vlaneseq
    %v2080 = vshrl.u32 %v2079, 7
    %v2081 = vsub.s32 0, %v2080
    %v2082 = vrot.slane %v2077, %v2081
    %v2083 = vlaneseq
    %v2084 = vshrl.u32 %v2083, 7
    %v2085 = vsub.s32 1, %v2084
    %v2086 = vrot.slane %v2077, %v2085
    %v2087 = vlaneseq
    %v2088 = vshrl.u32 %v2087, 7
    %v2089 = vsub.s32 2, %v2088
    %v2090 = vrot.slane %v2077, %v2089
    %v2091 = vlaneseq
    %v2092 = vshrl.u32 %v2091, 7
    %v2093 = vsub.s32 3, %v2092
    %v2094 = vrot.slane %v2077, %v2093
    %v2099 = vmul.f32 %v2076, %v2082
    %v2100 = vmul.f32 %v2075, %v2086
    %v2101 = vmul.f32 %v2074, %v2090
    %v2102 = vmul.f32 %v2073, %v2094
    %2103 = vst [vmem:[#allocation2 + $0x60] sm:$0xff] %v2099
    %2104 = vst [vmem:[#allocation2 + $0x68] sm:$0xff] %v2100
    %2105 = vst [vmem:[#allocation2 + $0x70] sm:$0xff] %v2101
    %2106 = vst [vmem:[#allocation2 + $0x78] sm:$0xff] %v2102
    %v2107 = vld [vmem:[%s912] ss:$8 sm:$0xf]
    %v2109 = vlaneseq
    %v2110 = vshrl.u32 %v2109, 7
    %v2111 = vsub.s32 0, %v2110
    %v2112 = vrot.slane %v2107, %v2111
    %v2113 = vlaneseq
    %v2114 = vshrl.u32 %v2113, 7
    %v2115 = vsub.s32 1, %v2114
    %v2116 = vrot.slane %v2107, %v2115
    %v2117 = vlaneseq
    %v2118 = vshrl.u32 %v2117, 7
    %v2119 = vsub.s32 2, %v2118
    %v2120 = vrot.slane %v2107, %v2119
    %v2121 = vlaneseq
    %v2122 = vshrl.u32 %v2121, 7
    %v2123 = vsub.s32 3, %v2122
    %v2124 = vrot.slane %v2107, %v2123
    %v2129 = vmul.f32 %v1935, %v2112
    %v2130 = vmul.f32 %v1936, %v2116
    %v2131 = vmul.f32 %v1937, %v2120
    %v2132 = vmul.f32 %v1938, %v2124
    %2133 = vst [vmem:[#allocation2 + $0x80] sm:$0xff] %v2129
    %2134 = vst [vmem:[#allocation2 + $0x88] sm:$0xff] %v2130
    %2135 = vst [vmem:[#allocation2 + $0x90] sm:$0xff] %v2131
    %2136 = vst [vmem:[#allocation2 + $0x98] sm:$0xff] %v2132
    %2137 = vrot.lane.b32.xlu0 %v1935, 127
    %v2138 = vpop.permute.xlu0 %2137
    %2139 = vrot.lane.b32.xlu0 %v1936, 127
    %v2140 = vpop.permute.xlu0 %2139
    %2141 = vrot.lane.b32.xlu0 %v1937, 127
    %v2142 = vpop.permute.xlu0 %2141
    %2143 = vrot.lane.b32.xlu0 %v1938, 127
    %v2144 = vpop.permute.xlu0 %2143
    %v2145 = vsel %vm926, %v2142, %v2144
    %v2146 = vsel %vm926, %v2140, %v2142
    %v2147 = vsel %vm926, %v2138, %v2140
    %v2148 = vsel %vm926, %v2144, %v2138
    %v2149 = vld [vmem:[%s931] ss:$8 sm:$0xf]
    %v2151 = vlaneseq
    %v2152 = vshrl.u32 %v2151, 7
    %v2153 = vsub.s32 0, %v2152
    %v2154 = vrot.slane %v2149, %v2153
    %v2155 = vlaneseq
    %v2156 = vshrl.u32 %v2155, 7
    %v2157 = vsub.s32 1, %v2156
    %v2158 = vrot.slane %v2149, %v2157
    %v2159 = vlaneseq
    %v2160 = vshrl.u32 %v2159, 7
    %v2161 = vsub.s32 2, %v2160
    %v2162 = vrot.slane %v2149, %v2161
    %v2163 = vlaneseq
    %v2164 = vshrl.u32 %v2163, 7
    %v2165 = vsub.s32 3, %v2164
    %v2166 = vrot.slane %v2149, %v2165
    %v2171 = vmul.f32 %v2147, %v2154
    %v2172 = vmul.f32 %v2146, %v2158
    %v2173 = vmul.f32 %v2145, %v2162
    %v2174 = vmul.f32 %v2148, %v2166
    %2175 = vst [vmem:[#allocation2 + $0xa0] sm:$0xff] %v2171
    %2176 = vst [vmem:[#allocation2 + $0xa8] sm:$0xff] %v2172
    %2177 = vst [vmem:[#allocation2 + $0xb0] sm:$0xff] %v2173
    %2178 = vst [vmem:[#allocation2 + $0xb8] sm:$0xff] %v2174
    %2179 = vrot.lane.b32.xlu0 %v1935, 113
    %v2180 = vpop.permute.xlu0 %2179
    %2181 = vrot.lane.b32.xlu0 %v1936, 113
    %v2182 = vpop.permute.xlu0 %2181
    %2183 = vrot.lane.b32.xlu0 %v1937, 113
    %v2184 = vpop.permute.xlu0 %2183
    %2185 = vrot.lane.b32.xlu0 %v1938, 113
    %v2186 = vpop.permute.xlu0 %2185
    %v2187 = vsel %vm998, %v2184, %v2186
    %v2188 = vsel %vm998, %v2182, %v2184
    %v2189 = vsel %vm998, %v2180, %v2182
    %v2190 = vsel %vm998, %v2186, %v2180
    %v2191 = vld [vmem:[%s1003] ss:$8 sm:$0xf]
    %v2193 = vlaneseq
    %v2194 = vshrl.u32 %v2193, 7
    %v2195 = vsub.s32 0, %v2194
    %v2196 = vrot.slane %v2191, %v2195
    %v2197 = vlaneseq
    %v2198 = vshrl.u32 %v2197, 7
    %v2199 = vsub.s32 1, %v2198
    %v2200 = vrot.slane %v2191, %v2199
    %v2201 = vlaneseq
    %v2202 = vshrl.u32 %v2201, 7
    %v2203 = vsub.s32 2, %v2202
    %v2204 = vrot.slane %v2191, %v2203
    %v2205 = vlaneseq
    %v2206 = vshrl.u32 %v2205, 7
    %v2207 = vsub.s32 3, %v2206
    %v2208 = vrot.slane %v2191, %v2207
    %v2213 = vmul.f32 %v2189, %v2196
    %v2214 = vmul.f32 %v2188, %v2200
    %v2215 = vmul.f32 %v2187, %v2204
    %v2216 = vmul.f32 %v2190, %v2208
    %2217 = vst [vmem:[#allocation2 + $0xc0] sm:$0xff] %v2213
    %2218 = vst [vmem:[#allocation2 + $0xc8] sm:$0xff] %v2214
    %2219 = vst [vmem:[#allocation2 + $0xd0] sm:$0xff] %v2215
    %2220 = vst [vmem:[#allocation2 + $0xd8] sm:$0xff] %v2216
    %2221 = vrot.lane.b32.xlu0 %v1935, 112
    %v2222 = vpop.permute.xlu0 %2221
    %2223 = vrot.lane.b32.xlu0 %v1936, 112
    %v2224 = vpop.permute.xlu0 %2223
    %2225 = vrot.lane.b32.xlu0 %v1937, 112
    %v2226 = vpop.permute.xlu0 %2225
    %2227 = vrot.lane.b32.xlu0 %v1938, 112
    %v2228 = vpop.permute.xlu0 %2227
    %v2229 = vsel %vm1070, %v2226, %v2228
    %v2230 = vsel %vm1070, %v2224, %v2226
    %v2231 = vsel %vm1070, %v2222, %v2224
    %v2232 = vsel %vm1070, %v2228, %v2222
    %v2233 = vld [vmem:[%s1075] ss:$8 sm:$0xf]
    %v2235 = vlaneseq
    %v2236 = vshrl.u32 %v2235, 7
    %v2237 = vsub.s32 0, %v2236
    %v2238 = vrot.slane %v2233, %v2237
    %v2239 = vlaneseq
    %v2240 = vshrl.u32 %v2239, 7
    %v2241 = vsub.s32 1, %v2240
    %v2242 = vrot.slane %v2233, %v2241
    %v2243 = vlaneseq
    %v2244 = vshrl.u32 %v2243, 7
    %v2245 = vsub.s32 2, %v2244
    %v2246 = vrot.slane %v2233, %v2245
    %v2247 = vlaneseq
    %v2248 = vshrl.u32 %v2247, 7
    %v2249 = vsub.s32 3, %v2248
    %v2250 = vrot.slane %v2233, %v2249
    %v2255 = vmul.f32 %v2231, %v2238
    %v2256 = vmul.f32 %v2230, %v2242
    %v2257 = vmul.f32 %v2229, %v2246
    %v2258 = vmul.f32 %v2232, %v2250
    %2259 = vst [vmem:[#allocation2 + $0xe0] sm:$0xff] %v2255
    %2260 = vst [vmem:[#allocation2 + $0xe8] sm:$0xff] %v2256
    %2261 = vst [vmem:[#allocation2 + $0xf0] sm:$0xff] %v2257
    %2262 = vst [vmem:[#allocation2 + $0xf8] sm:$0xff] %v2258
    %2263 = vrot.lane.b32.xlu0 %v1935, 111
    %v2264 = vpop.permute.xlu0 %2263
    %2265 = vrot.lane.b32.xlu0 %v1936, 111
    %v2266 = vpop.permute.xlu0 %2265
    %2267 = vrot.lane.b32.xlu0 %v1937, 111
    %v2268 = vpop.permute.xlu0 %2267
    %2269 = vrot.lane.b32.xlu0 %v1938, 111
    %v2270 = vpop.permute.xlu0 %2269
    %v2271 = vsel %vm1142, %v2268, %v2270
    %v2272 = vsel %vm1142, %v2266, %v2268
    %v2273 = vsel %vm1142, %v2264, %v2266
    %v2274 = vsel %vm1142, %v2270, %v2264
    %v2275 = vld [vmem:[%s1147] ss:$8 sm:$0xf]
    %v2277 = vlaneseq
    %v2278 = vshrl.u32 %v2277, 7
    %v2279 = vsub.s32 0, %v2278
    %v2280 = vrot.slane %v2275, %v2279
    %v2281 = vlaneseq
    %v2282 = vshrl.u32 %v2281, 7
    %v2283 = vsub.s32 1, %v2282
    %v2284 = vrot.slane %v2275, %v2283
    %v2285 = vlaneseq
    %v2286 = vshrl.u32 %v2285, 7
    %v2287 = vsub.s32 2, %v2286
    %v2288 = vrot.slane %v2275, %v2287
    %v2289 = vlaneseq
    %v2290 = vshrl.u32 %v2289, 7
    %v2291 = vsub.s32 3, %v2290
    %v2292 = vrot.slane %v2275, %v2291
    %v2297 = vmul.f32 %v2273, %v2280
    %v2298 = vmul.f32 %v2272, %v2284
    %v2299 = vmul.f32 %v2271, %v2288
    %v2300 = vmul.f32 %v2274, %v2292
    %2301 = vst [vmem:[#allocation2 + $0x100] sm:$0xff] %v2297
    %2302 = vst [vmem:[#allocation2 + $0x108] sm:$0xff] %v2298
    %2303 = vst [vmem:[#allocation2 + $0x110] sm:$0xff] %v2299
    %2304 = vst [vmem:[#allocation2 + $0x118] sm:$0xff] %v2300
    %v2305 = vld [vmem:[%s6] sm:$0xff]
    %v2306 = vld [vmem:[#allocation2] sm:$0xff]
    %v2307 = vld [vmem:[#allocation2 + $0x8] sm:$0xff]
    %v2308 = vld [vmem:[#allocation2 + $0x10] sm:$0xff]
    %v2309 = vld [vmem:[#allocation2 + $0x18] sm:$0xff]
    %v2310 = vld [vmem:[#allocation2 + $0x20] sm:$0xff]
    %v2311 = vld [vmem:[#allocation2 + $0x28] sm:$0xff]
    %v2312 = vld [vmem:[#allocation2 + $0x30] sm:$0xff]
    %v2313 = vld [vmem:[#allocation2 + $0x38] sm:$0xff]
    %v2314 = vld [vmem:[#allocation2 + $0x40] sm:$0xff]
    %v2315 = vld [vmem:[#allocation2 + $0x48] sm:$0xff]
    %v2316 = vld [vmem:[#allocation2 + $0x50] sm:$0xff]
    %v2317 = vld [vmem:[#allocation2 + $0x58] sm:$0xff]
    %v2318 = vld [vmem:[#allocation2 + $0x60] sm:$0xff]
    %v2319 = vld [vmem:[#allocation2 + $0x68] sm:$0xff]
    %v2320 = vld [vmem:[#allocation2 + $0x70] sm:$0xff]
    %v2321 = vld [vmem:[#allocation2 + $0x78] sm:$0xff]
    %v2322 = vld [vmem:[#allocation2 + $0x80] sm:$0xff]
    %v2323 = vld [vmem:[#allocation2 + $0x88] sm:$0xff]
    %v2324 = vld [vmem:[#allocation2 + $0x90] sm:$0xff]
    %v2325 = vld [vmem:[#allocation2 + $0x98] sm:$0xff]
    %v2326 = vld [vmem:[#allocation2 + $0xa0] sm:$0xff]
    %v2327 = vld [vmem:[#allocation2 + $0xa8] sm:$0xff]
    %v2328 = vld [vmem:[#allocation2 + $0xb0] sm:$0xff]
    %v2329 = vld [vmem:[#allocation2 + $0xb8] sm:$0xff]
    %v2330 = vld [vmem:[#allocation2 + $0xc0] sm:$0xff]
    %v2331 = vld [vmem:[#allocation2 + $0xc8] sm:$0xff]
    %v2332 = vld [vmem:[#allocation2 + $0xd0] sm:$0xff]
    %v2333 = vld [vmem:[#allocation2 + $0xd8] sm:$0xff]
    %v2334 = vld [vmem:[#allocation2 + $0xe0] sm:$0xff]
    %v2335 = vld [vmem:[#allocation2 + $0xe8] sm:$0xff]
    %v2336 = vld [vmem:[#allocation2 + $0xf0] sm:$0xff]
    %v2337 = vld [vmem:[#allocation2 + $0xf8] sm:$0xff]
    %v2338 = vld [vmem:[#allocation2 + $0x100] sm:$0xff]
    %v2339 = vld [vmem:[#allocation2 + $0x108] sm:$0xff]
    %v2340 = vld [vmem:[#allocation2 + $0x110] sm:$0xff]
    %v2341 = vld [vmem:[#allocation2 + $0x118] sm:$0xff]
    %v2342 = vld [vmem:[%s7] sm:$0xff]
    %2344 = vset.pattern.permute.xlu0 0
    %2345 = vperm.xlu0 %2344, %v2342
    %v2346 = vpop.permute.xlu0 %2345
    %v2349 = vsel %vm1789, %v2305, 0
    %2351 = vmatprep.subr.mxu0 %v2307
    %2352 = vmatpush1.msra.mxu0 %v2306
    %2353 = vmatprep.subr.mxu0 %v2311
    %2354 = vmatpush1.msra.mxu0 %v2310
    %2355 = vmatprep.subr.mxu0 %v2315
    %2356 = vmatpush1.msra.mxu0 %v2314
    %2357 = vmatprep.subr.mxu0 %v2319
    %2358 = vmatpush1.msra.mxu0 %v2318
    %2359 = vmatprep.subr.mxu0 %v2323
    %2360 = vmatpush1.msra.mxu0 %v2322
    %2361 = vmatprep.subr.mxu0 %v2327
    %2362 = vmatpush1.msra.mxu0 %v2326
    %2363 = vmatprep.subr.mxu0 %v2331
    %2364 = vmatpush1.msra.mxu0 %v2330
    %2365 = vmatprep.subr.mxu0 %v2335
    %2366 = vmatpush1.msra.mxu0 %v2334
    %2367 = vmatprep.subr.mxu0 %v2339
    %2368 = vmatpush1.msra.mxu0 %v2338
    %2369 = vmatprep.subr.mxu0 0.0
    %2370 = vmatpush1.msra.mxu0 0.0
    %2371 = vmatprep.subr.mxu0 0.0
    %2372 = vmatpush1.msra.mxu0 0.0
    %2373 = vmatprep.subr.mxu0 0.0
    %2374 = vmatpush1.msra.mxu0 0.0
    %2375 = vmatprep.subr.mxu0 0.0
    %2376 = vmatpush1.msra.mxu0 0.0
    %2377 = vmatprep.subr.mxu0 0.0
    %2378 = vmatpush1.msra.mxu0 0.0
    %2379 = vmatprep.subr.mxu0 0.0
    %2380 = vmatpush1.msra.mxu0 0.0
    %2381 = vmatprep.subr.mxu0 0.0
    %2382 = vmatpush1.msra.mxu0 0.0
    %2383 = vmatprep.subr.mxu0 0.0
    %2384 = vmatpush1.msra.mxu0 0.0
    %2385 = vmatprep.subr.mxu0 0.0
    %2386 = vmatpush1.msra.mxu0 0.0
    %2387 = vmatprep.subr.mxu0 0.0
    %2388 = vmatpush1.msra.mxu0 0.0
    %2389 = vmatprep.subr.mxu0 0.0
    %2390 = vmatpush1.msra.mxu0 0.0
    %2391 = vmatprep.subr.mxu0 0.0
    %2392 = vmatpush1.msra.mxu0 0.0
    %2393 = vmatprep.subr.mxu0 0.0
    %2394 = vmatpush1.msra.mxu0 0.0
    %2395 = vmatprep.subr.mxu0 0.0
    %2396 = vmatpush1.msra.mxu0 0.0
    %2397 = vmatprep.subr.mxu0 0.0
    %2398 = vmatpush1.msra.mxu0 0.0
    %2399 = vmatprep.subr.mxu0 0.0
    %2400 = vmatpush1.msra.mxu0 0.0
    %2401 = vmatprep.subr.mxu0 0.0
    %2402 = vmatpush1.msra.mxu0 0.0
    %2403 = vmatprep.subr.mxu0 0.0
    %2404 = vmatpush1.msra.mxu0 0.0
    %2405 = vmatprep.subr.mxu0 0.0
    %2406 = vmatpush1.msra.mxu0 0.0
    %2407 = vmatprep.subr.mxu0 0.0
    %2408 = vmatpush1.msra.mxu0 0.0
    %2409 = vmatprep.subr.mxu0 0.0
    %2410 = vmatpush1.msra.mxu0 0.0
    %2411 = vmatprep.subr.mxu0 0.0
    %2412 = vmatpush1.msra.mxu0 0.0
    %2413 = vmatprep.subr.mxu0 0.0
    %2414 = vmatpush1.msra.mxu0 0.0
    %2415 = vmatprep.mubr.f32.mxu0 0.0
    %2416 = vmatmul.mubr.f32.gmra.mrb[0].mxu0 %v2349
    %v2417 = vpop.f32.mrb[0].mxu0
    %v2418 = vadd.f32 %v2346, %v2417
    %v2419 = vpop.f32.mrb[0].mxu0
    %v2420 = vadd.f32 %v2346, %v2419
    %2421 = vdwg.mxu0
    %2422 = vmatprep.subr.mxu0 %v2309
    %2423 = vmatpush1.msra.mxu0 %v2308
    %2424 = vmatprep.subr.mxu0 %v2313
    %2425 = vmatpush1.msra.mxu0 %v2312
    %2426 = vmatprep.subr.mxu0 %v2317
    %2427 = vmatpush1.msra.mxu0 %v2316
    %2428 = vmatprep.subr.mxu0 %v2321
    %2429 = vmatpush1.msra.mxu0 %v2320
    %2430 = vmatprep.subr.mxu0 %v2325
    %2431 = vmatpush1.msra.mxu0 %v2324
    %2432 = vmatprep.subr.mxu0 %v2329
    %2433 = vmatpush1.msra.mxu0 %v2328
    %2434 = vmatprep.subr.mxu0 %v2333
    %2435 = vmatpush1.msra.mxu0 %v2332
    %2436 = vmatprep.subr.mxu0 %v2337
    %2437 = vmatpush1.msra.mxu0 %v2336
    %2438 = vmatprep.subr.mxu0 %v2341
    %2439 = vmatpush1.msra.mxu0 %v2340
    %2440 = vmatprep.subr.mxu0 0.0
    %2441 = vmatpush1.msra.mxu0 0.0
    %2442 = vmatprep.subr.mxu0 0.0
    %2443 = vmatpush1.msra.mxu0 0.0
    %2444 = vmatprep.subr.mxu0 0.0
    %2445 = vmatpush1.msra.mxu0 0.0
    %2446 = vmatprep.subr.mxu0 0.0
    %2447 = vmatpush1.msra.mxu0 0.0
    %2448 = vmatprep.subr.mxu0 0.0
    %2449 = vmatpush1.msra.mxu0 0.0
    %2450 = vmatprep.subr.mxu0 0.0
    %2451 = vmatpush1.msra.mxu0 0.0
    %2452 = vmatprep.subr.mxu0 0.0
    %2453 = vmatpush1.msra.mxu0 0.0
    %2454 = vmatprep.subr.mxu0 0.0
    %2455 = vmatpush1.msra.mxu0 0.0
    %2456 = vmatprep.subr.mxu0 0.0
    %2457 = vmatpush1.msra.mxu0 0.0
    %2458 = vmatprep.subr.mxu0 0.0
    %2459 = vmatpush1.msra.mxu0 0.0
    %2460 = vmatprep.subr.mxu0 0.0
    %2461 = vmatpush1.msra.mxu0 0.0
    %2462 = vmatprep.subr.mxu0 0.0
    %2463 = vmatpush1.msra.mxu0 0.0
    %2464 = vmatprep.subr.mxu0 0.0
    %2465 = vmatpush1.msra.mxu0 0.0
    %2466 = vmatprep.subr.mxu0 0.0
    %2467 = vmatpush1.msra.mxu0 0.0
    %2468 = vmatprep.subr.mxu0 0.0
    %2469 = vmatpush1.msra.mxu0 0.0
    %2470 = vmatprep.subr.mxu0 0.0
    %2471 = vmatpush1.msra.mxu0 0.0
    %2472 = vmatprep.subr.mxu0 0.0
    %2473 = vmatpush1.msra.mxu0 0.0
    %2474 = vmatprep.subr.mxu0 0.0
    %2475 = vmatpush1.msra.mxu0 0.0
    %2476 = vmatprep.subr.mxu0 0.0
    %2477 = vmatpush1.msra.mxu0 0.0
    %2478 = vmatprep.subr.mxu0 0.0
    %2479 = vmatpush1.msra.mxu0 0.0
    %2480 = vmatprep.subr.mxu0 0.0
    %2481 = vmatpush1.msra.mxu0 0.0
    %2482 = vmatprep.subr.mxu0 0.0
    %2483 = vmatpush1.msra.mxu0 0.0
    %2484 = vmatprep.subr.mxu0 0.0
    %2485 = vmatpush1.msra.mxu0 0.0
    %2486 = vmatprep.mubr.f32.mxu0 0.0
    %2487 = vmatmul.mubr.f32.gmra.mrb[0].mxu0 %v2349
    %v2488 = vpop.f32.mrb[0].mxu0
    %v2489 = vadd.f32 %v2346, %v2488
    %v2490 = vpop.f32.mrb[0].mxu0
    %v2491 = vadd.f32 %v2346, %v2490
    %2492 = vdwg.mxu0
    %v2493 = vmax.f32 %v2418, 0.0
    %v2494 = vmax.f32 %v2420, 0.0
    %v2495 = vmax.f32 %v2489, 0.0
    %v2496 = vmax.f32 %v2491, 0.0
    %v2499 = vrot.slane %v2493, 1
    %v2500 = vrot.slane %v2494, 1
    %v2503 = vrot.slane %v2493, 2
    %v2504 = vrot.slane %v2494, 2
    %v2507 = vrot.slane %v2493, 3
    %v2508 = vrot.slane %v2494, 3
    %v2511 = vrot.slane %v2493, 4
    %v2512 = vrot.slane %v2494, 4
    %v2515 = vrot.slane %v2493, 5
    %v2516 = vrot.slane %v2494, 5
    %v2519 = vrot.slane %v2493, 6
    %v2520 = vrot.slane %v2494, 6
    %v2523 = vrot.slane %v2493, 7
    %v2524 = vrot.slane %v2494, 7
    %v2529 = vrot.slane %v2495, 1
    %v2530 = vrot.slane %v2496, 1
    %v2531 = vrot.slane %v2495, 2
    %v2532 = vrot.slane %v2496, 2
    %v2533 = vrot.slane %v2495, 3
    %v2534 = vrot.slane %v2496, 3
    %v2535 = vrot.slane %v2495, 4
    %v2536 = vrot.slane %v2496, 4
    %v2537 = vrot.slane %v2495, 5
    %v2538 = vrot.slane %v2496, 5
    %v2539 = vrot.slane %v2495, 6
    %v2540 = vrot.slane %v2496, 6
    %v2541 = vrot.slane %v2495, 7
    %v2542 = vrot.slane %v2496, 7
    %v2543 = vrot.slane %v2529, 7
    %v2544 = vrot.slane %v2530, 7
    %v2545 = vrot.slane %v2531, 7
    %v2546 = vrot.slane %v2532, 7
    %v2547 = vrot.slane %v2533, 7
    %v2548 = vrot.slane %v2534, 7
    %v2549 = vrot.slane %v2535, 7
    %v2550 = vrot.slane %v2536, 7
    %v2551 = vrot.slane %v2537, 7
    %v2552 = vrot.slane %v2538, 7
    %v2553 = vrot.slane %v2539, 7
    %v2554 = vrot.slane %v2540, 7
    %v2555 = vrot.slane %v2541, 7
    %v2556 = vrot.slane %v2542, 7
    %v2573 = vsel %vm1225, %v2493, %v2541
    %v2574 = vsel %vm1225, %v2494, %v2542
    %v2575 = vsel %vm1225, %v2499, %v2543
    %v2576 = vsel %vm1225, %v2500, %v2544
    %v2577 = vsel %vm1225, %v2503, %v2545
    %v2578 = vsel %vm1225, %v2504, %v2546
    %v2579 = vsel %vm1225, %v2507, %v2547
    %v2580 = vsel %vm1225, %v2508, %v2548
    %v2581 = vsel %vm1225, %v2511, %v2549
    %v2582 = vsel %vm1225, %v2512, %v2550
    %v2583 = vsel %vm1225, %v2515, %v2551
    %v2584 = vsel %vm1225, %v2516, %v2552
    %v2585 = vsel %vm1225, %v2519, %v2553
    %v2586 = vsel %vm1225, %v2520, %v2554
    %v2587 = vsel %vm1225, %v2523, %v2555
    %v2588 = vsel %vm1225, %v2524, %v2556
    %s2589 = smul.u32 2048, 1
    %s2590 = sshll.u32 %s2589, 4
    %2591 = dma.done [#allocation4], %s2590
    %v2592 = vld [vmem:[#allocation3] sm:$0xff]
    %v2593 = vld [vmem:[#allocation3 + $0x8] sm:$0xff]
    %v2594 = vld [vmem:[#allocation3 + $0x10] sm:$0xff]
    %v2595 = vld [vmem:[#allocation3 + $0x18] sm:$0xff]
    %v2596 = vld [vmem:[#allocation3 + $0x20] sm:$0xff]
    %v2597 = vld [vmem:[#allocation3 + $0x28] sm:$0xff]
    %v2598 = vld [vmem:[#allocation3 + $0x30] sm:$0xff]
    %v2599 = vld [vmem:[#allocation3 + $0x38] sm:$0xff]
    %v2600 = vld [vmem:[#allocation3 + $0x40] sm:$0xff]
    %v2601 = vld [vmem:[#allocation3 + $0x48] sm:$0xff]
    %v2602 = vld [vmem:[#allocation3 + $0x50] sm:$0xff]
    %v2603 = vld [vmem:[#allocation3 + $0x58] sm:$0xff]
    %v2604 = vld [vmem:[#allocation3 + $0x60] sm:$0xff]
    %v2605 = vld [vmem:[#allocation3 + $0x68] sm:$0xff]
    %v2606 = vld [vmem:[#allocation3 + $0x70] sm:$0xff]
    %v2607 = vld [vmem:[#allocation3 + $0x78] sm:$0xff]
    %v2608 = vld [vmem:[#allocation3 + $0x80] sm:$0xff]
    %v2609 = vld [vmem:[#allocation3 + $0x88] sm:$0xff]
    %v2610 = vld [vmem:[#allocation3 + $0x90] sm:$0xff]
    %v2611 = vld [vmem:[#allocation3 + $0x98] sm:$0xff]
    %v2612 = vld [vmem:[#allocation3 + $0xa0] sm:$0xff]
    %v2613 = vld [vmem:[#allocation3 + $0xa8] sm:$0xff]
    %v2614 = vld [vmem:[#allocation3 + $0xb0] sm:$0xff]
    %v2615 = vld [vmem:[#allocation3 + $0xb8] sm:$0xff]
    %v2616 = vld [vmem:[#allocation3 + $0xc0] sm:$0xff]
    %v2617 = vld [vmem:[#allocation3 + $0xc8] sm:$0xff]
    %v2618 = vld [vmem:[#allocation3 + $0xd0] sm:$0xff]
    %v2619 = vld [vmem:[#allocation3 + $0xd8] sm:$0xff]
    %v2620 = vld [vmem:[#allocation3 + $0xe0] sm:$0xff]
    %v2621 = vld [vmem:[#allocation3 + $0xe8] sm:$0xff]
    %v2622 = vld [vmem:[#allocation3 + $0xf0] sm:$0xff]
    %v2623 = vld [vmem:[#allocation3 + $0xf8] sm:$0xff]
    %v2624 = vld [vmem:[#allocation3 + $0x100] sm:$0xff]
    %v2625 = vld [vmem:[#allocation3 + $0x108] sm:$0xff]
    %v2626 = vld [vmem:[#allocation3 + $0x110] sm:$0xff]
    %v2627 = vld [vmem:[#allocation3 + $0x118] sm:$0xff]
    %v2628 = vld [vmem:[#allocation3 + $0x120] sm:$0xff]
    %v2629 = vld [vmem:[#allocation3 + $0x128] sm:$0xff]
    %v2630 = vld [vmem:[#allocation3 + $0x130] sm:$0xff]
    %v2631 = vld [vmem:[#allocation3 + $0x138] sm:$0xff]
    %v2632 = vld [vmem:[#allocation3 + $0x140] sm:$0xff]
    %v2633 = vld [vmem:[#allocation3 + $0x148] sm:$0xff]
    %v2634 = vld [vmem:[#allocation3 + $0x150] sm:$0xff]
    %v2635 = vld [vmem:[#allocation3 + $0x158] sm:$0xff]
    %v2636 = vld [vmem:[#allocation3 + $0x160] sm:$0xff]
    %v2637 = vld [vmem:[#allocation3 + $0x168] sm:$0xff]
    %v2638 = vld [vmem:[#allocation3 + $0x170] sm:$0xff]
    %v2639 = vld [vmem:[#allocation3 + $0x178] sm:$0xff]
    %v2640 = vld [vmem:[#allocation3 + $0x180] sm:$0xff]
    %v2641 = vld [vmem:[#allocation3 + $0x188] sm:$0xff]
    %v2642 = vld [vmem:[#allocation3 + $0x190] sm:$0xff]
    %v2643 = vld [vmem:[#allocation3 + $0x198] sm:$0xff]
    %v2644 = vld [vmem:[#allocation3 + $0x1a0] sm:$0xff]
    %v2645 = vld [vmem:[#allocation3 + $0x1a8] sm:$0xff]
    %v2646 = vld [vmem:[#allocation3 + $0x1b0] sm:$0xff]
    %v2647 = vld [vmem:[#allocation3 + $0x1b8] sm:$0xff]
    %v2648 = vld [vmem:[#allocation3 + $0x1c0] sm:$0xff]
    %v2649 = vld [vmem:[#allocation3 + $0x1c8] sm:$0xff]
    %v2650 = vld [vmem:[#allocation3 + $0x1d0] sm:$0xff]
    %v2651 = vld [vmem:[#allocation3 + $0x1d8] sm:$0xff]
    %v2652 = vld [vmem:[#allocation3 + $0x1e0] sm:$0xff]
    %v2653 = vld [vmem:[#allocation3 + $0x1e8] sm:$0xff]
    %v2654 = vld [vmem:[#allocation3 + $0x1f0] sm:$0xff]
    %v2655 = vld [vmem:[#allocation3 + $0x1f8] sm:$0xff]
    %v2656 = vld [vmem:[#allocation3 + $0x200] sm:$0xff]
    %v2657 = vld [vmem:[#allocation3 + $0x208] sm:$0xff]
    %v2658 = vld [vmem:[#allocation3 + $0x210] sm:$0xff]
    %v2659 = vld [vmem:[#allocation3 + $0x218] sm:$0xff]
    %v2660 = vld [vmem:[#allocation3 + $0x220] sm:$0xff]
    %v2661 = vld [vmem:[#allocation3 + $0x228] sm:$0xff]
    %v2662 = vld [vmem:[#allocation3 + $0x230] sm:$0xff]
    %v2663 = vld [vmem:[#allocation3 + $0x238] sm:$0xff]
    %v2664 = vld [vmem:[#allocation3 + $0x240] sm:$0xff]
    %v2665 = vld [vmem:[#allocation3 + $0x248] sm:$0xff]
    %v2666 = vld [vmem:[#allocation3 + $0x250] sm:$0xff]
    %v2667 = vld [vmem:[#allocation3 + $0x258] sm:$0xff]
    %v2668 = vld [vmem:[#allocation3 + $0x260] sm:$0xff]
    %v2669 = vld [vmem:[#allocation3 + $0x268] sm:$0xff]
    %v2670 = vld [vmem:[#allocation3 + $0x270] sm:$0xff]
    %v2671 = vld [vmem:[#allocation3 + $0x278] sm:$0xff]
    %v2672 = vld [vmem:[#allocation3 + $0x280] sm:$0xff]
    %v2673 = vld [vmem:[#allocation3 + $0x288] sm:$0xff]
    %v2674 = vld [vmem:[#allocation3 + $0x290] sm:$0xff]
    %v2675 = vld [vmem:[#allocation3 + $0x298] sm:$0xff]
    %v2676 = vld [vmem:[#allocation3 + $0x2a0] sm:$0xff]
    %v2677 = vld [vmem:[#allocation3 + $0x2a8] sm:$0xff]
    %v2678 = vld [vmem:[#allocation3 + $0x2b0] sm:$0xff]
    %v2679 = vld [vmem:[#allocation3 + $0x2b8] sm:$0xff]
    %v2680 = vld [vmem:[#allocation3 + $0x2c0] sm:$0xff]
    %v2681 = vld [vmem:[#allocation3 + $0x2c8] sm:$0xff]
    %v2682 = vld [vmem:[#allocation3 + $0x2d0] sm:$0xff]
    %v2683 = vld [vmem:[#allocation3 + $0x2d8] sm:$0xff]
    %v2684 = vld [vmem:[#allocation3 + $0x2e0] sm:$0xff]
    %v2685 = vld [vmem:[#allocation3 + $0x2e8] sm:$0xff]
    %v2686 = vld [vmem:[#allocation3 + $0x2f0] sm:$0xff]
    %v2687 = vld [vmem:[#allocation3 + $0x2f8] sm:$0xff]
    %v2688 = vld [vmem:[#allocation3 + $0x300] sm:$0xff]
    %v2689 = vld [vmem:[#allocation3 + $0x308] sm:$0xff]
    %v2690 = vld [vmem:[#allocation3 + $0x310] sm:$0xff]
    %v2691 = vld [vmem:[#allocation3 + $0x318] sm:$0xff]
    %v2692 = vld [vmem:[#allocation3 + $0x320] sm:$0xff]
    %v2693 = vld [vmem:[#allocation3 + $0x328] sm:$0xff]
    %v2694 = vld [vmem:[#allocation3 + $0x330] sm:$0xff]
    %v2695 = vld [vmem:[#allocation3 + $0x338] sm:$0xff]
    %v2696 = vld [vmem:[#allocation3 + $0x340] sm:$0xff]
    %v2697 = vld [vmem:[#allocation3 + $0x348] sm:$0xff]
    %v2698 = vld [vmem:[#allocation3 + $0x350] sm:$0xff]
    %v2699 = vld [vmem:[#allocation3 + $0x358] sm:$0xff]
    %v2700 = vld [vmem:[#allocation3 + $0x360] sm:$0xff]
    %v2701 = vld [vmem:[#allocation3 + $0x368] sm:$0xff]
    %v2702 = vld [vmem:[#allocation3 + $0x370] sm:$0xff]
    %v2703 = vld [vmem:[#allocation3 + $0x378] sm:$0xff]
    %v2704 = vld [vmem:[#allocation3 + $0x380] sm:$0xff]
    %v2705 = vld [vmem:[#allocation3 + $0x388] sm:$0xff]
    %v2706 = vld [vmem:[#allocation3 + $0x390] sm:$0xff]
    %v2707 = vld [vmem:[#allocation3 + $0x398] sm:$0xff]
    %v2708 = vld [vmem:[#allocation3 + $0x3a0] sm:$0xff]
    %v2709 = vld [vmem:[#allocation3 + $0x3a8] sm:$0xff]
    %v2710 = vld [vmem:[#allocation3 + $0x3b0] sm:$0xff]
    %v2711 = vld [vmem:[#allocation3 + $0x3b8] sm:$0xff]
    %v2712 = vld [vmem:[#allocation3 + $0x3c0] sm:$0xff]
    %v2713 = vld [vmem:[#allocation3 + $0x3c8] sm:$0xff]
    %v2714 = vld [vmem:[#allocation3 + $0x3d0] sm:$0xff]
    %v2715 = vld [vmem:[#allocation3 + $0x3d8] sm:$0xff]
    %v2716 = vld [vmem:[#allocation3 + $0x3e0] sm:$0xff]
    %v2717 = vld [vmem:[#allocation3 + $0x3e8] sm:$0xff]
    %v2718 = vld [vmem:[#allocation3 + $0x3f0] sm:$0xff]
    %v2719 = vld [vmem:[#allocation3 + $0x3f8] sm:$0xff]
    %v2720 = vld [vmem:[#allocation3 + $0x400] sm:$0xff]
    %v2721 = vld [vmem:[#allocation3 + $0x408] sm:$0xff]
    %v2722 = vld [vmem:[#allocation3 + $0x410] sm:$0xff]
    %v2723 = vld [vmem:[#allocation3 + $0x418] sm:$0xff]
    %v2724 = vld [vmem:[#allocation3 + $0x420] sm:$0xff]
    %v2725 = vld [vmem:[#allocation3 + $0x428] sm:$0xff]
    %v2726 = vld [vmem:[#allocation3 + $0x430] sm:$0xff]
    %v2727 = vld [vmem:[#allocation3 + $0x438] sm:$0xff]
    %v2728 = vld [vmem:[#allocation3 + $0x440] sm:$0xff]
    %v2729 = vld [vmem:[#allocation3 + $0x448] sm:$0xff]
    %v2730 = vld [vmem:[#allocation3 + $0x450] sm:$0xff]
    %v2731 = vld [vmem:[#allocation3 + $0x458] sm:$0xff]
    %v2732 = vld [vmem:[#allocation3 + $0x460] sm:$0xff]
    %v2733 = vld [vmem:[#allocation3 + $0x468] sm:$0xff]
    %v2734 = vld [vmem:[#allocation3 + $0x470] sm:$0xff]
    %v2735 = vld [vmem:[#allocation3 + $0x478] sm:$0xff]
    %v2736 = vld [vmem:[#allocation3 + $0x480] sm:$0xff]
    %v2737 = vld [vmem:[#allocation3 + $0x488] sm:$0xff]
    %v2738 = vld [vmem:[#allocation3 + $0x490] sm:$0xff]
    %v2739 = vld [vmem:[#allocation3 + $0x498] sm:$0xff]
    %v2740 = vld [vmem:[#allocation3 + $0x4a0] sm:$0xff]
    %v2741 = vld [vmem:[#allocation3 + $0x4a8] sm:$0xff]
    %v2742 = vld [vmem:[#allocation3 + $0x4b0] sm:$0xff]
    %v2743 = vld [vmem:[#allocation3 + $0x4b8] sm:$0xff]
    %v2744 = vld [vmem:[#allocation3 + $0x4c0] sm:$0xff]
    %v2745 = vld [vmem:[#allocation3 + $0x4c8] sm:$0xff]
    %v2746 = vld [vmem:[#allocation3 + $0x4d0] sm:$0xff]
    %v2747 = vld [vmem:[#allocation3 + $0x4d8] sm:$0xff]
    %v2748 = vld [vmem:[#allocation3 + $0x4e0] sm:$0xff]
    %v2749 = vld [vmem:[#allocation3 + $0x4e8] sm:$0xff]
    %v2750 = vld [vmem:[#allocation3 + $0x4f0] sm:$0xff]
    %v2751 = vld [vmem:[#allocation3 + $0x4f8] sm:$0xff]
    %v2752 = vld [vmem:[#allocation3 + $0x500] sm:$0xff]
    %v2753 = vld [vmem:[#allocation3 + $0x508] sm:$0xff]
    %v2754 = vld [vmem:[#allocation3 + $0x510] sm:$0xff]
    %v2755 = vld [vmem:[#allocation3 + $0x518] sm:$0xff]
    %v2756 = vld [vmem:[#allocation3 + $0x520] sm:$0xff]
    %v2757 = vld [vmem:[#allocation3 + $0x528] sm:$0xff]
    %v2758 = vld [vmem:[#allocation3 + $0x530] sm:$0xff]
    %v2759 = vld [vmem:[#allocation3 + $0x538] sm:$0xff]
    %v2760 = vld [vmem:[#allocation3 + $0x540] sm:$0xff]
    %v2761 = vld [vmem:[#allocation3 + $0x548] sm:$0xff]
    %v2762 = vld [vmem:[#allocation3 + $0x550] sm:$0xff]
    %v2763 = vld [vmem:[#allocation3 + $0x558] sm:$0xff]
    %v2764 = vld [vmem:[#allocation3 + $0x560] sm:$0xff]
    %v2765 = vld [vmem:[#allocation3 + $0x568] sm:$0xff]
    %v2766 = vld [vmem:[#allocation3 + $0x570] sm:$0xff]
    %v2767 = vld [vmem:[#allocation3 + $0x578] sm:$0xff]
    %v2768 = vld [vmem:[#allocation3 + $0x580] sm:$0xff]
    %v2769 = vld [vmem:[#allocation3 + $0x588] sm:$0xff]
    %v2770 = vld [vmem:[#allocation3 + $0x590] sm:$0xff]
    %v2771 = vld [vmem:[#allocation3 + $0x598] sm:$0xff]
    %v2772 = vld [vmem:[#allocation3 + $0x5a0] sm:$0xff]
    %v2773 = vld [vmem:[#allocation3 + $0x5a8] sm:$0xff]
    %v2774 = vld [vmem:[#allocation3 + $0x5b0] sm:$0xff]
    %v2775 = vld [vmem:[#allocation3 + $0x5b8] sm:$0xff]
    %v2776 = vld [vmem:[#allocation3 + $0x5c0] sm:$0xff]
    %v2777 = vld [vmem:[#allocation3 + $0x5c8] sm:$0xff]
    %v2778 = vld [vmem:[#allocation3 + $0x5d0] sm:$0xff]
    %v2779 = vld [vmem:[#allocation3 + $0x5d8] sm:$0xff]
    %v2780 = vld [vmem:[#allocation3 + $0x5e0] sm:$0xff]
    %v2781 = vld [vmem:[#allocation3 + $0x5e8] sm:$0xff]
    %v2782 = vld [vmem:[#allocation3 + $0x5f0] sm:$0xff]
    %v2783 = vld [vmem:[#allocation3 + $0x5f8] sm:$0xff]
    %v2784 = vld [vmem:[#allocation3 + $0x600] sm:$0xff]
    %v2785 = vld [vmem:[#allocation3 + $0x608] sm:$0xff]
    %v2786 = vld [vmem:[#allocation3 + $0x610] sm:$0xff]
    %v2787 = vld [vmem:[#allocation3 + $0x618] sm:$0xff]
    %v2788 = vld [vmem:[#allocation3 + $0x620] sm:$0xff]
    %v2789 = vld [vmem:[#allocation3 + $0x628] sm:$0xff]
    %v2790 = vld [vmem:[#allocation3 + $0x630] sm:$0xff]
    %v2791 = vld [vmem:[#allocation3 + $0x638] sm:$0xff]
    %v2792 = vld [vmem:[#allocation3 + $0x640] sm:$0xff]
    %v2793 = vld [vmem:[#allocation3 + $0x648] sm:$0xff]
    %v2794 = vld [vmem:[#allocation3 + $0x650] sm:$0xff]
    %v2795 = vld [vmem:[#allocation3 + $0x658] sm:$0xff]
    %v2796 = vld [vmem:[#allocation3 + $0x660] sm:$0xff]
    %v2797 = vld [vmem:[#allocation3 + $0x668] sm:$0xff]
    %v2798 = vld [vmem:[#allocation3 + $0x670] sm:$0xff]
    %v2799 = vld [vmem:[#allocation3 + $0x678] sm:$0xff]
    %v2800 = vld [vmem:[#allocation3 + $0x680] sm:$0xff]
    %v2801 = vld [vmem:[#allocation3 + $0x688] sm:$0xff]
    %v2802 = vld [vmem:[#allocation3 + $0x690] sm:$0xff]
    %v2803 = vld [vmem:[#allocation3 + $0x698] sm:$0xff]
    %v2804 = vld [vmem:[#allocation3 + $0x6a0] sm:$0xff]
    %v2805 = vld [vmem:[#allocation3 + $0x6a8] sm:$0xff]
    %v2806 = vld [vmem:[#allocation3 + $0x6b0] sm:$0xff]
    %v2807 = vld [vmem:[#allocation3 + $0x6b8] sm:$0xff]
    %v2808 = vld [vmem:[#allocation3 + $0x6c0] sm:$0xff]
    %v2809 = vld [vmem:[#allocation3 + $0x6c8] sm:$0xff]
    %v2810 = vld [vmem:[#allocation3 + $0x6d0] sm:$0xff]
    %v2811 = vld [vmem:[#allocation3 + $0x6d8] sm:$0xff]
    %v2812 = vld [vmem:[#allocation3 + $0x6e0] sm:$0xff]
    %v2813 = vld [vmem:[#allocation3 + $0x6e8] sm:$0xff]
    %v2814 = vld [vmem:[#allocation3 + $0x6f0] sm:$0xff]
    %v2815 = vld [vmem:[#allocation3 + $0x6f8] sm:$0xff]
    %v2816 = vld [vmem:[#allocation3 + $0x700] sm:$0xff]
    %v2817 = vld [vmem:[#allocation3 + $0x708] sm:$0xff]
    %v2818 = vld [vmem:[#allocation3 + $0x710] sm:$0xff]
    %v2819 = vld [vmem:[#allocation3 + $0x718] sm:$0xff]
    %v2820 = vld [vmem:[#allocation3 + $0x720] sm:$0xff]
    %v2821 = vld [vmem:[#allocation3 + $0x728] sm:$0xff]
    %v2822 = vld [vmem:[#allocation3 + $0x730] sm:$0xff]
    %v2823 = vld [vmem:[#allocation3 + $0x738] sm:$0xff]
    %v2824 = vld [vmem:[#allocation3 + $0x740] sm:$0xff]
    %v2825 = vld [vmem:[#allocation3 + $0x748] sm:$0xff]
    %v2826 = vld [vmem:[#allocation3 + $0x750] sm:$0xff]
    %v2827 = vld [vmem:[#allocation3 + $0x758] sm:$0xff]
    %v2828 = vld [vmem:[#allocation3 + $0x760] sm:$0xff]
    %v2829 = vld [vmem:[#allocation3 + $0x768] sm:$0xff]
    %v2830 = vld [vmem:[#allocation3 + $0x770] sm:$0xff]
    %v2831 = vld [vmem:[#allocation3 + $0x778] sm:$0xff]
    %v2832 = vld [vmem:[#allocation3 + $0x780] sm:$0xff]
    %v2833 = vld [vmem:[#allocation3 + $0x788] sm:$0xff]
    %v2834 = vld [vmem:[#allocation3 + $0x790] sm:$0xff]
    %v2835 = vld [vmem:[#allocation3 + $0x798] sm:$0xff]
    %v2836 = vld [vmem:[#allocation3 + $0x7a0] sm:$0xff]
    %v2837 = vld [vmem:[#allocation3 + $0x7a8] sm:$0xff]
    %v2838 = vld [vmem:[#allocation3 + $0x7b0] sm:$0xff]
    %v2839 = vld [vmem:[#allocation3 + $0x7b8] sm:$0xff]
    %v2840 = vld [vmem:[#allocation3 + $0x7c0] sm:$0xff]
    %v2841 = vld [vmem:[#allocation3 + $0x7c8] sm:$0xff]
    %v2842 = vld [vmem:[#allocation3 + $0x7d0] sm:$0xff]
    %v2843 = vld [vmem:[#allocation3 + $0x7d8] sm:$0xff]
    %v2844 = vld [vmem:[#allocation3 + $0x7e0] sm:$0xff]
    %v2845 = vld [vmem:[#allocation3 + $0x7e8] sm:$0xff]
    %v2846 = vld [vmem:[#allocation3 + $0x7f0] sm:$0xff]
    %v2847 = vld [vmem:[#allocation3 + $0x7f8] sm:$0xff]
    %v2848 = vld [vmem:[%s9] sm:$0x1]
    %v2850 = vlaneseq
    %v2851 = vshrl.u32 %v2850, 7
    %v2852 = vsub.s32 0, %v2851
    %v2853 = vrot.slane %v2848, %v2852
    %2855 = vmatprep.subr.mxu0 0.0
    %2856 = vmatpush1.msra.mxu0 %v2592
    %2857 = vmatprep.subr.mxu0 0.0
    %2858 = vmatpush1.msra.mxu0 %v2593
    %2859 = vmatprep.subr.mxu0 0.0
    %2860 = vmatpush1.msra.mxu0 %v2594
    %2861 = vmatprep.subr.mxu0 0.0
    %2862 = vmatpush1.msra.mxu0 %v2595
    %2863 = vmatprep.subr.mxu0 0.0
    %2864 = vmatpush1.msra.mxu0 %v2596
    %2865 = vmatprep.subr.mxu0 0.0
    %2866 = vmatpush1.msra.mxu0 %v2597
    %2867 = vmatprep.subr.mxu0 0.0
    %2868 = vmatpush1.msra.mxu0 %v2598
    %2869 = vmatprep.subr.mxu0 0.0
    %2870 = vmatpush1.msra.mxu0 %v2599
    %2871 = vmatprep.subr.mxu0 0.0
    %2872 = vmatpush1.msra.mxu0 %v2600
    %2873 = vmatprep.subr.mxu0 0.0
    %2874 = vmatpush1.msra.mxu0 %v2601
    %2875 = vmatprep.subr.mxu0 0.0
    %2876 = vmatpush1.msra.mxu0 %v2602
    %2877 = vmatprep.subr.mxu0 0.0
    %2878 = vmatpush1.msra.mxu0 %v2603
    %2879 = vmatprep.subr.mxu0 0.0
    %2880 = vmatpush1.msra.mxu0 %v2604
    %2881 = vmatprep.subr.mxu0 0.0
    %2882 = vmatpush1.msra.mxu0 %v2605
    %2883 = vmatprep.subr.mxu0 0.0
    %2884 = vmatpush1.msra.mxu0 %v2606
    %2885 = vmatprep.subr.mxu0 0.0
    %2886 = vmatpush1.msra.mxu0 %v2607
    %2887 = vmatprep.subr.mxu0 0.0
    %2888 = vmatpush1.msra.mxu0 %v2608
    %2889 = vmatprep.subr.mxu0 0.0
    %2890 = vmatpush1.msra.mxu0 %v2609
    %2891 = vmatprep.subr.mxu0 0.0
    %2892 = vmatpush1.msra.mxu0 %v2610
    %2893 = vmatprep.subr.mxu0 0.0
    %2894 = vmatpush1.msra.mxu0 %v2611
    %2895 = vmatprep.subr.mxu0 0.0
    %2896 = vmatpush1.msra.mxu0 %v2612
    %2897 = vmatprep.subr.mxu0 0.0
    %2898 = vmatpush1.msra.mxu0 %v2613
    %2899 = vmatprep.subr.mxu0 0.0
    %2900 = vmatpush1.msra.mxu0 %v2614
    %2901 = vmatprep.subr.mxu0 0.0
    %2902 = vmatpush1.msra.mxu0 %v2615
    %2903 = vmatprep.subr.mxu0 0.0
    %2904 = vmatpush1.msra.mxu0 %v2616
    %2905 = vmatprep.subr.mxu0 0.0
    %2906 = vmatpush1.msra.mxu0 %v2617
    %2907 = vmatprep.subr.mxu0 0.0
    %2908 = vmatpush1.msra.mxu0 %v2618
    %2909 = vmatprep.subr.mxu0 0.0
    %2910 = vmatpush1.msra.mxu0 %v2619
    %2911 = vmatprep.subr.mxu0 0.0
    %2912 = vmatpush1.msra.mxu0 %v2620
    %2913 = vmatprep.subr.mxu0 0.0
    %2914 = vmatpush1.msra.mxu0 %v2621
    %2915 = vmatprep.subr.mxu0 0.0
    %2916 = vmatpush1.msra.mxu0 %v2622
    %2917 = vmatprep.subr.mxu0 0.0
    %2918 = vmatpush1.msra.mxu0 %v2623
    %2919 = vmatprep.mubr.f32.mxu0 %v2574
    %2920 = vmatmul.mubr.f32.gmra.mrb[0].mxu0 %v2573
    %v2921 = vpop.f32.mrb[0].mxu0
    %v2922 = vadd.f32 %v2853, %v2921
    %v2923 = vpop.f32.mrb[0].mxu0
    %2924 = vdwg.mxu0
    %2925 = vmatprep.subr.mxu0 0.0
    %2926 = vmatpush1.msra.mxu0 %v2624
    %2927 = vmatprep.subr.mxu0 0.0
    %2928 = vmatpush1.msra.mxu0 %v2625
    %2929 = vmatprep.subr.mxu0 0.0
    %2930 = vmatpush1.msra.mxu0 %v2626
    %2931 = vmatprep.subr.mxu0 0.0
    %2932 = vmatpush1.msra.mxu0 %v2627
    %2933 = vmatprep.subr.mxu0 0.0
    %2934 = vmatpush1.msra.mxu0 %v2628
    %2935 = vmatprep.subr.mxu0 0.0
    %2936 = vmatpush1.msra.mxu0 %v2629
    %2937 = vmatprep.subr.mxu0 0.0
    %2938 = vmatpush1.msra.mxu0 %v2630
    %2939 = vmatprep.subr.mxu0 0.0
    %2940 = vmatpush1.msra.mxu0 %v2631
    %2941 = vmatprep.subr.mxu0 0.0
    %2942 = vmatpush1.msra.mxu0 %v2632
    %2943 = vmatprep.subr.mxu0 0.0
    %2944 = vmatpush1.msra.mxu0 %v2633
    %2945 = vmatprep.subr.mxu0 0.0
    %2946 = vmatpush1.msra.mxu0 %v2634
    %2947 = vmatprep.subr.mxu0 0.0
    %2948 = vmatpush1.msra.mxu0 %v2635
    %2949 = vmatprep.subr.mxu0 0.0
    %2950 = vmatpush1.msra.mxu0 %v2636
    %2951 = vmatprep.subr.mxu0 0.0
    %2952 = vmatpush1.msra.mxu0 %v2637
    %2953 = vmatprep.subr.mxu0 0.0
    %2954 = vmatpush1.msra.mxu0 %v2638
    %2955 = vmatprep.subr.mxu0 0.0
    %2956 = vmatpush1.msra.mxu0 %v2639
    %2957 = vmatprep.subr.mxu0 0.0
    %2958 = vmatpush1.msra.mxu0 %v2640
    %2959 = vmatprep.subr.mxu0 0.0
    %2960 = vmatpush1.msra.mxu0 %v2641
    %2961 = vmatprep.subr.mxu0 0.0
    %2962 = vmatpush1.msra.mxu0 %v2642
    %2963 = vmatprep.subr.mxu0 0.0
    %2964 = vmatpush1.msra.mxu0 %v2643
    %2965 = vmatprep.subr.mxu0 0.0
    %2966 = vmatpush1.msra.mxu0 %v2644
    %2967 = vmatprep.subr.mxu0 0.0
    %2968 = vmatpush1.msra.mxu0 %v2645
    %2969 = vmatprep.subr.mxu0 0.0
    %2970 = vmatpush1.msra.mxu0 %v2646
    %2971 = vmatprep.subr.mxu0 0.0
    %2972 = vmatpush1.msra.mxu0 %v2647
    %2973 = vmatprep.subr.mxu0 0.0
    %2974 = vmatpush1.msra.mxu0 %v2648
    %2975 = vmatprep.subr.mxu0 0.0
    %2976 = vmatpush1.msra.mxu0 %v2649
    %2977 = vmatprep.subr.mxu0 0.0
    %2978 = vmatpush1.msra.mxu0 %v2650
    %2979 = vmatprep.subr.mxu0 0.0
    %2980 = vmatpush1.msra.mxu0 %v2651
    %2981 = vmatprep.subr.mxu0 0.0
    %2982 = vmatpush1.msra.mxu0 %v2652
    %2983 = vmatprep.subr.mxu0 0.0
    %2984 = vmatpush1.msra.mxu0 %v2653
    %2985 = vmatprep.subr.mxu0 0.0
    %2986 = vmatpush1.msra.mxu0 %v2654
    %2987 = vmatprep.subr.mxu0 0.0
    %2988 = vmatpush1.msra.mxu0 %v2655
    %2989 = vmatprep.mubr.f32.mxu0 %v2576
    %2990 = vmatmul.mubr.f32.gmra.mrb[0].mxu0 %v2575
    %v2991 = vpop.f32.mrb[0].mxu0
    %v2992 = vadd.f32 %v2922, %v2991
    %v2993 = vpop.f32.mrb[0].mxu0
    %2994 = vdwg.mxu0
    %2995 = vmatprep.subr.mxu0 0.0
    %2996 = vmatpush1.msra.mxu0 %v2656
    %2997 = vmatprep.subr.mxu0 0.0
    %2998 = vmatpush1.msra.mxu0 %v2657
    %2999 = vmatprep.subr.mxu0 0.0
    %3000 = vmatpush1.msra.mxu0 %v2658
    %3001 = vmatprep.subr.mxu0 0.0
    %3002 = vmatpush1.msra.mxu0 %v2659
    %3003 = vmatprep.subr.mxu0 0.0
    %3004 = vmatpush1.msra.mxu0 %v2660
    %3005 = vmatprep.subr.mxu0 0.0
    %3006 = vmatpush1.msra.mxu0 %v2661
    %3007 = vmatprep.subr.mxu0 0.0
    %3008 = vmatpush1.msra.mxu0 %v2662
    %3009 = vmatprep.subr.mxu0 0.0
    %3010 = vmatpush1.msra.mxu0 %v2663
    %3011 = vmatprep.subr.mxu0 0.0
    %3012 = vmatpush1.msra.mxu0 %v2664
    %3013 = vmatprep.subr.mxu0 0.0
    %3014 = vmatpush1.msra.mxu0 %v2665
    %3015 = vmatprep.subr.mxu0 0.0
    %3016 = vmatpush1.msra.mxu0 %v2666
    %3017 = vmatprep.subr.mxu0 0.0
    %3018 = vmatpush1.msra.mxu0 %v2667
    %3019 = vmatprep.subr.mxu0 0.0
    %3020 = vmatpush1.msra.mxu0 %v2668
    %3021 = vmatprep.subr.mxu0 0.0
    %3022 = vmatpush1.msra.mxu0 %v2669
    %3023 = vmatprep.subr.mxu0 0.0
    %3024 = vmatpush1.msra.mxu0 %v2670
    %3025 = vmatprep.subr.mxu0 0.0
    %3026 = vmatpush1.msra.mxu0 %v2671
    %3027 = vmatprep.subr.mxu0 0.0
    %3028 = vmatpush1.msra.mxu0 %v2672
    %3029 = vmatprep.subr.mxu0 0.0
    %3030 = vmatpush1.msra.mxu0 %v2673
    %3031 = vmatprep.subr.mxu0 0.0
    %3032 = vmatpush1.msra.mxu0 %v2674
    %3033 = vmatprep.subr.mxu0 0.0
    %3034 = vmatpush1.msra.mxu0 %v2675
    %3035 = vmatprep.subr.mxu0 0.0
    %3036 = vmatpush1.msra.mxu0 %v2676
    %3037 = vmatprep.subr.mxu0 0.0
    %3038 = vmatpush1.msra.mxu0 %v2677
    %3039 = vmatprep.subr.mxu0 0.0
    %3040 = vmatpush1.msra.mxu0 %v2678
    %3041 = vmatprep.subr.mxu0 0.0
    %3042 = vmatpush1.msra.mxu0 %v2679
    %3043 = vmatprep.subr.mxu0 0.0
    %3044 = vmatpush1.msra.mxu0 %v2680
    %3045 = vmatprep.subr.mxu0 0.0
    %3046 = vmatpush1.msra.mxu0 %v2681
    %3047 = vmatprep.subr.mxu0 0.0
    %3048 = vmatpush1.msra.mxu0 %v2682
    %3049 = vmatprep.subr.mxu0 0.0
    %3050 = vmatpush1.msra.mxu0 %v2683
    %3051 = vmatprep.subr.mxu0 0.0
    %3052 = vmatpush1.msra.mxu0 %v2684
    %3053 = vmatprep.subr.mxu0 0.0
    %3054 = vmatpush1.msra.mxu0 %v2685
    %3055 = vmatprep.subr.mxu0 0.0
    %3056 = vmatpush1.msra.mxu0 %v2686
    %3057 = vmatprep.subr.mxu0 0.0
    %3058 = vmatpush1.msra.mxu0 %v2687
    %3059 = vmatprep.mubr.f32.mxu0 %v2578
    %3060 = vmatmul.mubr.f32.gmra.mrb[0].mxu0 %v2577
    %v3061 = vpop.f32.mrb[0].mxu0
    %v3062 = vadd.f32 %v2992, %v3061
    %v3063 = vpop.f32.mrb[0].mxu0
    %3064 = vdwg.mxu0
    %3065 = vmatprep.subr.mxu0 0.0
    %3066 = vmatpush1.msra.mxu0 %v2688
    %3067 = vmatprep.subr.mxu0 0.0
    %3068 = vmatpush1.msra.mxu0 %v2689
    %3069 = vmatprep.subr.mxu0 0.0
    %3070 = vmatpush1.msra.mxu0 %v2690
    %3071 = vmatprep.subr.mxu0 0.0
    %3072 = vmatpush1.msra.mxu0 %v2691
    %3073 = vmatprep.subr.mxu0 0.0
    %3074 = vmatpush1.msra.mxu0 %v2692
    %3075 = vmatprep.subr.mxu0 0.0
    %3076 = vmatpush1.msra.mxu0 %v2693
    %3077 = vmatprep.subr.mxu0 0.0
    %3078 = vmatpush1.msra.mxu0 %v2694
    %3079 = vmatprep.subr.mxu0 0.0
    %3080 = vmatpush1.msra.mxu0 %v2695
    %3081 = vmatprep.subr.mxu0 0.0
    %3082 = vmatpush1.msra.mxu0 %v2696
    %3083 = vmatprep.subr.mxu0 0.0
    %3084 = vmatpush1.msra.mxu0 %v2697
    %3085 = vmatprep.subr.mxu0 0.0
    %3086 = vmatpush1.msra.mxu0 %v2698
    %3087 = vmatprep.subr.mxu0 0.0
    %3088 = vmatpush1.msra.mxu0 %v2699
    %3089 = vmatprep.subr.mxu0 0.0
    %3090 = vmatpush1.msra.mxu0 %v2700
    %3091 = vmatprep.subr.mxu0 0.0
    %3092 = vmatpush1.msra.mxu0 %v2701
    %3093 = vmatprep.subr.mxu0 0.0
    %3094 = vmatpush1.msra.mxu0 %v2702
    %3095 = vmatprep.subr.mxu0 0.0
    %3096 = vmatpush1.msra.mxu0 %v2703
    %3097 = vmatprep.subr.mxu0 0.0
    %3098 = vmatpush1.msra.mxu0 %v2704
    %3099 = vmatprep.subr.mxu0 0.0
    %3100 = vmatpush1.msra.mxu0 %v2705
    %3101 = vmatprep.subr.mxu0 0.0
    %3102 = vmatpush1.msra.mxu0 %v2706
    %3103 = vmatprep.subr.mxu0 0.0
    %3104 = vmatpush1.msra.mxu0 %v2707
    %3105 = vmatprep.subr.mxu0 0.0
    %3106 = vmatpush1.msra.mxu0 %v2708
    %3107 = vmatprep.subr.mxu0 0.0
    %3108 = vmatpush1.msra.mxu0 %v2709
    %3109 = vmatprep.subr.mxu0 0.0
    %3110 = vmatpush1.msra.mxu0 %v2710
    %3111 = vmatprep.subr.mxu0 0.0
    %3112 = vmatpush1.msra.mxu0 %v2711
    %3113 = vmatprep.subr.mxu0 0.0
    %3114 = vmatpush1.msra.mxu0 %v2712
    %3115 = vmatprep.subr.mxu0 0.0
    %3116 = vmatpush1.msra.mxu0 %v2713
    %3117 = vmatprep.subr.mxu0 0.0
    %3118 = vmatpush1.msra.mxu0 %v2714
    %3119 = vmatprep.subr.mxu0 0.0
    %3120 = vmatpush1.msra.mxu0 %v2715
    %3121 = vmatprep.subr.mxu0 0.0
    %3122 = vmatpush1.msra.mxu0 %v2716
    %3123 = vmatprep.subr.mxu0 0.0
    %3124 = vmatpush1.msra.mxu0 %v2717
    %3125 = vmatprep.subr.mxu0 0.0
    %3126 = vmatpush1.msra.mxu0 %v2718
    %3127 = vmatprep.subr.mxu0 0.0
    %3128 = vmatpush1.msra.mxu0 %v2719
    %3129 = vmatprep.mubr.f32.mxu0 %v2580
    %3130 = vmatmul.mubr.f32.gmra.mrb[0].mxu0 %v2579
    %v3131 = vpop.f32.mrb[0].mxu0
    %v3132 = vadd.f32 %v3062, %v3131
    %v3133 = vpop.f32.mrb[0].mxu0
    %3134 = vdwg.mxu0
    %3135 = vmatprep.subr.mxu0 0.0
    %3136 = vmatpush1.msra.mxu0 %v2720
    %3137 = vmatprep.subr.mxu0 0.0
    %3138 = vmatpush1.msra.mxu0 %v2721
    %3139 = vmatprep.subr.mxu0 0.0
    %3140 = vmatpush1.msra.mxu0 %v2722
    %3141 = vmatprep.subr.mxu0 0.0
    %3142 = vmatpush1.msra.mxu0 %v2723
    %3143 = vmatprep.subr.mxu0 0.0
    %3144 = vmatpush1.msra.mxu0 %v2724
    %3145 = vmatprep.subr.mxu0 0.0
    %3146 = vmatpush1.msra.mxu0 %v2725
    %3147 = vmatprep.subr.mxu0 0.0
    %3148 = vmatpush1.msra.mxu0 %v2726
    %3149 = vmatprep.subr.mxu0 0.0
    %3150 = vmatpush1.msra.mxu0 %v2727
    %3151 = vmatprep.subr.mxu0 0.0
    %3152 = vmatpush1.msra.mxu0 %v2728
    %3153 = vmatprep.subr.mxu0 0.0
    %3154 = vmatpush1.msra.mxu0 %v2729
    %3155 = vmatprep.subr.mxu0 0.0
    %3156 = vmatpush1.msra.mxu0 %v2730
    %3157 = vmatprep.subr.mxu0 0.0
    %3158 = vmatpush1.msra.mxu0 %v2731
    %3159 = vmatprep.subr.mxu0 0.0
    %3160 = vmatpush1.msra.mxu0 %v2732
    %3161 = vmatprep.subr.mxu0 0.0
    %3162 = vmatpush1.msra.mxu0 %v2733
    %3163 = vmatprep.subr.mxu0 0.0
    %3164 = vmatpush1.msra.mxu0 %v2734
    %3165 = vmatprep.subr.mxu0 0.0
    %3166 = vmatpush1.msra.mxu0 %v2735
    %3167 = vmatprep.subr.mxu0 0.0
    %3168 = vmatpush1.msra.mxu0 %v2736
    %3169 = vmatprep.subr.mxu0 0.0
    %3170 = vmatpush1.msra.mxu0 %v2737
    %3171 = vmatprep.subr.mxu0 0.0
    %3172 = vmatpush1.msra.mxu0 %v2738
    %3173 = vmatprep.subr.mxu0 0.0
    %3174 = vmatpush1.msra.mxu0 %v2739
    %3175 = vmatprep.subr.mxu0 0.0
    %3176 = vmatpush1.msra.mxu0 %v2740
    %3177 = vmatprep.subr.mxu0 0.0
    %3178 = vmatpush1.msra.mxu0 %v2741
    %3179 = vmatprep.subr.mxu0 0.0
    %3180 = vmatpush1.msra.mxu0 %v2742
    %3181 = vmatprep.subr.mxu0 0.0
    %3182 = vmatpush1.msra.mxu0 %v2743
    %3183 = vmatprep.subr.mxu0 0.0
    %3184 = vmatpush1.msra.mxu0 %v2744
    %3185 = vmatprep.subr.mxu0 0.0
    %3186 = vmatpush1.msra.mxu0 %v2745
    %3187 = vmatprep.subr.mxu0 0.0
    %3188 = vmatpush1.msra.mxu0 %v2746
    %3189 = vmatprep.subr.mxu0 0.0
    %3190 = vmatpush1.msra.mxu0 %v2747
    %3191 = vmatprep.subr.mxu0 0.0
    %3192 = vmatpush1.msra.mxu0 %v2748
    %3193 = vmatprep.subr.mxu0 0.0
    %3194 = vmatpush1.msra.mxu0 %v2749
    %3195 = vmatprep.subr.mxu0 0.0
    %3196 = vmatpush1.msra.mxu0 %v2750
    %3197 = vmatprep.subr.mxu0 0.0
    %3198 = vmatpush1.msra.mxu0 %v2751
    %3199 = vmatprep.mubr.f32.mxu0 %v2582
    %3200 = vmatmul.mubr.f32.gmra.mrb[0].mxu0 %v2581
    %v3201 = vpop.f32.mrb[0].mxu0
    %v3202 = vadd.f32 %v3132, %v3201
    %v3203 = vpop.f32.mrb[0].mxu0
    %3204 = vdwg.mxu0
    %3205 = vmatprep.subr.mxu0 0.0
    %3206 = vmatpush1.msra.mxu0 %v2752
    %3207 = vmatprep.subr.mxu0 0.0
    %3208 = vmatpush1.msra.mxu0 %v2753
    %3209 = vmatprep.subr.mxu0 0.0
    %3210 = vmatpush1.msra.mxu0 %v2754
    %3211 = vmatprep.subr.mxu0 0.0
    %3212 = vmatpush1.msra.mxu0 %v2755
    %3213 = vmatprep.subr.mxu0 0.0
    %3214 = vmatpush1.msra.mxu0 %v2756
    %3215 = vmatprep.subr.mxu0 0.0
    %3216 = vmatpush1.msra.mxu0 %v2757
    %3217 = vmatprep.subr.mxu0 0.0
    %3218 = vmatpush1.msra.mxu0 %v2758
    %3219 = vmatprep.subr.mxu0 0.0
    %3220 = vmatpush1.msra.mxu0 %v2759
    %3221 = vmatprep.subr.mxu0 0.0
    %3222 = vmatpush1.msra.mxu0 %v2760
    %3223 = vmatprep.subr.mxu0 0.0
    %3224 = vmatpush1.msra.mxu0 %v2761
    %3225 = vmatprep.subr.mxu0 0.0
    %3226 = vmatpush1.msra.mxu0 %v2762
    %3227 = vmatprep.subr.mxu0 0.0
    %3228 = vmatpush1.msra.mxu0 %v2763
    %3229 = vmatprep.subr.mxu0 0.0
    %3230 = vmatpush1.msra.mxu0 %v2764
    %3231 = vmatprep.subr.mxu0 0.0
    %3232 = vmatpush1.msra.mxu0 %v2765
    %3233 = vmatprep.subr.mxu0 0.0
    %3234 = vmatpush1.msra.mxu0 %v2766
    %3235 = vmatprep.subr.mxu0 0.0
    %3236 = vmatpush1.msra.mxu0 %v2767
    %3237 = vmatprep.subr.mxu0 0.0
    %3238 = vmatpush1.msra.mxu0 %v2768
    %3239 = vmatprep.subr.mxu0 0.0
    %3240 = vmatpush1.msra.mxu0 %v2769
    %3241 = vmatprep.subr.mxu0 0.0
    %3242 = vmatpush1.msra.mxu0 %v2770
    %3243 = vmatprep.subr.mxu0 0.0
    %3244 = vmatpush1.msra.mxu0 %v2771
    %3245 = vmatprep.subr.mxu0 0.0
    %3246 = vmatpush1.msra.mxu0 %v2772
    %3247 = vmatprep.subr.mxu0 0.0
    %3248 = vmatpush1.msra.mxu0 %v2773
    %3249 = vmatprep.subr.mxu0 0.0
    %3250 = vmatpush1.msra.mxu0 %v2774
    %3251 = vmatprep.subr.mxu0 0.0
    %3252 = vmatpush1.msra.mxu0 %v2775
    %3253 = vmatprep.subr.mxu0 0.0
    %3254 = vmatpush1.msra.mxu0 %v2776
    %3255 = vmatprep.subr.mxu0 0.0
    %3256 = vmatpush1.msra.mxu0 %v2777
    %3257 = vmatprep.subr.mxu0 0.0
    %3258 = vmatpush1.msra.mxu0 %v2778
    %3259 = vmatprep.subr.mxu0 0.0
    %3260 = vmatpush1.msra.mxu0 %v2779
    %3261 = vmatprep.subr.mxu0 0.0
    %3262 = vmatpush1.msra.mxu0 %v2780
    %3263 = vmatprep.subr.mxu0 0.0
    %3264 = vmatpush1.msra.mxu0 %v2781
    %3265 = vmatprep.subr.mxu0 0.0
    %3266 = vmatpush1.msra.mxu0 %v2782
    %3267 = vmatprep.subr.mxu0 0.0
    %3268 = vmatpush1.msra.mxu0 %v2783
    %3269 = vmatprep.mubr.f32.mxu0 %v2584
    %3270 = vmatmul.mubr.f32.gmra.mrb[0].mxu0 %v2583
    %v3271 = vpop.f32.mrb[0].mxu0
    %v3272 = vadd.f32 %v3202, %v3271
    %v3273 = vpop.f32.mrb[0].mxu0
    %3274 = vdwg.mxu0
    %3275 = vmatprep.subr.mxu0 0.0
    %3276 = vmatpush1.msra.mxu0 %v2784
    %3277 = vmatprep.subr.mxu0 0.0
    %3278 = vmatpush1.msra.mxu0 %v2785
    %3279 = vmatprep.subr.mxu0 0.0
    %3280 = vmatpush1.msra.mxu0 %v2786
    %3281 = vmatprep.subr.mxu0 0.0
    %3282 = vmatpush1.msra.mxu0 %v2787
    %3283 = vmatprep.subr.mxu0 0.0
    %3284 = vmatpush1.msra.mxu0 %v2788
    %3285 = vmatprep.subr.mxu0 0.0
    %3286 = vmatpush1.msra.mxu0 %v2789
    %3287 = vmatprep.subr.mxu0 0.0
    %3288 = vmatpush1.msra.mxu0 %v2790
    %3289 = vmatprep.subr.mxu0 0.0
    %3290 = vmatpush1.msra.mxu0 %v2791
    %3291 = vmatprep.subr.mxu0 0.0
    %3292 = vmatpush1.msra.mxu0 %v2792
    %3293 = vmatprep.subr.mxu0 0.0
    %3294 = vmatpush1.msra.mxu0 %v2793
    %3295 = vmatprep.subr.mxu0 0.0
    %3296 = vmatpush1.msra.mxu0 %v2794
    %3297 = vmatprep.subr.mxu0 0.0
    %3298 = vmatpush1.msra.mxu0 %v2795
    %3299 = vmatprep.subr.mxu0 0.0
    %3300 = vmatpush1.msra.mxu0 %v2796
    %3301 = vmatprep.subr.mxu0 0.0
    %3302 = vmatpush1.msra.mxu0 %v2797
    %3303 = vmatprep.subr.mxu0 0.0
    %3304 = vmatpush1.msra.mxu0 %v2798
    %3305 = vmatprep.subr.mxu0 0.0
    %3306 = vmatpush1.msra.mxu0 %v2799
    %3307 = vmatprep.subr.mxu0 0.0
    %3308 = vmatpush1.msra.mxu0 %v2800
    %3309 = vmatprep.subr.mxu0 0.0
    %3310 = vmatpush1.msra.mxu0 %v2801
    %3311 = vmatprep.subr.mxu0 0.0
    %3312 = vmatpush1.msra.mxu0 %v2802
    %3313 = vmatprep.subr.mxu0 0.0
    %3314 = vmatpush1.msra.mxu0 %v2803
    %3315 = vmatprep.subr.mxu0 0.0
    %3316 = vmatpush1.msra.mxu0 %v2804
    %3317 = vmatprep.subr.mxu0 0.0
    %3318 = vmatpush1.msra.mxu0 %v2805
    %3319 = vmatprep.subr.mxu0 0.0
    %3320 = vmatpush1.msra.mxu0 %v2806
    %3321 = vmatprep.subr.mxu0 0.0
    %3322 = vmatpush1.msra.mxu0 %v2807
    %3323 = vmatprep.subr.mxu0 0.0
    %3324 = vmatpush1.msra.mxu0 %v2808
    %3325 = vmatprep.subr.mxu0 0.0
    %3326 = vmatpush1.msra.mxu0 %v2809
    %3327 = vmatprep.subr.mxu0 0.0
    %3328 = vmatpush1.msra.mxu0 %v2810
    %3329 = vmatprep.subr.mxu0 0.0
    %3330 = vmatpush1.msra.mxu0 %v2811
    %3331 = vmatprep.subr.mxu0 0.0
    %3332 = vmatpush1.msra.mxu0 %v2812
    %3333 = vmatprep.subr.mxu0 0.0
    %3334 = vmatpush1.msra.mxu0 %v2813
    %3335 = vmatprep.subr.mxu0 0.0
    %3336 = vmatpush1.msra.mxu0 %v2814
    %3337 = vmatprep.subr.mxu0 0.0
    %3338 = vmatpush1.msra.mxu0 %v2815
    %3339 = vmatprep.mubr.f32.mxu0 %v2586
    %3340 = vmatmul.mubr.f32.gmra.mrb[0].mxu0 %v2585
    %v3341 = vpop.f32.mrb[0].mxu0
    %v3342 = vadd.f32 %v3272, %v3341
    %v3343 = vpop.f32.mrb[0].mxu0
    %3344 = vdwg.mxu0
    %3345 = vmatprep.subr.mxu0 0.0
    %3346 = vmatpush1.msra.mxu0 %v2816
    %3347 = vmatprep.subr.mxu0 0.0
    %3348 = vmatpush1.msra.mxu0 %v2817
    %3349 = vmatprep.subr.mxu0 0.0
    %3350 = vmatpush1.msra.mxu0 %v2818
    %3351 = vmatprep.subr.mxu0 0.0
    %3352 = vmatpush1.msra.mxu0 %v2819
    %3353 = vmatprep.subr.mxu0 0.0
    %3354 = vmatpush1.msra.mxu0 %v2820
    %3355 = vmatprep.subr.mxu0 0.0
    %3356 = vmatpush1.msra.mxu0 %v2821
    %3357 = vmatprep.subr.mxu0 0.0
    %3358 = vmatpush1.msra.mxu0 %v2822
    %3359 = vmatprep.subr.mxu0 0.0
    %3360 = vmatpush1.msra.mxu0 %v2823
    %3361 = vmatprep.subr.mxu0 0.0
    %3362 = vmatpush1.msra.mxu0 %v2824
    %3363 = vmatprep.subr.mxu0 0.0
    %3364 = vmatpush1.msra.mxu0 %v2825
    %3365 = vmatprep.subr.mxu0 0.0
    %3366 = vmatpush1.msra.mxu0 %v2826
    %3367 = vmatprep.subr.mxu0 0.0
    %3368 = vmatpush1.msra.mxu0 %v2827
    %3369 = vmatprep.subr.mxu0 0.0
    %3370 = vmatpush1.msra.mxu0 %v2828
    %3371 = vmatprep.subr.mxu0 0.0
    %3372 = vmatpush1.msra.mxu0 %v2829
    %3373 = vmatprep.subr.mxu0 0.0
    %3374 = vmatpush1.msra.mxu0 %v2830
    %3375 = vmatprep.subr.mxu0 0.0
    %3376 = vmatpush1.msra.mxu0 %v2831
    %3377 = vmatprep.subr.mxu0 0.0
    %3378 = vmatpush1.msra.mxu0 %v2832
    %3379 = vmatprep.subr.mxu0 0.0
    %3380 = vmatpush1.msra.mxu0 %v2833
    %3381 = vmatprep.subr.mxu0 0.0
    %3382 = vmatpush1.msra.mxu0 %v2834
    %3383 = vmatprep.subr.mxu0 0.0
    %3384 = vmatpush1.msra.mxu0 %v2835
    %3385 = vmatprep.subr.mxu0 0.0
    %3386 = vmatpush1.msra.mxu0 %v2836
    %3387 = vmatprep.subr.mxu0 0.0
    %3388 = vmatpush1.msra.mxu0 %v2837
    %3389 = vmatprep.subr.mxu0 0.0
    %3390 = vmatpush1.msra.mxu0 %v2838
    %3391 = vmatprep.subr.mxu0 0.0
    %3392 = vmatpush1.msra.mxu0 %v2839
    %3393 = vmatprep.subr.mxu0 0.0
    %3394 = vmatpush1.msra.mxu0 %v2840
    %3395 = vmatprep.subr.mxu0 0.0
    %3396 = vmatpush1.msra.mxu0 %v2841
    %3397 = vmatprep.subr.mxu0 0.0
    %3398 = vmatpush1.msra.mxu0 %v2842
    %3399 = vmatprep.subr.mxu0 0.0
    %3400 = vmatpush1.msra.mxu0 %v2843
    %3401 = vmatprep.subr.mxu0 0.0
    %3402 = vmatpush1.msra.mxu0 %v2844
    %3403 = vmatprep.subr.mxu0 0.0
    %3404 = vmatpush1.msra.mxu0 %v2845
    %3405 = vmatprep.subr.mxu0 0.0
    %3406 = vmatpush1.msra.mxu0 %v2846
    %3407 = vmatprep.subr.mxu0 0.0
    %3408 = vmatpush1.msra.mxu0 %v2847
    %3409 = vmatprep.mubr.f32.mxu0 %v2588
    %3410 = vmatmul.mubr.f32.gmra.mrb[0].mxu0 %v2587
    %v3411 = vpop.f32.mrb[0].mxu0
    %v3412 = vadd.f32 %v3342, %v3411
    %v3413 = vpop.f32.mrb[0].mxu0
    %3414 = vdwg.mxu0
    %v3415 = vmax.f32 %v3412, 0.0
    %v3416 = vld [vmem:[%s10] sm:$0xff]
    %v3417 = vld [vmem:[%s10 + $0x8] sm:$0xff]
    %v3418 = vld [vmem:[%s10 + $0x10] sm:$0xff]
    %v3419 = vld [vmem:[%s10 + $0x18] sm:$0xff]
    %v3420 = vld [vmem:[%s11] sm:$0x1]
    %v3422 = vlaneseq
    %v3423 = vshrl.u32 %v3422, 7
    %v3424 = vsub.s32 0, %v3423
    %v3425 = vrot.slane %v3420, %v3424
    %vm3427 = vcmask 261120
    %v3429 = vsel %vm3427, %v3415, 0
    %3431 = vmatprep.subr.mxu0 0.0
    %3432 = vmatpush1.msra.mxu0 %v3416
    %3433 = vmatprep.subr.mxu0 0.0
    %3434 = vmatpush1.msra.mxu0 %v3417
    %3435 = vmatprep.subr.mxu0 0.0
    %3436 = vmatpush1.msra.mxu0 %v3418
    %3437 = vmatprep.subr.mxu0 0.0
    %3438 = vmatpush1.msra.mxu0 %v3419
    %3439 = vmatprep.subr.mxu0 0.0
    %3440 = vmatpush1.msra.mxu0 0.0
    %3441 = vmatprep.subr.mxu0 0.0
    %3442 = vmatpush1.msra.mxu0 0.0
    %3443 = vmatprep.subr.mxu0 0.0
    %3444 = vmatpush1.msra.mxu0 0.0
    %3445 = vmatprep.subr.mxu0 0.0
    %3446 = vmatpush1.msra.mxu0 0.0
    %3447 = vmatprep.subr.mxu0 0.0
    %3448 = vmatpush1.msra.mxu0 0.0
    %3449 = vmatprep.subr.mxu0 0.0
    %3450 = vmatpush1.msra.mxu0 0.0
    %3451 = vmatprep.subr.mxu0 0.0
    %3452 = vmatpush1.msra.mxu0 0.0
    %3453 = vmatprep.subr.mxu0 0.0
    %3454 = vmatpush1.msra.mxu0 0.0
    %3455 = vmatprep.subr.mxu0 0.0
    %3456 = vmatpush1.msra.mxu0 0.0
    %3457 = vmatprep.subr.mxu0 0.0
    %3458 = vmatpush1.msra.mxu0 0.0
    %3459 = vmatprep.subr.mxu0 0.0
    %3460 = vmatpush1.msra.mxu0 0.0
    %3461 = vmatprep.subr.mxu0 0.0
    %3462 = vmatpush1.msra.mxu0 0.0
    %3463 = vmatprep.subr.mxu0 0.0
    %3464 = vmatpush1.msra.mxu0 0.0
    %3465 = vmatprep.subr.mxu0 0.0
    %3466 = vmatpush1.msra.mxu0 0.0
    %3467 = vmatprep.subr.mxu0 0.0
    %3468 = vmatpush1.msra.mxu0 0.0
    %3469 = vmatprep.subr.mxu0 0.0
    %3470 = vmatpush1.msra.mxu0 0.0
    %3471 = vmatprep.subr.mxu0 0.0
    %3472 = vmatpush1.msra.mxu0 0.0
    %3473 = vmatprep.subr.mxu0 0.0
    %3474 = vmatpush1.msra.mxu0 0.0
    %3475 = vmatprep.subr.mxu0 0.0
    %3476 = vmatpush1.msra.mxu0 0.0
    %3477 = vmatprep.subr.mxu0 0.0
    %3478 = vmatpush1.msra.mxu0 0.0
    %3479 = vmatprep.subr.mxu0 0.0
    %3480 = vmatpush1.msra.mxu0 0.0
    %3481 = vmatprep.subr.mxu0 0.0
    %3482 = vmatpush1.msra.mxu0 0.0
    %3483 = vmatprep.subr.mxu0 0.0
    %3484 = vmatpush1.msra.mxu0 0.0
    %3485 = vmatprep.subr.mxu0 0.0
    %3486 = vmatpush1.msra.mxu0 0.0
    %3487 = vmatprep.subr.mxu0 0.0
    %3488 = vmatpush1.msra.mxu0 0.0
    %3489 = vmatprep.subr.mxu0 0.0
    %3490 = vmatpush1.msra.mxu0 0.0
    %3491 = vmatprep.subr.mxu0 0.0
    %3492 = vmatpush1.msra.mxu0 0.0
    %3493 = vmatprep.subr.mxu0 0.0
    %3494 = vmatpush1.msra.mxu0 0.0
    %3495 = vmatprep.mubr.f32.mxu0 0.0
    %3496 = vmatmul.mubr.f32.gmra.mrb[0].mxu0 %v3429
    %v3497 = vpop.f32.mrb[0].mxu0
    %v3498 = vadd.f32 %v3425, %v3497
    %v3499 = vpop.f32.mrb[0].mxu0
    %3500 = vdwg.mxu0
    %v3501 = vmax.f32 %v3498, 0.0
    %v3502 = vld [vmem:[%s12] sm:$0xff]
    %v3503 = vld [vmem:[%s12 + $0x8] sm:$0xff]
    %v3504 = vld [vmem:[%s12 + $0x10] sm:$0xff]
    %v3505 = vld [vmem:[%s12 + $0x18] sm:$0xff]
    %v3506 = vld [vmem:[%s13] sm:$0x1]
    %v3508 = vlaneseq
    %v3509 = vshrl.u32 %v3508, 7
    %v3510 = vsub.s32 0, %v3509
    %v3511 = vrot.slane %v3506, %v3510
    %v3514 = vsel %vm3427, %v3501, 0
    %3516 = vmatprep.subr.mxu0 0.0
    %3517 = vmatpush1.msra.mxu0 %v3502
    %3518 = vmatprep.subr.mxu0 0.0
    %3519 = vmatpush1.msra.mxu0 %v3503
    %3520 = vmatprep.subr.mxu0 0.0
    %3521 = vmatpush1.msra.mxu0 %v3504
    %3522 = vmatprep.subr.mxu0 0.0
    %3523 = vmatpush1.msra.mxu0 %v3505
    %3524 = vmatprep.subr.mxu0 0.0
    %3525 = vmatpush1.msra.mxu0 0.0
    %3526 = vmatprep.subr.mxu0 0.0
    %3527 = vmatpush1.msra.mxu0 0.0
    %3528 = vmatprep.subr.mxu0 0.0
    %3529 = vmatpush1.msra.mxu0 0.0
    %3530 = vmatprep.subr.mxu0 0.0
    %3531 = vmatpush1.msra.mxu0 0.0
    %3532 = vmatprep.subr.mxu0 0.0
    %3533 = vmatpush1.msra.mxu0 0.0
    %3534 = vmatprep.subr.mxu0 0.0
    %3535 = vmatpush1.msra.mxu0 0.0
    %3536 = vmatprep.subr.mxu0 0.0
    %3537 = vmatpush1.msra.mxu0 0.0
    %3538 = vmatprep.subr.mxu0 0.0
    %3539 = vmatpush1.msra.mxu0 0.0
    %3540 = vmatprep.subr.mxu0 0.0
    %3541 = vmatpush1.msra.mxu0 0.0
    %3542 = vmatprep.subr.mxu0 0.0
    %3543 = vmatpush1.msra.mxu0 0.0
    %3544 = vmatprep.subr.mxu0 0.0
    %3545 = vmatpush1.msra.mxu0 0.0
    %3546 = vmatprep.subr.mxu0 0.0
    %3547 = vmatpush1.msra.mxu0 0.0
    %3548 = vmatprep.subr.mxu0 0.0
    %3549 = vmatpush1.msra.mxu0 0.0
    %3550 = vmatprep.subr.mxu0 0.0
    %3551 = vmatpush1.msra.mxu0 0.0
    %3552 = vmatprep.subr.mxu0 0.0
    %3553 = vmatpush1.msra.mxu0 0.0
    %3554 = vmatprep.subr.mxu0 0.0
    %3555 = vmatpush1.msra.mxu0 0.0
    %3556 = vmatprep.subr.mxu0 0.0
    %3557 = vmatpush1.msra.mxu0 0.0
    %3558 = vmatprep.subr.mxu0 0.0
    %3559 = vmatpush1.msra.mxu0 0.0
    %3560 = vmatprep.subr.mxu0 0.0
    %3561 = vmatpush1.msra.mxu0 0.0
    %3562 = vmatprep.subr.mxu0 0.0
    %3563 = vmatpush1.msra.mxu0 0.0
    %3564 = vmatprep.subr.mxu0 0.0
    %3565 = vmatpush1.msra.mxu0 0.0
    %3566 = vmatprep.subr.mxu0 0.0
    %3567 = vmatpush1.msra.mxu0 0.0
    %3568 = vmatprep.subr.mxu0 0.0
    %3569 = vmatpush1.msra.mxu0 0.0
    %3570 = vmatprep.subr.mxu0 0.0
    %3571 = vmatpush1.msra.mxu0 0.0
    %3572 = vmatprep.subr.mxu0 0.0
    %3573 = vmatpush1.msra.mxu0 0.0
    %3574 = vmatprep.subr.mxu0 0.0
    %3575 = vmatpush1.msra.mxu0 0.0
    %3576 = vmatprep.subr.mxu0 0.0
    %3577 = vmatpush1.msra.mxu0 0.0
    %3578 = vmatprep.subr.mxu0 0.0
    %3579 = vmatpush1.msra.mxu0 0.0
    %3580 = vmatprep.mubr.f32.mxu0 0.0
    %3581 = vmatmul.mubr.f32.gmra.mrb[0].mxu0 %v3514
    %v3582 = vpop.f32.mrb[0].mxu0
    %v3583 = vadd.f32 %v3511, %v3582
    %v3584 = vpop.f32.mrb[0].mxu0
    %3585 = vdwg.mxu0
    %vm3586 = vcmask 17408
    %v3587 = vsel %vm3586, %v3583, -inf
    %3588 = vmax.xlane.f32.xlu0 %v3587
    %v3589 = vpop.xlane.xlu0 %3588
    %v3590 = vsub.f32 %v3583, %v3589
    %v3591 = vmul.f32 %v3590, 1.442695
    %v3592 = vpow.pop %v3591
    %v3593 = vsel %vm3586, %v3592, 0.0
    %3594 = vadd.xlane.f32.xlu0 %v3593
    %v3595 = vpop.xlane.xlu0 %3594
    %v3596 = vlog2.pop %v3595
    %v3597 = vmul.f32 %v3596, 0.6931472
    %v3598 = vsub.f32 %v3590, %v3597
    %3599 = vst.msk [vmem:[#allocation5] sm:$0x3] %vm3586, %v3598
    // Predicated region
    $region88: #{lcnn_forward.1} parent=1 // pred_check
      _
    $region89: #{lcnn_forward.1} parent=1 // pred_check_branch
      %3601 = sbr.rel (0) target = $region91
    $region90: #{lcnn_forward.1} parent=1 // pred_region
      %s3603 = ssub.s32 32, 32
      %3604 = vsyncadd [#allocation6], %s3603
      %s3606 = sshll.u32 [#allocation5], 4
      %s3607 = int_to_ptr.vmem [resolvable:$true] %s3606
      %3609 = dma.vmem_to_hbm [thread:$0]  %s3607, 32, %s14, [#allocation6]
    $region91: #{lcnn_forward.1} parent=1 // pred_fallthru
      _
    // Predicated region
    $region92: #{lcnn_forward.1} parent=1 // pred_check
      _
    $region93: #{lcnn_forward.1} parent=1 // pred_check_branch
      %3611 = sbr.rel (0) target = $region95
    $region94: #{lcnn_forward.1} parent=1 // pred_region
      %3612 = dma.done [#allocation6], 32
    $region95: #{lcnn_forward.1} parent=1 // pred_fallthru
      _
    %3613 = vsyncpa [#allocation6], 1
  %3614 = vsyncmov [#allocation4]
  %s3615 = vpop.sfrf %3614
  %p3616 = scmp.eq.s32.totalorder %s3615, 0
  %p3617 = pneg %p3616
  %3619 = shalt.err (%p3617)

</llo_original>
